<compile_context>
chip_gen: v7x
topology: tpu7x:2x2x1
jax: 0.10.0
libtpu: 0.0.40
codegen_flags: <defaults>
</compile_context>

<pallas_src>
import math

import jax
import jax.numpy as jnp
from jax.experimental import pallas as pl
from jax.experimental.pallas import tpu as pltpu

NUM_HEADS = 4


# --------------------------------------------------------------------------- #
# Kernel
# --------------------------------------------------------------------------- #
def _gelu_tanh(x):
    # tanh-approx GELU: routes the transcendental to the EUP slot (co-issues
    # with VPU/MXU).  ~1e-3 max abs deviation vs torch's exact erf GELU.
    c = math.sqrt(2.0 / math.pi)
    return 0.5 * x * (1.0 + jnp.tanh(c * (x + 0.044715 * x * x * x)))


def _make_fused_forward_kernel(num_layers, num_heads):
    """Whole-forward kernel.  All tensors stay lane-dense f32 in VMEM."""

    def kernel(x_ref, adj_ref, oh_ref,
               wop_ref, bop_ref,
               wqkv_ref, bqkv_ref,
               wo_ref, misc_ref,
               wh_ref, bh_ref,
               o_ref):
        f = wop_ref.shape[1]
        d = f // num_heads

        # ---- lin_operator ---------------------------------------------------
        h = (jnp.dot(x_ref[...], wop_ref[...], preferred_element_type=jnp.float32)
             + bop_ref[...])

        adj = adj_ref[...]               # edge-count matrix [N_dst, N_src]
        no_edge = adj <= 0.0
        wqkv = wqkv_ref[...]             # [F, 3F]  (q | k_folded | v_folded)
        bqkv = bqkv_ref[...]             # [1, 3F]
        wo = wo_ref[...]                 # alpha * w_out   [F, F]
        bo = misc_ref[0:1, :]            # alpha * b_out
        ln_g = misc_ref[1:2, :]
        ln_b = misc_ref[2:3, :]
        oma = misc_ref[3:4, :]           # (1 - alpha)

        # ---- num_layers x HGTConv (shared weights), static unroll ------------
        for _ in range(num_layers):
            qkv = jnp.dot(h, wqkv, preferred_element_type=jnp.float32) + bqkv
            acc = jnp.zeros_like(h)
            for hh in range(num_heads):          # static unroll; heads = lane slices
                lo = hh * d
                qh = qkv[:, lo:lo + d]
                kh = qkv[:, f + lo:f + lo + d]
                vh = qkv[:, 2 * f + lo:2 * f + lo + d]
                # scores[i, j] = q_i . k'_j   (p_rel/sqrt(D) folded into k weights)
                s = jax.lax.dot_general(
                    qh, kh, (((1,), (1,)), ((), ())),
                    preferred_element_type=jnp.float32)
                masked = jnp.where(no_edge, jnp.float32(-1e30), s)
                m = jnp.max(masked, axis=-1, keepdims=True)
                e = jnp.exp(masked - m) * adj                       # dup edges weighted
                denom = jnp.sum(e, axis=-1, keepdims=True) + 1e-16  # PyG softmax eps
                att = jnp.dot(e / denom, vh, preferred_element_type=jnp.float32)
                # gelu is elementwise -> accumulate per-head straight into out_lin,
                # no lane-concat of the head outputs.
                acc = acc + jnp.dot(_gelu_tanh(att), wo[lo:lo + d, :],
                                    preferred_element_type=jnp.float32)

            # sigmoid-skip residual (alpha already folded into wo / bo)
            xnew = acc + bo + oma * h

            # ELU (alpha=1) + LayerNorm (biased variance, eps=1e-5, like torch)
            y = jnp.where(xnew > 0.0, xnew, jnp.exp(xnew) - 1.0)
            mu = jnp.mean(y, axis=-1, keepdims=True)
            cen = y - mu
            var = jnp.mean(cen * cen, axis=-1, keepdims=True)
            h = cen * jax.lax.rsqrt(var + 1e-5) * ln_g + ln_b

        # ---- global_mean_pool + fused mem|time heads -------------------------
        oh = oh_ref[...]
        cnt = jnp.sum(oh, axis=-1, keepdims=True)
        pooled = (jnp.dot(oh, h, preferred_element_type=jnp.float32)
                  / jnp.maximum(cnt, 1.0))
        o_ref[...] = (jnp.dot(pooled, wh_ref[...],
                              preferred_element_type=jnp.float32) + bh_ref[...])

    return kernel


# --------------------------------------------------------------------------- #
# Wrapper (tiny weight folding in plain JAX, hot path = one fused kernel)
# --------------------------------------------------------------------------- #
def build_graph_constants(edge_index, batch, num_nodes, num_graphs):
    """Static per-graph tensors, hoisted out of the per-call hot path:
    dense edge-count adjacency adj[dst, src] and the mean-pool one-hot."""
    adj = jnp.zeros((num_nodes, num_nodes), jnp.float32).at[
        edge_index[1], edge_index[0]].add(1.0)
    onehot = (batch[None, :] ==
              jnp.arange(num_graphs, dtype=batch.dtype)[:, None]).astype(jnp.float32)
    return adj, onehot


def hetero_graph_hgt_forward(x, adj, onehot, params, *, num_layers):
    n, fin = x.shape
    bsz = onehot.shape[0]
    F_ = params["w_out"].shape[0]
    H = NUM_HEADS
    D = F_ // H
    oc = params["w_mem"].shape[1]

    # split packed kqv projection (column order k | q | v)
    w_kqv, b_kqv = params["w_kqv"], params["b_kqv"]
    wk, wq, wv = w_kqv[:, :F_], w_kqv[:, F_:2 * F_], w_kqv[:, 2 * F_:]
    bk, bq, bv = b_kqv[:F_], b_kqv[F_:2 * F_], b_kqv[2 * F_:]

    # fold wk_rel / wv_rel (and the p_rel/sqrt(D) score scale) into k / v
    scale = params["p_rel"] / math.sqrt(D)                                # [H]
    wk_f = (jnp.einsum("fhd,hde->fhe", wk.reshape(F_, H, D), params["wk_rel"])
            * scale[None, :, None]).reshape(F_, F_)
    bk_f = (jnp.einsum("hd,hde->he", bk.reshape(H, D), params["wk_rel"])
            * scale[:, None]).reshape(F_)
    wv_f = jnp.einsum("fhd,hde->fhe", wv.reshape(F_, H, D),
                      params["wv_rel"]).reshape(F_, F_)
    bv_f = jnp.einsum("hd,hde->he", bv.reshape(H, D),
                      params["wv_rel"]).reshape(F_)

    # pack q | k_folded | v_folded into one lane-dense [F, 3F] projection
    w_qkv = jnp.concatenate([wq, wk_f, wv_f], axis=1)
    b_qkv = jnp.concatenate([bq, bk_f, bv_f]).reshape(1, 3 * F_)

    # fold alpha = sigmoid(skip) into the out projection; (1-alpha) rides in misc
    alpha = jax.nn.sigmoid(params["skip"][0])
    wo_a = alpha * params["w_out"]
    misc = jnp.stack([alpha * params["b_out"], params["ln_g"], params["ln_b"],
                      (1.0 - alpha) * jnp.ones((F_,), jnp.float32)])      # [4, F]

    # fused mem | time head
    w_head = jnp.concatenate([params["w_mem"], params["w_time"]], axis=1)
    b_head = jnp.concatenate([params["b_mem"], params["b_time"]]).reshape(1, 2 * oc)

    def full(shape):
        return pl.BlockSpec(shape, lambda i: (0, 0))

    out = pl.pallas_call(
        _make_fused_forward_kernel(num_layers, H),
        out_shape=jax.ShapeDtypeStruct((bsz, 2 * oc), jnp.float32),
        grid=(1,),
        in_specs=[
            full((n, fin)), full((n, n)), full((bsz, n)),
            full((fin, F_)), full((1, F_)),
            full((F_, 3 * F_)), full((1, 3 * F_)),
            full((F_, F_)), full((4, F_)),
            full((F_, 2 * oc)), full((1, 2 * oc)),
        ],
        out_specs=full((bsz, 2 * oc)),
        compiler_params=pltpu.CompilerParams(dimension_semantics=("arbitrary",)),
    )(x, adj, onehot,
      params["w_op"], params["b_op"].reshape(1, F_),
      w_qkv, b_qkv, wo_a, misc, w_head, b_head)

    # matches torch .squeeze() (also drops batch dim when num_graphs == 1)
    return jnp.squeeze(out[:, :oc]), jnp.squeeze(out[:, oc:])


# --------------------------------------------------------------------------- #
# Main
# --------------------------------------------------------------------------- #
if __name__ == "__main__":
    num_op_feat, hidden, out_ch, num_layers = 16, 32, 1, 2
    H = NUM_HEADS
    D = hidden // H
    N, E, B = 12, 24, 3

    key = jax.random.PRNGKey(0)
    keys = jax.random.split(key, 16)
    params = {
        "w_op":   0.1 * jax.random.normal(keys[0], (num_op_feat, hidden), jnp.float32),
        "b_op":   0.1 * jax.random.normal(keys[1], (hidden,), jnp.float32),
        "w_kqv":  0.1 * jax.random.normal(keys[2], (hidden, 3 * hidden), jnp.float32),
        "b_kqv":  0.1 * jax.random.normal(keys[3], (3 * hidden,), jnp.float32),
        "wk_rel": 0.1 * jax.random.normal(keys[4], (H, D, D), jnp.float32),
        "wv_rel": 0.1 * jax.random.normal(keys[5], (H, D, D), jnp.float32),
        "p_rel":  jnp.ones((H,), jnp.float32),              # PyG default init: ones
        "w_out":  0.1 * jax.random.normal(keys[6], (hidden, hidden), jnp.float32),
        "b_out":  0.1 * jax.random.normal(keys[7], (hidden,), jnp.float32),
        "skip":   jnp.ones((1,), jnp.float32),              # PyG default init: ones
        "ln_g":   jnp.ones((hidden,), jnp.float32),
        "ln_b":   jnp.zeros((hidden,), jnp.float32),
        "w_mem":  0.1 * jax.random.normal(keys[8], (hidden, out_ch), jnp.float32),
        "b_mem":  0.1 * jax.random.normal(keys[9], (out_ch,), jnp.float32),
        "w_time": 0.1 * jax.random.normal(keys[10], (hidden, out_ch), jnp.float32),
        "b_time": 0.1 * jax.random.normal(keys[11], (out_ch,), jnp.float32),
    }

    x = jax.random.normal(keys[12], (N, num_op_feat), jnp.float32)
    src = jax.random.randint(keys[13], (E,), 0, N, dtype=jnp.int32)
    dst = jax.random.randint(keys[14], (E,), 0, N, dtype=jnp.int32)
    edge_index = jnp.stack([src, dst])                      # [2, E], (src, dst) rows
    batch_operator = jnp.repeat(jnp.arange(B, dtype=jnp.int32), N // B)

    # graph is static across forward calls -> build dense adj / pool onehot once
    adj, onehot = build_graph_constants(edge_index, batch_operator, N, B)

    fwd = jax.jit(hetero_graph_hgt_forward, static_argnames=("num_layers",))
    mem_pred, time_pred = fwd(x, adj, onehot, params, num_layers=num_layers)
    jax.block_until_ready((mem_pred, time_pred))
    print("KERNEL_OK")
</pallas_src>

<mosaic_0001>
module attributes {stable_mosaic.version = 11 : i64} {
  func.func @kernel(%arg0: i32, %arg1: memref<12x16xf32, #tpu.memory_space<vmem>>, %arg2: memref<12x12xf32, #tpu.memory_space<vmem>>, %arg3: memref<3x12xf32, #tpu.memory_space<vmem>>, %arg4: memref<16x32xf32, #tpu.memory_space<vmem>>, %arg5: memref<1x32xf32, #tpu.memory_space<vmem>>, %arg6: memref<32x96xf32, #tpu.memory_space<vmem>>, %arg7: memref<1x96xf32, #tpu.memory_space<vmem>>, %arg8: memref<32x32xf32, #tpu.memory_space<vmem>>, %arg9: memref<4x32xf32, #tpu.memory_space<vmem>>, %arg10: memref<32x2xf32, #tpu.memory_space<vmem>>, %arg11: memref<1x2xf32, #tpu.memory_space<vmem>>, %arg12: memref<3x2xf32, #tpu.memory_space<vmem>>) attributes {dimension_semantics = [#tpu.dimension_semantics<arbitrary>], iteration_bounds = array<i64: 1>, scalar_prefetch = 0 : i64, scratch_operands = 0 : i64, tpu.core_type = #tpu.core_type<tc>, window_params = [{pipeline_mode = #tpu.pipeline_mode<synchronous>, transform_indices = @transform_0, window_bounds = array<i64: 12, 16>}, {pipeline_mode = #tpu.pipeline_mode<synchronous>, transform_indices = @transform_1, window_bounds = array<i64: 12, 12>}, {pipeline_mode = #tpu.pipeline_mode<synchronous>, transform_indices = @transform_2, window_bounds = array<i64: 3, 12>}, {pipeline_mode = #tpu.pipeline_mode<synchronous>, transform_indices = @transform_3, window_bounds = array<i64: 16, 32>}, {pipeline_mode = #tpu.pipeline_mode<synchronous>, transform_indices = @transform_4, window_bounds = array<i64: 1, 32>}, {pipeline_mode = #tpu.pipeline_mode<synchronous>, transform_indices = @transform_5, window_bounds = array<i64: 32, 96>}, {pipeline_mode = #tpu.pipeline_mode<synchronous>, transform_indices = @transform_6, window_bounds = array<i64: 1, 96>}, {pipeline_mode = #tpu.pipeline_mode<synchronous>, transform_indices = @transform_7, window_bounds = array<i64: 32, 32>}, {pipeline_mode = #tpu.pipeline_mode<synchronous>, transform_indices = @transform_8, window_bounds = array<i64: 4, 32>}, {pipeline_mode = #tpu.pipeline_mode<synchronous>, transform_indices = @transform_9, window_bounds = array<i64: 32, 2>}, {pipeline_mode = #tpu.pipeline_mode<synchronous>, transform_indices = @transform_10, window_bounds = array<i64: 1, 2>}, {pipeline_mode = #tpu.pipeline_mode<synchronous>, transform_indices = @transform_11, window_bounds = array<i64: 3, 2>}]} {
    %c0 = arith.constant 0 : index
    %c0_0 = arith.constant 0 : index
    %0 = vector.load %arg1[%c0, %c0_0] : memref<12x16xf32, #tpu.memory_space<vmem>>, vector<12x16xf32>
    %c0_1 = arith.constant 0 : index
    %c0_2 = arith.constant 0 : index
    %1 = vector.load %arg4[%c0_1, %c0_2] : memref<16x32xf32, #tpu.memory_space<vmem>>, vector<16x32xf32>
    %cst = arith.constant dense<0.000000e+00> : vector<12x32xf32>
    %2 = tpu.matmul %0, %1, %cst {dimension_numbers = #tpu.dot_dimension_numbers<[1], [0], [0], [1], [0, 0, 1, 1], [], []>} : vector<12x16xf32>, vector<16x32xf32>, vector<12x32xf32> -> vector<12x32xf32>
    %c0_3 = arith.constant 0 : index
    %c0_4 = arith.constant 0 : index
    %3 = vector.load %arg5[%c0_3, %c0_4] : memref<1x32xf32, #tpu.memory_space<vmem>>, vector<1x32xf32>
    %4 = vector.broadcast %3 : vector<1x32xf32> to vector<12x32xf32>
    %5 = arith.addf %2, %4 : vector<12x32xf32>
    %c0_5 = arith.constant 0 : index
    %c0_6 = arith.constant 0 : index
    %6 = vector.load %arg2[%c0_5, %c0_6] : memref<12x12xf32, #tpu.memory_space<vmem>>, vector<12x12xf32>
    %cst_7 = arith.constant 0.000000e+00 : f32
    %7 = vector.broadcast %cst_7 : f32 to vector<12x12xf32>
    %8 = arith.cmpf ole, %6, %7 : vector<12x12xf32>
    %c0_8 = arith.constant 0 : index
    %c0_9 = arith.constant 0 : index
    %9 = vector.load %arg6[%c0_8, %c0_9] : memref<32x96xf32, #tpu.memory_space<vmem>>, vector<32x96xf32>
    %c0_10 = arith.constant 0 : index
    %c0_11 = arith.constant 0 : index
    %10 = vector.load %arg7[%c0_10, %c0_11] : memref<1x96xf32, #tpu.memory_space<vmem>>, vector<1x96xf32>
    %c0_12 = arith.constant 0 : index
    %c0_13 = arith.constant 0 : index
    %11 = vector.load %arg8[%c0_12, %c0_13] : memref<32x32xf32, #tpu.memory_space<vmem>>, vector<32x32xf32>
    %c0_14 = arith.constant 0 : index
    %c0_15 = arith.constant 0 : index
    %12 = vector.load %arg9[%c0_14, %c0_15] : memref<4x32xf32, #tpu.memory_space<vmem>>, vector<1x32xf32>
    %c1 = arith.constant 1 : index
    %c0_16 = arith.constant 0 : index
    %13 = vector.load %arg9[%c1, %c0_16] : memref<4x32xf32, #tpu.memory_space<vmem>>, vector<1x32xf32>
    %c2 = arith.constant 2 : index
    %c0_17 = arith.constant 0 : index
    %14 = vector.load %arg9[%c2, %c0_17] : memref<4x32xf32, #tpu.memory_space<vmem>>, vector<1x32xf32>
    %c3 = arith.constant 3 : index
    %c0_18 = arith.constant 0 : index
    %15 = vector.load %arg9[%c3, %c0_18] : memref<4x32xf32, #tpu.memory_space<vmem>>, vector<1x32xf32>
    %cst_19 = arith.constant dense<0.000000e+00> : vector<12x96xf32>
    %16 = tpu.matmul %5, %9, %cst_19 {dimension_numbers = #tpu.dot_dimension_numbers<[1], [0], [0], [1], [0, 0, 1, 1], [], []>} : vector<12x32xf32>, vector<32x96xf32>, vector<12x96xf32> -> vector<12x96xf32>
    %17 = vector.broadcast %10 : vector<1x96xf32> to vector<12x96xf32>
    %18 = arith.addf %16, %17 : vector<12x96xf32>
    %cst_20 = arith.constant 0.000000e+00 : f32
    %19 = vector.broadcast %cst_20 : f32 to vector<12x32xf32>
    %20 = vector.extract_strided_slice %18 {offsets = [0, 0], sizes = [12, 8], strides = [1, 1]} : vector<12x96xf32> to vector<12x8xf32>
    %21 = vector.extract_strided_slice %18 {offsets = [0, 32], sizes = [12, 8], strides = [1, 1]} : vector<12x96xf32> to vector<12x8xf32>
    %22 = vector.extract_strided_slice %18 {offsets = [0, 64], sizes = [12, 8], strides = [1, 1]} : vector<12x96xf32> to vector<12x8xf32>
    %cst_21 = arith.constant dense<0.000000e+00> : vector<12x12xf32>
    %23 = tpu.matmul %20, %21, %cst_21 {dimension_numbers = #tpu.dot_dimension_numbers<[1], [1], [0], [0], [0, 0, 1, 0], [], []>} : vector<12x8xf32>, vector<12x8xf32>, vector<12x12xf32> -> vector<12x12xf32>
    %cst_22 = arith.constant -1.000000e+30 : f32
    %24 = vector.broadcast %cst_22 : f32 to vector<12x12xf32>
    %25 = arith.select %8, %24, %23 : vector<12x12xi1>, vector<12x12xf32>
    %cst_23 = arith.constant dense<0xFF800000> : vector<12xf32>
    %26 = vector.multi_reduction <maximumf>, %25, %cst_23 [1] : vector<12x12xf32> to vector<12xf32>
    %27 = vector.shape_cast %26 : vector<12xf32> to vector<12x1xf32>
    %28 = vector.broadcast %27 : vector<12x1xf32> to vector<12x12xf32>
    %29 = arith.subf %25, %28 : vector<12x12xf32>
    %30 = math.exp %29 : vector<12x12xf32>
    %31 = arith.mulf %30, %6 : vector<12x12xf32>
    %cst_24 = arith.constant dense<0.000000e+00> : vector<12xf32>
    %32 = vector.multi_reduction <add>, %31, %cst_24 [1] : vector<12x12xf32> to vector<12xf32>
    %33 = vector.shape_cast %32 : vector<12xf32> to vector<12x1xf32>
    %cst_25 = arith.constant 1.000000e-16 : f32
    %34 = vector.broadcast %cst_25 : f32 to vector<12x1xf32>
    %35 = arith.addf %33, %34 : vector<12x1xf32>
    %36 = vector.broadcast %35 : vector<12x1xf32> to vector<12x12xf32>
    %37 = arith.divf %31, %36 : vector<12x12xf32>
    %cst_26 = arith.constant dense<0.000000e+00> : vector<12x8xf32>
    %38 = tpu.matmul %37, %22, %cst_26 {dimension_numbers = #tpu.dot_dimension_numbers<[1], [0], [0], [1], [0, 0, 1, 1], [], []>} : vector<12x12xf32>, vector<12x8xf32>, vector<12x8xf32> -> vector<12x8xf32>
    %cst_27 = arith.constant 5.000000e-01 : f32
    %39 = vector.broadcast %cst_27 : f32 to vector<12x8xf32>
    %40 = arith.mulf %39, %38 : vector<12x8xf32>
    %cst_28 = arith.constant 4.471500e-02 : f32
    %41 = vector.broadcast %cst_28 : f32 to vector<12x8xf32>
    %42 = arith.mulf %41, %38 : vector<12x8xf32>
    %43 = arith.mulf %42, %38 : vector<12x8xf32>
    %44 = arith.mulf %43, %38 : vector<12x8xf32>
    %45 = arith.addf %38, %44 : vector<12x8xf32>
    %cst_29 = arith.constant 0.797884583 : f32
    %46 = vector.broadcast %cst_29 : f32 to vector<12x8xf32>
    %47 = arith.mulf %46, %45 : vector<12x8xf32>
    %48 = math.tanh %47 : vector<12x8xf32>
    %cst_30 = arith.constant 1.000000e+00 : f32
    %49 = vector.broadcast %cst_30 : f32 to vector<12x8xf32>
    %50 = arith.addf %49, %48 : vector<12x8xf32>
    %51 = arith.mulf %40, %50 : vector<12x8xf32>
    %52 = vector.extract_strided_slice %11 {offsets = [0, 0], sizes = [8, 32], strides = [1, 1]} : vector<32x32xf32> to vector<8x32xf32>
    %cst_31 = arith.constant dense<0.000000e+00> : vector<12x32xf32>
    %53 = tpu.matmul %51, %52, %cst_31 {dimension_numbers = #tpu.dot_dimension_numbers<[1], [0], [0], [1], [0, 0, 1, 1], [], []>} : vector<12x8xf32>, vector<8x32xf32>, vector<12x32xf32> -> vector<12x32xf32>
    %54 = arith.addf %19, %53 : vector<12x32xf32>
    %55 = vector.extract_strided_slice %18 {offsets = [0, 8], sizes = [12, 8], strides = [1, 1]} : vector<12x96xf32> to vector<12x8xf32>
    %56 = vector.extract_strided_slice %18 {offsets = [0, 40], sizes = [12, 8], strides = [1, 1]} : vector<12x96xf32> to vector<12x8xf32>
    %57 = vector.extract_strided_slice %18 {offsets = [0, 72], sizes = [12, 8], strides = [1, 1]} : vector<12x96xf32> to vector<12x8xf32>
    %cst_32 = arith.constant dense<0.000000e+00> : vector<12x12xf32>
    %58 = tpu.matmul %55, %56, %cst_32 {dimension_numbers = #tpu.dot_dimension_numbers<[1], [1], [0], [0], [0, 0, 1, 0], [], []>} : vector<12x8xf32>, vector<12x8xf32>, vector<12x12xf32> -> vector<12x12xf32>
    %cst_33 = arith.constant -1.000000e+30 : f32
    %59 = vector.broadcast %cst_33 : f32 to vector<12x12xf32>
    %60 = arith.select %8, %59, %58 : vector<12x12xi1>, vector<12x12xf32>
    %cst_34 = arith.constant dense<0xFF800000> : vector<12xf32>
    %61 = vector.multi_reduction <maximumf>, %60, %cst_34 [1] : vector<12x12xf32> to vector<12xf32>
    %62 = vector.shape_cast %61 : vector<12xf32> to vector<12x1xf32>
    %63 = vector.broadcast %62 : vector<12x1xf32> to vector<12x12xf32>
    %64 = arith.subf %60, %63 : vector<12x12xf32>
    %65 = math.exp %64 : vector<12x12xf32>
    %66 = arith.mulf %65, %6 : vector<12x12xf32>
    %cst_35 = arith.constant dense<0.000000e+00> : vector<12xf32>
    %67 = vector.multi_reduction <add>, %66, %cst_35 [1] : vector<12x12xf32> to vector<12xf32>
    %68 = vector.shape_cast %67 : vector<12xf32> to vector<12x1xf32>
    %cst_36 = arith.constant 1.000000e-16 : f32
    %69 = vector.broadcast %cst_36 : f32 to vector<12x1xf32>
    %70 = arith.addf %68, %69 : vector<12x1xf32>
    %71 = vector.broadcast %70 : vector<12x1xf32> to vector<12x12xf32>
    %72 = arith.divf %66, %71 : vector<12x12xf32>
    %cst_37 = arith.constant dense<0.000000e+00> : vector<12x8xf32>
    %73 = tpu.matmul %72, %57, %cst_37 {dimension_numbers = #tpu.dot_dimension_numbers<[1], [0], [0], [1], [0, 0, 1, 1], [], []>} : vector<12x12xf32>, vector<12x8xf32>, vector<12x8xf32> -> vector<12x8xf32>
    %cst_38 = arith.constant 5.000000e-01 : f32
    %74 = vector.broadcast %cst_38 : f32 to vector<12x8xf32>
    %75 = arith.mulf %74, %73 : vector<12x8xf32>
    %cst_39 = arith.constant 4.471500e-02 : f32
    %76 = vector.broadcast %cst_39 : f32 to vector<12x8xf32>
    %77 = arith.mulf %76, %73 : vector<12x8xf32>
    %78 = arith.mulf %77, %73 : vector<12x8xf32>
    %79 = arith.mulf %78, %73 : vector<12x8xf32>
    %80 = arith.addf %73, %79 : vector<12x8xf32>
    %cst_40 = arith.constant 0.797884583 : f32
    %81 = vector.broadcast %cst_40 : f32 to vector<12x8xf32>
    %82 = arith.mulf %81, %80 : vector<12x8xf32>
    %83 = math.tanh %82 : vector<12x8xf32>
    %cst_41 = arith.constant 1.000000e+00 : f32
    %84 = vector.broadcast %cst_41 : f32 to vector<12x8xf32>
    %85 = arith.addf %84, %83 : vector<12x8xf32>
    %86 = arith.mulf %75, %85 : vector<12x8xf32>
    %87 = vector.extract_strided_slice %11 {offsets = [8, 0], sizes = [8, 32], strides = [1, 1]} : vector<32x32xf32> to vector<8x32xf32>
    %cst_42 = arith.constant dense<0.000000e+00> : vector<12x32xf32>
    %88 = tpu.matmul %86, %87, %cst_42 {dimension_numbers = #tpu.dot_dimension_numbers<[1], [0], [0], [1], [0, 0, 1, 1], [], []>} : vector<12x8xf32>, vector<8x32xf32>, vector<12x32xf32> -> vector<12x32xf32>
    %89 = arith.addf %54, %88 : vector<12x32xf32>
    %90 = vector.extract_strided_slice %18 {offsets = [0, 16], sizes = [12, 8], strides = [1, 1]} : vector<12x96xf32> to vector<12x8xf32>
    %91 = vector.extract_strided_slice %18 {offsets = [0, 48], sizes = [12, 8], strides = [1, 1]} : vector<12x96xf32> to vector<12x8xf32>
    %92 = vector.extract_strided_slice %18 {offsets = [0, 80], sizes = [12, 8], strides = [1, 1]} : vector<12x96xf32> to vector<12x8xf32>
    %cst_43 = arith.constant dense<0.000000e+00> : vector<12x12xf32>
    %93 = tpu.matmul %90, %91, %cst_43 {dimension_numbers = #tpu.dot_dimension_numbers<[1], [1], [0], [0], [0, 0, 1, 0], [], []>} : vector<12x8xf32>, vector<12x8xf32>, vector<12x12xf32> -> vector<12x12xf32>
    %cst_44 = arith.constant -1.000000e+30 : f32
    %94 = vector.broadcast %cst_44 : f32 to vector<12x12xf32>
    %95 = arith.select %8, %94, %93 : vector<12x12xi1>, vector<12x12xf32>
    %cst_45 = arith.constant dense<0xFF800000> : vector<12xf32>
    %96 = vector.multi_reduction <maximumf>, %95, %cst_45 [1] : vector<12x12xf32> to vector<12xf32>
    %97 = vector.shape_cast %96 : vector<12xf32> to vector<12x1xf32>
    %98 = vector.broadcast %97 : vector<12x1xf32> to vector<12x12xf32>
    %99 = arith.subf %95, %98 : vector<12x12xf32>
    %100 = math.exp %99 : vector<12x12xf32>
    %101 = arith.mulf %100, %6 : vector<12x12xf32>
    %cst_46 = arith.constant dense<0.000000e+00> : vector<12xf32>
    %102 = vector.multi_reduction <add>, %101, %cst_46 [1] : vector<12x12xf32> to vector<12xf32>
    %103 = vector.shape_cast %102 : vector<12xf32> to vector<12x1xf32>
    %cst_47 = arith.constant 1.000000e-16 : f32
    %104 = vector.broadcast %cst_47 : f32 to vector<12x1xf32>
    %105 = arith.addf %103, %104 : vector<12x1xf32>
    %106 = vector.broadcast %105 : vector<12x1xf32> to vector<12x12xf32>
    %107 = arith.divf %101, %106 : vector<12x12xf32>
    %cst_48 = arith.constant dense<0.000000e+00> : vector<12x8xf32>
    %108 = tpu.matmul %107, %92, %cst_48 {dimension_numbers = #tpu.dot_dimension_numbers<[1], [0], [0], [1], [0, 0, 1, 1], [], []>} : vector<12x12xf32>, vector<12x8xf32>, vector<12x8xf32> -> vector<12x8xf32>
    %cst_49 = arith.constant 5.000000e-01 : f32
    %109 = vector.broadcast %cst_49 : f32 to vector<12x8xf32>
    %110 = arith.mulf %109, %108 : vector<12x8xf32>
    %cst_50 = arith.constant 4.471500e-02 : f32
    %111 = vector.broadcast %cst_50 : f32 to vector<12x8xf32>
    %112 = arith.mulf %111, %108 : vector<12x8xf32>
    %113 = arith.mulf %112, %108 : vector<12x8xf32>
    %114 = arith.mulf %113, %108 : vector<12x8xf32>
    %115 = arith.addf %108, %114 : vector<12x8xf32>
    %cst_51 = arith.constant 0.797884583 : f32
    %116 = vector.broadcast %cst_51 : f32 to vector<12x8xf32>
    %117 = arith.mulf %116, %115 : vector<12x8xf32>
    %118 = math.tanh %117 : vector<12x8xf32>
    %cst_52 = arith.constant 1.000000e+00 : f32
    %119 = vector.broadcast %cst_52 : f32 to vector<12x8xf32>
    %120 = arith.addf %119, %118 : vector<12x8xf32>
    %121 = arith.mulf %110, %120 : vector<12x8xf32>
    %122 = vector.extract_strided_slice %11 {offsets = [16, 0], sizes = [8, 32], strides = [1, 1]} : vector<32x32xf32> to vector<8x32xf32>
    %cst_53 = arith.constant dense<0.000000e+00> : vector<12x32xf32>
    %123 = tpu.matmul %121, %122, %cst_53 {dimension_numbers = #tpu.dot_dimension_numbers<[1], [0], [0], [1], [0, 0, 1, 1], [], []>} : vector<12x8xf32>, vector<8x32xf32>, vector<12x32xf32> -> vector<12x32xf32>
    %124 = arith.addf %89, %123 : vector<12x32xf32>
    %125 = vector.extract_strided_slice %18 {offsets = [0, 24], sizes = [12, 8], strides = [1, 1]} : vector<12x96xf32> to vector<12x8xf32>
    %126 = vector.extract_strided_slice %18 {offsets = [0, 56], sizes = [12, 8], strides = [1, 1]} : vector<12x96xf32> to vector<12x8xf32>
    %127 = vector.extract_strided_slice %18 {offsets = [0, 88], sizes = [12, 8], strides = [1, 1]} : vector<12x96xf32> to vector<12x8xf32>
    %cst_54 = arith.constant dense<0.000000e+00> : vector<12x12xf32>
    %128 = tpu.matmul %125, %126, %cst_54 {dimension_numbers = #tpu.dot_dimension_numbers<[1], [1], [0], [0], [0, 0, 1, 0], [], []>} : vector<12x8xf32>, vector<12x8xf32>, vector<12x12xf32> -> vector<12x12xf32>
    %cst_55 = arith.constant -1.000000e+30 : f32
    %129 = vector.broadcast %cst_55 : f32 to vector<12x12xf32>
    %130 = arith.select %8, %129, %128 : vector<12x12xi1>, vector<12x12xf32>
    %cst_56 = arith.constant dense<0xFF800000> : vector<12xf32>
    %131 = vector.multi_reduction <maximumf>, %130, %cst_56 [1] : vector<12x12xf32> to vector<12xf32>
    %132 = vector.shape_cast %131 : vector<12xf32> to vector<12x1xf32>
    %133 = vector.broadcast %132 : vector<12x1xf32> to vector<12x12xf32>
    %134 = arith.subf %130, %133 : vector<12x12xf32>
    %135 = math.exp %134 : vector<12x12xf32>
    %136 = arith.mulf %135, %6 : vector<12x12xf32>
    %cst_57 = arith.constant dense<0.000000e+00> : vector<12xf32>
    %137 = vector.multi_reduction <add>, %136, %cst_57 [1] : vector<12x12xf32> to vector<12xf32>
    %138 = vector.shape_cast %137 : vector<12xf32> to vector<12x1xf32>
    %cst_58 = arith.constant 1.000000e-16 : f32
    %139 = vector.broadcast %cst_58 : f32 to vector<12x1xf32>
    %140 = arith.addf %138, %139 : vector<12x1xf32>
    %141 = vector.broadcast %140 : vector<12x1xf32> to vector<12x12xf32>
    %142 = arith.divf %136, %141 : vector<12x12xf32>
    %cst_59 = arith.constant dense<0.000000e+00> : vector<12x8xf32>
    %143 = tpu.matmul %142, %127, %cst_59 {dimension_numbers = #tpu.dot_dimension_numbers<[1], [0], [0], [1], [0, 0, 1, 1], [], []>} : vector<12x12xf32>, vector<12x8xf32>, vector<12x8xf32> -> vector<12x8xf32>
    %cst_60 = arith.constant 5.000000e-01 : f32
    %144 = vector.broadcast %cst_60 : f32 to vector<12x8xf32>
    %145 = arith.mulf %144, %143 : vector<12x8xf32>
    %cst_61 = arith.constant 4.471500e-02 : f32
    %146 = vector.broadcast %cst_61 : f32 to vector<12x8xf32>
    %147 = arith.mulf %146, %143 : vector<12x8xf32>
    %148 = arith.mulf %147, %143 : vector<12x8xf32>
    %149 = arith.mulf %148, %143 : vector<12x8xf32>
    %150 = arith.addf %143, %149 : vector<12x8xf32>
    %cst_62 = arith.constant 0.797884583 : f32
    %151 = vector.broadcast %cst_62 : f32 to vector<12x8xf32>
    %152 = arith.mulf %151, %150 : vector<12x8xf32>
    %153 = math.tanh %152 : vector<12x8xf32>
    %cst_63 = arith.constant 1.000000e+00 : f32
    %154 = vector.broadcast %cst_63 : f32 to vector<12x8xf32>
    %155 = arith.addf %154, %153 : vector<12x8xf32>
    %156 = arith.mulf %145, %155 : vector<12x8xf32>
    %157 = vector.extract_strided_slice %11 {offsets = [24, 0], sizes = [8, 32], strides = [1, 1]} : vector<32x32xf32> to vector<8x32xf32>
    %cst_64 = arith.constant dense<0.000000e+00> : vector<12x32xf32>
    %158 = tpu.matmul %156, %157, %cst_64 {dimension_numbers = #tpu.dot_dimension_numbers<[1], [0], [0], [1], [0, 0, 1, 1], [], []>} : vector<12x8xf32>, vector<8x32xf32>, vector<12x32xf32> -> vector<12x32xf32>
    %159 = arith.addf %124, %158 : vector<12x32xf32>
    %160 = vector.broadcast %12 : vector<1x32xf32> to vector<12x32xf32>
    %161 = arith.addf %159, %160 : vector<12x32xf32>
    %162 = vector.broadcast %15 : vector<1x32xf32> to vector<12x32xf32>
    %163 = arith.mulf %162, %5 : vector<12x32xf32>
    %164 = arith.addf %161, %163 : vector<12x32xf32>
    %cst_65 = arith.constant 0.000000e+00 : f32
    %165 = vector.broadcast %cst_65 : f32 to vector<12x32xf32>
    %166 = arith.cmpf ogt, %164, %165 : vector<12x32xf32>
    %167 = math.exp %164 : vector<12x32xf32>
    %cst_66 = arith.constant 1.000000e+00 : f32
    %168 = vector.broadcast %cst_66 : f32 to vector<12x32xf32>
    %169 = arith.subf %167, %168 : vector<12x32xf32>
    %170 = arith.select %166, %164, %169 : vector<12x32xi1>, vector<12x32xf32>
    %cst_67 = arith.constant dense<0.000000e+00> : vector<12xf32>
    %171 = vector.multi_reduction <add>, %170, %cst_67 [1] : vector<12x32xf32> to vector<12xf32>
    %172 = vector.shape_cast %171 : vector<12xf32> to vector<12x1xf32>
    %cst_68 = arith.constant 3.200000e+01 : f32
    %173 = vector.broadcast %cst_68 : f32 to vector<12x1xf32>
    %174 = arith.divf %172, %173 : vector<12x1xf32>
    %175 = vector.broadcast %174 : vector<12x1xf32> to vector<12x32xf32>
    %176 = arith.subf %170, %175 : vector<12x32xf32>
    %177 = arith.mulf %176, %176 : vector<12x32xf32>
    %cst_69 = arith.constant dense<0.000000e+00> : vector<12xf32>
    %178 = vector.multi_reduction <add>, %177, %cst_69 [1] : vector<12x32xf32> to vector<12xf32>
    %179 = vector.shape_cast %178 : vector<12xf32> to vector<12x1xf32>
    %cst_70 = arith.constant 3.200000e+01 : f32
    %180 = vector.broadcast %cst_70 : f32 to vector<12x1xf32>
    %181 = arith.divf %179, %180 : vector<12x1xf32>
    %cst_71 = arith.constant 9.99999974E-6 : f32
    %182 = vector.broadcast %cst_71 : f32 to vector<12x1xf32>
    %183 = arith.addf %181, %182 : vector<12x1xf32>
    %184 = math.rsqrt %183 : vector<12x1xf32>
    %185 = vector.broadcast %184 : vector<12x1xf32> to vector<12x32xf32>
    %186 = arith.mulf %176, %185 : vector<12x32xf32>
    %187 = vector.broadcast %13 : vector<1x32xf32> to vector<12x32xf32>
    %188 = arith.mulf %186, %187 : vector<12x32xf32>
    %189 = vector.broadcast %14 : vector<1x32xf32> to vector<12x32xf32>
    %190 = arith.addf %188, %189 : vector<12x32xf32>
    %cst_72 = arith.constant dense<0.000000e+00> : vector<12x96xf32>
    %191 = tpu.matmul %190, %9, %cst_72 {dimension_numbers = #tpu.dot_dimension_numbers<[1], [0], [0], [1], [0, 0, 1, 1], [], []>} : vector<12x32xf32>, vector<32x96xf32>, vector<12x96xf32> -> vector<12x96xf32>
    %192 = vector.broadcast %10 : vector<1x96xf32> to vector<12x96xf32>
    %193 = arith.addf %191, %192 : vector<12x96xf32>
    %cst_73 = arith.constant 0.000000e+00 : f32
    %194 = vector.broadcast %cst_73 : f32 to vector<12x32xf32>
    %195 = vector.extract_strided_slice %193 {offsets = [0, 0], sizes = [12, 8], strides = [1, 1]} : vector<12x96xf32> to vector<12x8xf32>
    %196 = vector.extract_strided_slice %193 {offsets = [0, 32], sizes = [12, 8], strides = [1, 1]} : vector<12x96xf32> to vector<12x8xf32>
    %197 = vector.extract_strided_slice %193 {offsets = [0, 64], sizes = [12, 8], strides = [1, 1]} : vector<12x96xf32> to vector<12x8xf32>
    %cst_74 = arith.constant dense<0.000000e+00> : vector<12x12xf32>
    %198 = tpu.matmul %195, %196, %cst_74 {dimension_numbers = #tpu.dot_dimension_numbers<[1], [1], [0], [0], [0, 0, 1, 0], [], []>} : vector<12x8xf32>, vector<12x8xf32>, vector<12x12xf32> -> vector<12x12xf32>
    %cst_75 = arith.constant -1.000000e+30 : f32
    %199 = vector.broadcast %cst_75 : f32 to vector<12x12xf32>
    %200 = arith.select %8, %199, %198 : vector<12x12xi1>, vector<12x12xf32>
    %cst_76 = arith.constant dense<0xFF800000> : vector<12xf32>
    %201 = vector.multi_reduction <maximumf>, %200, %cst_76 [1] : vector<12x12xf32> to vector<12xf32>
    %202 = vector.shape_cast %201 : vector<12xf32> to vector<12x1xf32>
    %203 = vector.broadcast %202 : vector<12x1xf32> to vector<12x12xf32>
    %204 = arith.subf %200, %203 : vector<12x12xf32>
    %205 = math.exp %204 : vector<12x12xf32>
    %206 = arith.mulf %205, %6 : vector<12x12xf32>
    %cst_77 = arith.constant dense<0.000000e+00> : vector<12xf32>
    %207 = vector.multi_reduction <add>, %206, %cst_77 [1] : vector<12x12xf32> to vector<12xf32>
    %208 = vector.shape_cast %207 : vector<12xf32> to vector<12x1xf32>
    %cst_78 = arith.constant 1.000000e-16 : f32
    %209 = vector.broadcast %cst_78 : f32 to vector<12x1xf32>
    %210 = arith.addf %208, %209 : vector<12x1xf32>
    %211 = vector.broadcast %210 : vector<12x1xf32> to vector<12x12xf32>
    %212 = arith.divf %206, %211 : vector<12x12xf32>
    %cst_79 = arith.constant dense<0.000000e+00> : vector<12x8xf32>
    %213 = tpu.matmul %212, %197, %cst_79 {dimension_numbers = #tpu.dot_dimension_numbers<[1], [0], [0], [1], [0, 0, 1, 1], [], []>} : vector<12x12xf32>, vector<12x8xf32>, vector<12x8xf32> -> vector<12x8xf32>
    %cst_80 = arith.constant 5.000000e-01 : f32
    %214 = vector.broadcast %cst_80 : f32 to vector<12x8xf32>
    %215 = arith.mulf %214, %213 : vector<12x8xf32>
    %cst_81 = arith.constant 4.471500e-02 : f32
    %216 = vector.broadcast %cst_81 : f32 to vector<12x8xf32>
    %217 = arith.mulf %216, %213 : vector<12x8xf32>
    %218 = arith.mulf %217, %213 : vector<12x8xf32>
    %219 = arith.mulf %218, %213 : vector<12x8xf32>
    %220 = arith.addf %213, %219 : vector<12x8xf32>
    %cst_82 = arith.constant 0.797884583 : f32
    %221 = vector.broadcast %cst_82 : f32 to vector<12x8xf32>
    %222 = arith.mulf %221, %220 : vector<12x8xf32>
    %223 = math.tanh %222 : vector<12x8xf32>
    %cst_83 = arith.constant 1.000000e+00 : f32
    %224 = vector.broadcast %cst_83 : f32 to vector<12x8xf32>
    %225 = arith.addf %224, %223 : vector<12x8xf32>
    %226 = arith.mulf %215, %225 : vector<12x8xf32>
    %227 = vector.extract_strided_slice %11 {offsets = [0, 0], sizes = [8, 32], strides = [1, 1]} : vector<32x32xf32> to vector<8x32xf32>
    %cst_84 = arith.constant dense<0.000000e+00> : vector<12x32xf32>
    %228 = tpu.matmul %226, %227, %cst_84 {dimension_numbers = #tpu.dot_dimension_numbers<[1], [0], [0], [1], [0, 0, 1, 1], [], []>} : vector<12x8xf32>, vector<8x32xf32>, vector<12x32xf32> -> vector<12x32xf32>
    %229 = arith.addf %194, %228 : vector<12x32xf32>
    %230 = vector.extract_strided_slice %193 {offsets = [0, 8], sizes = [12, 8], strides = [1, 1]} : vector<12x96xf32> to vector<12x8xf32>
    %231 = vector.extract_strided_slice %193 {offsets = [0, 40], sizes = [12, 8], strides = [1, 1]} : vector<12x96xf32> to vector<12x8xf32>
    %232 = vector.extract_strided_slice %193 {offsets = [0, 72], sizes = [12, 8], strides = [1, 1]} : vector<12x96xf32> to vector<12x8xf32>
    %cst_85 = arith.constant dense<0.000000e+00> : vector<12x12xf32>
    %233 = tpu.matmul %230, %231, %cst_85 {dimension_numbers = #tpu.dot_dimension_numbers<[1], [1], [0], [0], [0, 0, 1, 0], [], []>} : vector<12x8xf32>, vector<12x8xf32>, vector<12x12xf32> -> vector<12x12xf32>
    %cst_86 = arith.constant -1.000000e+30 : f32
    %234 = vector.broadcast %cst_86 : f32 to vector<12x12xf32>
    %235 = arith.select %8, %234, %233 : vector<12x12xi1>, vector<12x12xf32>
    %cst_87 = arith.constant dense<0xFF800000> : vector<12xf32>
    %236 = vector.multi_reduction <maximumf>, %235, %cst_87 [1] : vector<12x12xf32> to vector<12xf32>
    %237 = vector.shape_cast %236 : vector<12xf32> to vector<12x1xf32>
    %238 = vector.broadcast %237 : vector<12x1xf32> to vector<12x12xf32>
    %239 = arith.subf %235, %238 : vector<12x12xf32>
    %240 = math.exp %239 : vector<12x12xf32>
    %241 = arith.mulf %240, %6 : vector<12x12xf32>
    %cst_88 = arith.constant dense<0.000000e+00> : vector<12xf32>
    %242 = vector.multi_reduction <add>, %241, %cst_88 [1] : vector<12x12xf32> to vector<12xf32>
    %243 = vector.shape_cast %242 : vector<12xf32> to vector<12x1xf32>
    %cst_89 = arith.constant 1.000000e-16 : f32
    %244 = vector.broadcast %cst_89 : f32 to vector<12x1xf32>
    %245 = arith.addf %243, %244 : vector<12x1xf32>
    %246 = vector.broadcast %245 : vector<12x1xf32> to vector<12x12xf32>
    %247 = arith.divf %241, %246 : vector<12x12xf32>
    %cst_90 = arith.constant dense<0.000000e+00> : vector<12x8xf32>
    %248 = tpu.matmul %247, %232, %cst_90 {dimension_numbers = #tpu.dot_dimension_numbers<[1], [0], [0], [1], [0, 0, 1, 1], [], []>} : vector<12x12xf32>, vector<12x8xf32>, vector<12x8xf32> -> vector<12x8xf32>
    %cst_91 = arith.constant 5.000000e-01 : f32
    %249 = vector.broadcast %cst_91 : f32 to vector<12x8xf32>
    %250 = arith.mulf %249, %248 : vector<12x8xf32>
    %cst_92 = arith.constant 4.471500e-02 : f32
    %251 = vector.broadcast %cst_92 : f32 to vector<12x8xf32>
    %252 = arith.mulf %251, %248 : vector<12x8xf32>
    %253 = arith.mulf %252, %248 : vector<12x8xf32>
    %254 = arith.mulf %253, %248 : vector<12x8xf32>
    %255 = arith.addf %248, %254 : vector<12x8xf32>
    %cst_93 = arith.constant 0.797884583 : f32
    %256 = vector.broadcast %cst_93 : f32 to vector<12x8xf32>
    %257 = arith.mulf %256, %255 : vector<12x8xf32>
    %258 = math.tanh %257 : vector<12x8xf32>
    %cst_94 = arith.constant 1.000000e+00 : f32
    %259 = vector.broadcast %cst_94 : f32 to vector<12x8xf32>
    %260 = arith.addf %259, %258 : vector<12x8xf32>
    %261 = arith.mulf %250, %260 : vector<12x8xf32>
    %262 = vector.extract_strided_slice %11 {offsets = [8, 0], sizes = [8, 32], strides = [1, 1]} : vector<32x32xf32> to vector<8x32xf32>
    %cst_95 = arith.constant dense<0.000000e+00> : vector<12x32xf32>
    %263 = tpu.matmul %261, %262, %cst_95 {dimension_numbers = #tpu.dot_dimension_numbers<[1], [0], [0], [1], [0, 0, 1, 1], [], []>} : vector<12x8xf32>, vector<8x32xf32>, vector<12x32xf32> -> vector<12x32xf32>
    %264 = arith.addf %229, %263 : vector<12x32xf32>
    %265 = vector.extract_strided_slice %193 {offsets = [0, 16], sizes = [12, 8], strides = [1, 1]} : vector<12x96xf32> to vector<12x8xf32>
    %266 = vector.extract_strided_slice %193 {offsets = [0, 48], sizes = [12, 8], strides = [1, 1]} : vector<12x96xf32> to vector<12x8xf32>
    %267 = vector.extract_strided_slice %193 {offsets = [0, 80], sizes = [12, 8], strides = [1, 1]} : vector<12x96xf32> to vector<12x8xf32>
    %cst_96 = arith.constant dense<0.000000e+00> : vector<12x12xf32>
    %268 = tpu.matmul %265, %266, %cst_96 {dimension_numbers = #tpu.dot_dimension_numbers<[1], [1], [0], [0], [0, 0, 1, 0], [], []>} : vector<12x8xf32>, vector<12x8xf32>, vector<12x12xf32> -> vector<12x12xf32>
    %cst_97 = arith.constant -1.000000e+30 : f32
    %269 = vector.broadcast %cst_97 : f32 to vector<12x12xf32>
    %270 = arith.select %8, %269, %268 : vector<12x12xi1>, vector<12x12xf32>
    %cst_98 = arith.constant dense<0xFF800000> : vector<12xf32>
    %271 = vector.multi_reduction <maximumf>, %270, %cst_98 [1] : vector<12x12xf32> to vector<12xf32>
    %272 = vector.shape_cast %271 : vector<12xf32> to vector<12x1xf32>
    %273 = vector.broadcast %272 : vector<12x1xf32> to vector<12x12xf32>
    %274 = arith.subf %270, %273 : vector<12x12xf32>
    %275 = math.exp %274 : vector<12x12xf32>
    %276 = arith.mulf %275, %6 : vector<12x12xf32>
    %cst_99 = arith.constant dense<0.000000e+00> : vector<12xf32>
    %277 = vector.multi_reduction <add>, %276, %cst_99 [1] : vector<12x12xf32> to vector<12xf32>
    %278 = vector.shape_cast %277 : vector<12xf32> to vector<12x1xf32>
    %cst_100 = arith.constant 1.000000e-16 : f32
    %279 = vector.broadcast %cst_100 : f32 to vector<12x1xf32>
    %280 = arith.addf %278, %279 : vector<12x1xf32>
    %281 = vector.broadcast %280 : vector<12x1xf32> to vector<12x12xf32>
    %282 = arith.divf %276, %281 : vector<12x12xf32>
    %cst_101 = arith.constant dense<0.000000e+00> : vector<12x8xf32>
    %283 = tpu.matmul %282, %267, %cst_101 {dimension_numbers = #tpu.dot_dimension_numbers<[1], [0], [0], [1], [0, 0, 1, 1], [], []>} : vector<12x12xf32>, vector<12x8xf32>, vector<12x8xf32> -> vector<12x8xf32>
    %cst_102 = arith.constant 5.000000e-01 : f32
    %284 = vector.broadcast %cst_102 : f32 to vector<12x8xf32>
    %285 = arith.mulf %284, %283 : vector<12x8xf32>
    %cst_103 = arith.constant 4.471500e-02 : f32
    %286 = vector.broadcast %cst_103 : f32 to vector<12x8xf32>
    %287 = arith.mulf %286, %283 : vector<12x8xf32>
    %288 = arith.mulf %287, %283 : vector<12x8xf32>
    %289 = arith.mulf %288, %283 : vector<12x8xf32>
    %290 = arith.addf %283, %289 : vector<12x8xf32>
    %cst_104 = arith.constant 0.797884583 : f32
    %291 = vector.broadcast %cst_104 : f32 to vector<12x8xf32>
    %292 = arith.mulf %291, %290 : vector<12x8xf32>
    %293 = math.tanh %292 : vector<12x8xf32>
    %cst_105 = arith.constant 1.000000e+00 : f32
    %294 = vector.broadcast %cst_105 : f32 to vector<12x8xf32>
    %295 = arith.addf %294, %293 : vector<12x8xf32>
    %296 = arith.mulf %285, %295 : vector<12x8xf32>
    %297 = vector.extract_strided_slice %11 {offsets = [16, 0], sizes = [8, 32], strides = [1, 1]} : vector<32x32xf32> to vector<8x32xf32>
    %cst_106 = arith.constant dense<0.000000e+00> : vector<12x32xf32>
    %298 = tpu.matmul %296, %297, %cst_106 {dimension_numbers = #tpu.dot_dimension_numbers<[1], [0], [0], [1], [0, 0, 1, 1], [], []>} : vector<12x8xf32>, vector<8x32xf32>, vector<12x32xf32> -> vector<12x32xf32>
    %299 = arith.addf %264, %298 : vector<12x32xf32>
    %300 = vector.extract_strided_slice %193 {offsets = [0, 24], sizes = [12, 8], strides = [1, 1]} : vector<12x96xf32> to vector<12x8xf32>
    %301 = vector.extract_strided_slice %193 {offsets = [0, 56], sizes = [12, 8], strides = [1, 1]} : vector<12x96xf32> to vector<12x8xf32>
    %302 = vector.extract_strided_slice %193 {offsets = [0, 88], sizes = [12, 8], strides = [1, 1]} : vector<12x96xf32> to vector<12x8xf32>
    %cst_107 = arith.constant dense<0.000000e+00> : vector<12x12xf32>
    %303 = tpu.matmul %300, %301, %cst_107 {dimension_numbers = #tpu.dot_dimension_numbers<[1], [1], [0], [0], [0, 0, 1, 0], [], []>} : vector<12x8xf32>, vector<12x8xf32>, vector<12x12xf32> -> vector<12x12xf32>
    %cst_108 = arith.constant -1.000000e+30 : f32
    %304 = vector.broadcast %cst_108 : f32 to vector<12x12xf32>
    %305 = arith.select %8, %304, %303 : vector<12x12xi1>, vector<12x12xf32>
    %cst_109 = arith.constant dense<0xFF800000> : vector<12xf32>
    %306 = vector.multi_reduction <maximumf>, %305, %cst_109 [1] : vector<12x12xf32> to vector<12xf32>
    %307 = vector.shape_cast %306 : vector<12xf32> to vector<12x1xf32>
    %308 = vector.broadcast %307 : vector<12x1xf32> to vector<12x12xf32>
    %309 = arith.subf %305, %308 : vector<12x12xf32>
    %310 = math.exp %309 : vector<12x12xf32>
    %311 = arith.mulf %310, %6 : vector<12x12xf32>
    %cst_110 = arith.constant dense<0.000000e+00> : vector<12xf32>
    %312 = vector.multi_reduction <add>, %311, %cst_110 [1] : vector<12x12xf32> to vector<12xf32>
    %313 = vector.shape_cast %312 : vector<12xf32> to vector<12x1xf32>
    %cst_111 = arith.constant 1.000000e-16 : f32
    %314 = vector.broadcast %cst_111 : f32 to vector<12x1xf32>
    %315 = arith.addf %313, %314 : vector<12x1xf32>
    %316 = vector.broadcast %315 : vector<12x1xf32> to vector<12x12xf32>
    %317 = arith.divf %311, %316 : vector<12x12xf32>
    %cst_112 = arith.constant dense<0.000000e+00> : vector<12x8xf32>
    %318 = tpu.matmul %317, %302, %cst_112 {dimension_numbers = #tpu.dot_dimension_numbers<[1], [0], [0], [1], [0, 0, 1, 1], [], []>} : vector<12x12xf32>, vector<12x8xf32>, vector<12x8xf32> -> vector<12x8xf32>
    %cst_113 = arith.constant 5.000000e-01 : f32
    %319 = vector.broadcast %cst_113 : f32 to vector<12x8xf32>
    %320 = arith.mulf %319, %318 : vector<12x8xf32>
    %cst_114 = arith.constant 4.471500e-02 : f32
    %321 = vector.broadcast %cst_114 : f32 to vector<12x8xf32>
    %322 = arith.mulf %321, %318 : vector<12x8xf32>
    %323 = arith.mulf %322, %318 : vector<12x8xf32>
    %324 = arith.mulf %323, %318 : vector<12x8xf32>
    %325 = arith.addf %318, %324 : vector<12x8xf32>
    %cst_115 = arith.constant 0.797884583 : f32
    %326 = vector.broadcast %cst_115 : f32 to vector<12x8xf32>
    %327 = arith.mulf %326, %325 : vector<12x8xf32>
    %328 = math.tanh %327 : vector<12x8xf32>
    %cst_116 = arith.constant 1.000000e+00 : f32
    %329 = vector.broadcast %cst_116 : f32 to vector<12x8xf32>
    %330 = arith.addf %329, %328 : vector<12x8xf32>
    %331 = arith.mulf %320, %330 : vector<12x8xf32>
    %332 = vector.extract_strided_slice %11 {offsets = [24, 0], sizes = [8, 32], strides = [1, 1]} : vector<32x32xf32> to vector<8x32xf32>
    %cst_117 = arith.constant dense<0.000000e+00> : vector<12x32xf32>
    %333 = tpu.matmul %331, %332, %cst_117 {dimension_numbers = #tpu.dot_dimension_numbers<[1], [0], [0], [1], [0, 0, 1, 1], [], []>} : vector<12x8xf32>, vector<8x32xf32>, vector<12x32xf32> -> vector<12x32xf32>
    %334 = arith.addf %299, %333 : vector<12x32xf32>
    %335 = vector.broadcast %12 : vector<1x32xf32> to vector<12x32xf32>
    %336 = arith.addf %334, %335 : vector<12x32xf32>
    %337 = vector.broadcast %15 : vector<1x32xf32> to vector<12x32xf32>
    %338 = arith.mulf %337, %190 : vector<12x32xf32>
    %339 = arith.addf %336, %338 : vector<12x32xf32>
    %cst_118 = arith.constant 0.000000e+00 : f32
    %340 = vector.broadcast %cst_118 : f32 to vector<12x32xf32>
    %341 = arith.cmpf ogt, %339, %340 : vector<12x32xf32>
    %342 = math.exp %339 : vector<12x32xf32>
    %cst_119 = arith.constant 1.000000e+00 : f32
    %343 = vector.broadcast %cst_119 : f32 to vector<12x32xf32>
    %344 = arith.subf %342, %343 : vector<12x32xf32>
    %345 = arith.select %341, %339, %344 : vector<12x32xi1>, vector<12x32xf32>
    %cst_120 = arith.constant dense<0.000000e+00> : vector<12xf32>
    %346 = vector.multi_reduction <add>, %345, %cst_120 [1] : vector<12x32xf32> to vector<12xf32>
    %347 = vector.shape_cast %346 : vector<12xf32> to vector<12x1xf32>
    %cst_121 = arith.constant 3.200000e+01 : f32
    %348 = vector.broadcast %cst_121 : f32 to vector<12x1xf32>
    %349 = arith.divf %347, %348 : vector<12x1xf32>
    %350 = vector.broadcast %349 : vector<12x1xf32> to vector<12x32xf32>
    %351 = arith.subf %345, %350 : vector<12x32xf32>
    %352 = arith.mulf %351, %351 : vector<12x32xf32>
    %cst_122 = arith.constant dense<0.000000e+00> : vector<12xf32>
    %353 = vector.multi_reduction <add>, %352, %cst_122 [1] : vector<12x32xf32> to vector<12xf32>
    %354 = vector.shape_cast %353 : vector<12xf32> to vector<12x1xf32>
    %cst_123 = arith.constant 3.200000e+01 : f32
    %355 = vector.broadcast %cst_123 : f32 to vector<12x1xf32>
    %356 = arith.divf %354, %355 : vector<12x1xf32>
    %cst_124 = arith.constant 9.99999974E-6 : f32
    %357 = vector.broadcast %cst_124 : f32 to vector<12x1xf32>
    %358 = arith.addf %356, %357 : vector<12x1xf32>
    %359 = math.rsqrt %358 : vector<12x1xf32>
    %360 = vector.broadcast %359 : vector<12x1xf32> to vector<12x32xf32>
    %361 = arith.mulf %351, %360 : vector<12x32xf32>
    %362 = vector.broadcast %13 : vector<1x32xf32> to vector<12x32xf32>
    %363 = arith.mulf %361, %362 : vector<12x32xf32>
    %364 = vector.broadcast %14 : vector<1x32xf32> to vector<12x32xf32>
    %365 = arith.addf %363, %364 : vector<12x32xf32>
    %c0_125 = arith.constant 0 : index
    %c0_126 = arith.constant 0 : index
    %366 = vector.load %arg3[%c0_125, %c0_126] : memref<3x12xf32, #tpu.memory_space<vmem>>, vector<3x12xf32>
    %cst_127 = arith.constant dense<0.000000e+00> : vector<3xf32>
    %367 = vector.multi_reduction <add>, %366, %cst_127 [1] : vector<3x12xf32> to vector<3xf32>
    %368 = vector.shape_cast %367 : vector<3xf32> to vector<3x1xf32>
    %cst_128 = arith.constant dense<0.000000e+00> : vector<3x32xf32>
    %369 = tpu.matmul %366, %365, %cst_128 {dimension_numbers = #tpu.dot_dimension_numbers<[1], [0], [0], [1], [0, 0, 1, 1], [], []>} : vector<3x12xf32>, vector<12x32xf32>, vector<3x32xf32> -> vector<3x32xf32>
    %cst_129 = arith.constant 1.000000e+00 : f32
    %370 = vector.broadcast %cst_129 : f32 to vector<3x1xf32>
    %371 = arith.maximumf %368, %370 : vector<3x1xf32>
    %372 = vector.broadcast %371 : vector<3x1xf32> to vector<3x32xf32>
    %373 = arith.divf %369, %372 : vector<3x32xf32>
    %c0_130 = arith.constant 0 : index
    %c0_131 = arith.constant 0 : index
    %374 = vector.load %arg10[%c0_130, %c0_131] : memref<32x2xf32, #tpu.memory_space<vmem>>, vector<32x2xf32>
    %cst_132 = arith.constant dense<0.000000e+00> : vector<3x2xf32>
    %375 = tpu.matmul %373, %374, %cst_132 {dimension_numbers = #tpu.dot_dimension_numbers<[1], [0], [0], [1], [0, 0, 1, 1], [], []>} : vector<3x32xf32>, vector<32x2xf32>, vector<3x2xf32> -> vector<3x2xf32>
    %c0_133 = arith.constant 0 : index
    %c0_134 = arith.constant 0 : index
    %376 = vector.load %arg11[%c0_133, %c0_134] : memref<1x2xf32, #tpu.memory_space<vmem>>, vector<1x2xf32>
    %377 = vector.broadcast %376 : vector<1x2xf32> to vector<3x2xf32>
    %378 = arith.addf %375, %377 : vector<3x2xf32>
    %c0_135 = arith.constant 0 : index
    %c0_136 = arith.constant 0 : index
    %379 = vector.load %arg12[%c0_135, %c0_136] : memref<3x2xf32, #tpu.memory_space<vmem>>, vector<3x2xf32>
    tpu.vector_store %arg12[%c0_135, %c0_136], %378 {strides = array<i32>} : memref<3x2xf32, #tpu.memory_space<vmem>>, vector<3x2xf32>,
    return
  }
  func.func @transform_0(%arg0: i32) -> (i32, i32) {
    %c0_i32 = arith.constant 0 : i32
    %c0_i32_0 = arith.constant 0 : i32
    %c0_i32_1 = arith.constant 0 : i32
    return %c0_i32, %c0_i32_0 : i32, i32
  }
  func.func @transform_1(%arg0: i32) -> (i32, i32) {
    %c0_i32 = arith.constant 0 : i32
    %c0_i32_0 = arith.constant 0 : i32
    %c0_i32_1 = arith.constant 0 : i32
    return %c0_i32, %c0_i32_0 : i32, i32
  }
  func.func @transform_2(%arg0: i32) -> (i32, i32) {
    %c0_i32 = arith.constant 0 : i32
    %c0_i32_0 = arith.constant 0 : i32
    %c0_i32_1 = arith.constant 0 : i32
    return %c0_i32, %c0_i32_0 : i32, i32
  }
  func.func @transform_3(%arg0: i32) -> (i32, i32) {
    %c0_i32 = arith.constant 0 : i32
    %c0_i32_0 = arith.constant 0 : i32
    %c0_i32_1 = arith.constant 0 : i32
    return %c0_i32, %c0_i32_0 : i32, i32
  }
  func.func @transform_4(%arg0: i32) -> (i32, i32) {
    %c0_i32 = arith.constant 0 : i32
    %c0_i32_0 = arith.constant 0 : i32
    %c0_i32_1 = arith.constant 0 : i32
    return %c0_i32, %c0_i32_0 : i32, i32
  }
  func.func @transform_5(%arg0: i32) -> (i32, i32) {
    %c0_i32 = arith.constant 0 : i32
    %c0_i32_0 = arith.constant 0 : i32
    %c0_i32_1 = arith.constant 0 : i32
    return %c0_i32, %c0_i32_0 : i32, i32
  }
  func.func @transform_6(%arg0: i32) -> (i32, i32) {
    %c0_i32 = arith.constant 0 : i32
    %c0_i32_0 = arith.constant 0 : i32
    %c0_i32_1 = arith.constant 0 : i32
    return %c0_i32, %c0_i32_0 : i32, i32
  }
  func.func @transform_7(%arg0: i32) -> (i32, i32) {
    %c0_i32 = arith.constant 0 : i32
    %c0_i32_0 = arith.constant 0 : i32
    %c0_i32_1 = arith.constant 0 : i32
    return %c0_i32, %c0_i32_0 : i32, i32
  }
  func.func @transform_8(%arg0: i32) -> (i32, i32) {
    %c0_i32 = arith.constant 0 : i32
    %c0_i32_0 = arith.constant 0 : i32
    %c0_i32_1 = arith.constant 0 : i32
    return %c0_i32, %c0_i32_0 : i32, i32
  }
  func.func @transform_9(%arg0: i32) -> (i32, i32) {
    %c0_i32 = arith.constant 0 : i32
    %c0_i32_0 = arith.constant 0 : i32
    %c0_i32_1 = arith.constant 0 : i32
    return %c0_i32, %c0_i32_0 : i32, i32
  }
  func.func @transform_10(%arg0: i32) -> (i32, i32) {
    %c0_i32 = arith.constant 0 : i32
    %c0_i32_0 = arith.constant 0 : i32
    %c0_i32_1 = arith.constant 0 : i32
    return %c0_i32, %c0_i32_0 : i32, i32
  }
  func.func @transform_11(%arg0: i32) -> (i32, i32) {
    %c0_i32 = arith.constant 0 : i32
    %c0_i32_0 = arith.constant 0 : i32
    %c0_i32_1 = arith.constant 0 : i32
    return %c0_i32, %c0_i32_0 : i32, i32
  }
}

</mosaic_0001>

<llo_original>
// kernel: hetero_graph_hgt_forward.1
$region0: #{hetero_graph_hgt_forward.1}
  #allocation0 [shape = 'u32[]', space=smem, size = 0x4, offset = 0x4, fixed_abs, tag = 'smem constant byte address 0x4 - core index']
  #allocation1 [shape = 'u32[144,128]{1,0:T(1,128)}', space=vmem, size = 0x12000, scoped, tag = 'internal scratch']
  %s0 = inlined_call_operand.vmem [shape: f32[12,16], index: 0, kind: input, shape index: {}]
  %s1 = inlined_call_operand.vmem [shape: f32[12,12], index: 1, kind: input, shape index: {}]
  %s2 = inlined_call_operand.vmem [shape: f32[3,12], index: 2, kind: input, shape index: {}]
  %s3 = inlined_call_operand.vmem [shape: f32[16,32], index: 3, kind: input, shape index: {}]
  %s4 = inlined_call_operand.vmem [shape: f32[1,32], index: 4, kind: input, shape index: {}]
  %s5 = inlined_call_operand.vmem [shape: f32[32,96], index: 5, kind: input, shape index: {}]
  %s6 = inlined_call_operand.vmem [shape: f32[1,96], index: 6, kind: input, shape index: {}]
  %s7 = inlined_call_operand.vmem [shape: f32[32,32], index: 7, kind: input, shape index: {}]
  %s8 = inlined_call_operand.vmem [shape: f32[4,32], index: 8, kind: input, shape index: {}]
  %s9 = inlined_call_operand.vmem [shape: f32[32,2], index: 9, kind: input, shape index: {}]
  %s10 = inlined_call_operand.vmem [shape: f32[1,2], index: 10, kind: input, shape index: {}]
  %s11 = inlined_call_operand.vmem [shape: f32[3,2], index: 11, kind: output, shape index: {}]
  %s12 = sld [smem:[#allocation0]]
  $region54: #{hetero_graph_hgt_forward.1} parent=0
    _
  %s14 = ssub.s32 1, %s12
  %s15 = scalar_select 0, %s14, %s12
  // Predicated region
  $region2: #{hetero_graph_hgt_forward.1} parent=0 // pred_check
    _
  $region3: #{hetero_graph_hgt_forward.1} parent=0 // pred_check_branch
    %17 = sbr.rel (0) target = $region5
  $region4: #{hetero_graph_hgt_forward.1} parent=0 // pred_region
    _
  $region5: #{hetero_graph_hgt_forward.1} parent=0 // pred_fallthru
    _
  // Predicated region
  $region6: #{hetero_graph_hgt_forward.1} parent=0 // pred_check
    _
  $region7: #{hetero_graph_hgt_forward.1} parent=0 // pred_check_branch
    %19 = sbr.rel (0) target = $region9
  $region8: #{hetero_graph_hgt_forward.1} parent=0 // pred_region
    _
  $region9: #{hetero_graph_hgt_forward.1} parent=0 // pred_fallthru
    _
  // Predicated region
  $region10: #{hetero_graph_hgt_forward.1} parent=0 // pred_check
    _
  $region11: #{hetero_graph_hgt_forward.1} parent=0 // pred_check_branch
    %21 = sbr.rel (0) target = $region13
  $region12: #{hetero_graph_hgt_forward.1} parent=0 // pred_region
    _
  $region13: #{hetero_graph_hgt_forward.1} parent=0 // pred_fallthru
    _
  // Predicated region
  $region14: #{hetero_graph_hgt_forward.1} parent=0 // pred_check
    _
  $region15: #{hetero_graph_hgt_forward.1} parent=0 // pred_check_branch
    %23 = sbr.rel (0) target = $region17
  $region16: #{hetero_graph_hgt_forward.1} parent=0 // pred_region
    _
  $region17: #{hetero_graph_hgt_forward.1} parent=0 // pred_fallthru
    _
  // Predicated region
  $region18: #{hetero_graph_hgt_forward.1} parent=0 // pred_check
    _
  $region19: #{hetero_graph_hgt_forward.1} parent=0 // pred_check_branch
    %25 = sbr.rel (0) target = $region21
  $region20: #{hetero_graph_hgt_forward.1} parent=0 // pred_region
    _
  $region21: #{hetero_graph_hgt_forward.1} parent=0 // pred_fallthru
    _
  // Predicated region
  $region22: #{hetero_graph_hgt_forward.1} parent=0 // pred_check
    _
  $region23: #{hetero_graph_hgt_forward.1} parent=0 // pred_check_branch
    %27 = sbr.rel (0) target = $region25
  $region24: #{hetero_graph_hgt_forward.1} parent=0 // pred_region
    _
  $region25: #{hetero_graph_hgt_forward.1} parent=0 // pred_fallthru
    _
  // Predicated region
  $region26: #{hetero_graph_hgt_forward.1} parent=0 // pred_check
    _
  $region27: #{hetero_graph_hgt_forward.1} parent=0 // pred_check_branch
    %29 = sbr.rel (0) target = $region29
  $region28: #{hetero_graph_hgt_forward.1} parent=0 // pred_region
    _
  $region29: #{hetero_graph_hgt_forward.1} parent=0 // pred_fallthru
    _
  // Predicated region
  $region30: #{hetero_graph_hgt_forward.1} parent=0 // pred_check
    _
  $region31: #{hetero_graph_hgt_forward.1} parent=0 // pred_check_branch
    %31 = sbr.rel (0) target = $region33
  $region32: #{hetero_graph_hgt_forward.1} parent=0 // pred_region
    _
  $region33: #{hetero_graph_hgt_forward.1} parent=0 // pred_fallthru
    _
  // Predicated region
  $region34: #{hetero_graph_hgt_forward.1} parent=0 // pred_check
    _
  $region35: #{hetero_graph_hgt_forward.1} parent=0 // pred_check_branch
    %33 = sbr.rel (0) target = $region37
  $region36: #{hetero_graph_hgt_forward.1} parent=0 // pred_region
    _
  $region37: #{hetero_graph_hgt_forward.1} parent=0 // pred_fallthru
    _
  // Predicated region
  $region38: #{hetero_graph_hgt_forward.1} parent=0 // pred_check
    _
  $region39: #{hetero_graph_hgt_forward.1} parent=0 // pred_check_branch
    %35 = sbr.rel (0) target = $region41
  $region40: #{hetero_graph_hgt_forward.1} parent=0 // pred_region
    _
  $region41: #{hetero_graph_hgt_forward.1} parent=0 // pred_fallthru
    _
  // Predicated region
  $region42: #{hetero_graph_hgt_forward.1} parent=0 // pred_check
    _
  $region43: #{hetero_graph_hgt_forward.1} parent=0 // pred_check_branch
    %37 = sbr.rel (0) target = $region45
  $region44: #{hetero_graph_hgt_forward.1} parent=0 // pred_region
    _
  $region45: #{hetero_graph_hgt_forward.1} parent=0 // pred_fallthru
    _
  %v38 = vld [vmem:[%s0] sm:$0xff]
  %v39 = vld [vmem:[%s0 + $0x8] sm:$0xf]
  %v40 = vld [vmem:[%s3] sm:$0xff]
  %v41 = vld [vmem:[%s3 + $0x8] sm:$0xff]
  %v42 = vld [vmem:[%s4] sm:$0x1]
  %v44 = vlaneseq
  %v45 = vshrl.u32 %v44, 7
  %v46 = vsub.s32 0, %v45
  %v47 = vrot.slane %v42, %v46
  %vm49 = vcmask 130048
  %v51 = vsel %vm49, %v38, 0
  %v54 = vsel %vm49, %v39, 0
  %56 = vmatprep.subr.mxu0 0.0
  %57 = vmatpush1.msra.mxu0 %v40
  %58 = vmatprep.subr.mxu0 0.0
  %59 = vmatpush1.msra.mxu0 %v41
  %60 = vmatprep.subr.mxu0 0.0
  %61 = vmatpush1.msra.mxu0 0.0
  %62 = vmatprep.subr.mxu0 0.0
  %63 = vmatpush1.msra.mxu0 0.0
  %64 = vmatprep.subr.mxu0 0.0
  %65 = vmatpush1.msra.mxu0 0.0
  %66 = vmatprep.subr.mxu0 0.0
  %67 = vmatpush1.msra.mxu0 0.0
  %68 = vmatprep.subr.mxu0 0.0
  %69 = vmatpush1.msra.mxu0 0.0
  %70 = vmatprep.subr.mxu0 0.0
  %71 = vmatpush1.msra.mxu0 0.0
  %72 = vmatprep.subr.mxu0 0.0
  %73 = vmatpush1.msra.mxu0 0.0
  %74 = vmatprep.subr.mxu0 0.0
  %75 = vmatpush1.msra.mxu0 0.0
  %76 = vmatprep.subr.mxu0 0.0
  %77 = vmatpush1.msra.mxu0 0.0
  %78 = vmatprep.subr.mxu0 0.0
  %79 = vmatpush1.msra.mxu0 0.0
  %80 = vmatprep.subr.mxu0 0.0
  %81 = vmatpush1.msra.mxu0 0.0
  %82 = vmatprep.subr.mxu0 0.0
  %83 = vmatpush1.msra.mxu0 0.0
  %84 = vmatprep.subr.mxu0 0.0
  %85 = vmatpush1.msra.mxu0 0.0
  %86 = vmatprep.subr.mxu0 0.0
  %87 = vmatpush1.msra.mxu0 0.0
  %88 = vmatprep.subr.mxu0 0.0
  %89 = vmatpush1.msra.mxu0 0.0
  %90 = vmatprep.subr.mxu0 0.0
  %91 = vmatpush1.msra.mxu0 0.0
  %92 = vmatprep.subr.mxu0 0.0
  %93 = vmatpush1.msra.mxu0 0.0
  %94 = vmatprep.subr.mxu0 0.0
  %95 = vmatpush1.msra.mxu0 0.0
  %96 = vmatprep.subr.mxu0 0.0
  %97 = vmatpush1.msra.mxu0 0.0
  %98 = vmatprep.subr.mxu0 0.0
  %99 = vmatpush1.msra.mxu0 0.0
  %100 = vmatprep.subr.mxu0 0.0
  %101 = vmatpush1.msra.mxu0 0.0
  %102 = vmatprep.subr.mxu0 0.0
  %103 = vmatpush1.msra.mxu0 0.0
  %104 = vmatprep.subr.mxu0 0.0
  %105 = vmatpush1.msra.mxu0 0.0
  %106 = vmatprep.subr.mxu0 0.0
  %107 = vmatpush1.msra.mxu0 0.0
  %108 = vmatprep.subr.mxu0 0.0
  %109 = vmatpush1.msra.mxu0 0.0
  %110 = vmatprep.subr.mxu0 0.0
  %111 = vmatpush1.msra.mxu0 0.0
  %112 = vmatprep.subr.mxu0 0.0
  %113 = vmatpush1.msra.mxu0 0.0
  %114 = vmatprep.subr.mxu0 0.0
  %115 = vmatpush1.msra.mxu0 0.0
  %116 = vmatprep.subr.mxu0 0.0
  %117 = vmatpush1.msra.mxu0 0.0
  %118 = vmatprep.subr.mxu0 0.0
  %119 = vmatpush1.msra.mxu0 0.0
  %120 = vmatprep.mubr.f32.mxu0 0.0
  %121 = vmatmul.mubr.f32.gmra.mrb[0].mxu0 %v51
  %v122 = vpop.f32.mrb[0].mxu0
  %v123 = vadd.f32 %v47, %v122
  %v124 = vpop.f32.mrb[0].mxu0
  %125 = vmatprep.mubr.f32.mxu0 0.0
  %126 = vmatmul.mubr.f32.gmra.mrb[0].mxu0 %v54
  %v127 = vpop.f32.mrb[0].mxu0
  %v128 = vadd.f32 %v47, %v127
  %v129 = vpop.f32.mrb[0].mxu0
  %130 = vdwg.mxu0
  %v131 = vld [vmem:[%s1] sm:$0xff]
  %v132 = vld [vmem:[%s1 + $0x8] sm:$0xf]
  %vm133 = vcmp.le.f32.partialorder %v131, 0.0
  %vm134 = vcmp.le.f32.partialorder %v132, 0.0
  %v135 = vld [vmem:[%s5] sm:$0xff]
  %v136 = vld [vmem:[%s5 + $0x8] sm:$0xff]
  %v137 = vld [vmem:[%s5 + $0x10] sm:$0xff]
  %v138 = vld [vmem:[%s5 + $0x18] sm:$0xff]
  %v139 = vld [vmem:[%s6] sm:$0x1]
  %v140 = vld [vmem:[%s7] sm:$0xff]
  %v141 = vld [vmem:[%s7 + $0x8] sm:$0xff]
  %v142 = vld [vmem:[%s7 + $0x10] sm:$0xff]
  %v143 = vld [vmem:[%s7 + $0x18] sm:$0xff]
  %v144 = vld [vmem:[%s8] sm:$0x1]
  %v145 = vld [vmem:[%s8 + $0x1] sm:$0x1]
  %v146 = vld [vmem:[%s8 + $0x2] sm:$0x1]
  %v147 = vld [vmem:[%s8 + $0x3] sm:$0x1]
  %v149 = vlaneseq
  %v150 = vshrl.u32 %v149, 7
  %v151 = vsub.s32 0, %v150
  %v152 = vrot.slane %v139, %v151
  %vm154 = vcmask 261120
  %v156 = vsel %vm154, %v123, 0
  %v159 = vsel %vm154, %v128, 0
  %161 = vmatprep.subr.mxu0 0.0
  %162 = vmatpush1.msra.mxu0 %v135
  %163 = vmatprep.subr.mxu0 0.0
  %164 = vmatpush1.msra.mxu0 %v136
  %165 = vmatprep.subr.mxu0 0.0
  %166 = vmatpush1.msra.mxu0 %v137
  %167 = vmatprep.subr.mxu0 0.0
  %168 = vmatpush1.msra.mxu0 %v138
  %169 = vmatprep.subr.mxu0 0.0
  %170 = vmatpush1.msra.mxu0 0.0
  %171 = vmatprep.subr.mxu0 0.0
  %172 = vmatpush1.msra.mxu0 0.0
  %173 = vmatprep.subr.mxu0 0.0
  %174 = vmatpush1.msra.mxu0 0.0
  %175 = vmatprep.subr.mxu0 0.0
  %176 = vmatpush1.msra.mxu0 0.0
  %177 = vmatprep.subr.mxu0 0.0
  %178 = vmatpush1.msra.mxu0 0.0
  %179 = vmatprep.subr.mxu0 0.0
  %180 = vmatpush1.msra.mxu0 0.0
  %181 = vmatprep.subr.mxu0 0.0
  %182 = vmatpush1.msra.mxu0 0.0
  %183 = vmatprep.subr.mxu0 0.0
  %184 = vmatpush1.msra.mxu0 0.0
  %185 = vmatprep.subr.mxu0 0.0
  %186 = vmatpush1.msra.mxu0 0.0
  %187 = vmatprep.subr.mxu0 0.0
  %188 = vmatpush1.msra.mxu0 0.0
  %189 = vmatprep.subr.mxu0 0.0
  %190 = vmatpush1.msra.mxu0 0.0
  %191 = vmatprep.subr.mxu0 0.0
  %192 = vmatpush1.msra.mxu0 0.0
  %193 = vmatprep.subr.mxu0 0.0
  %194 = vmatpush1.msra.mxu0 0.0
  %195 = vmatprep.subr.mxu0 0.0
  %196 = vmatpush1.msra.mxu0 0.0
  %197 = vmatprep.subr.mxu0 0.0
  %198 = vmatpush1.msra.mxu0 0.0
  %199 = vmatprep.subr.mxu0 0.0
  %200 = vmatpush1.msra.mxu0 0.0
  %201 = vmatprep.subr.mxu0 0.0
  %202 = vmatpush1.msra.mxu0 0.0
  %203 = vmatprep.subr.mxu0 0.0
  %204 = vmatpush1.msra.mxu0 0.0
  %205 = vmatprep.subr.mxu0 0.0
  %206 = vmatpush1.msra.mxu0 0.0
  %207 = vmatprep.subr.mxu0 0.0
  %208 = vmatpush1.msra.mxu0 0.0
  %209 = vmatprep.subr.mxu0 0.0
  %210 = vmatpush1.msra.mxu0 0.0
  %211 = vmatprep.subr.mxu0 0.0
  %212 = vmatpush1.msra.mxu0 0.0
  %213 = vmatprep.subr.mxu0 0.0
  %214 = vmatpush1.msra.mxu0 0.0
  %215 = vmatprep.subr.mxu0 0.0
  %216 = vmatpush1.msra.mxu0 0.0
  %217 = vmatprep.subr.mxu0 0.0
  %218 = vmatpush1.msra.mxu0 0.0
  %219 = vmatprep.subr.mxu0 0.0
  %220 = vmatpush1.msra.mxu0 0.0
  %221 = vmatprep.subr.mxu0 0.0
  %222 = vmatpush1.msra.mxu0 0.0
  %223 = vmatprep.subr.mxu0 0.0
  %224 = vmatpush1.msra.mxu0 0.0
  %225 = vmatprep.mubr.f32.mxu0 0.0
  %226 = vmatmul.mubr.f32.gmra.mrb[0].mxu0 %v156
  %v227 = vpop.f32.mrb[0].mxu0
  %v228 = vadd.f32 %v152, %v227
  %v229 = vpop.f32.mrb[0].mxu0
  %230 = vmatprep.mubr.f32.mxu0 0.0
  %231 = vmatmul.mubr.f32.gmra.mrb[0].mxu0 %v159
  %v232 = vpop.f32.mrb[0].mxu0
  %v233 = vadd.f32 %v152, %v232
  %v234 = vpop.f32.mrb[0].mxu0
  %235 = vdwg.mxu0
  %238 = vrot.lane.b32.xlu0 %v228, 96
  %v239 = vpop.permute.xlu0 %238
  %240 = vrot.lane.b32.xlu0 %v233, 96
  %v241 = vpop.permute.xlu0 %240
  %vm242 = vcmask 64512
  %v243 = vsel %vm242, %v228, 0
  %v245 = vsel %vm242, %v233, 0
  %v247 = vsel %vm242, %v239, 0
  %v249 = vsel %vm242, %v241, 0
  %251 = vmatprep.subr.mxu0 0.0
  %252 = vmatpush1.xpose.msra.mxu0 %v247
  %253 = vmatprep.subr.mxu0 0.0
  %254 = vmatpush1.xpose.msra.mxu0 %v249
  %255 = vmatprep.subr.mxu0 0.0
  %256 = vmatpush1.xpose.msra.mxu0 0.0
  %257 = vmatprep.subr.mxu0 0.0
  %258 = vmatpush1.xpose.msra.mxu0 0.0
  %259 = vmatprep.subr.mxu0 0.0
  %260 = vmatpush1.xpose.msra.mxu0 0.0
  %261 = vmatprep.subr.mxu0 0.0
  %262 = vmatpush1.xpose.msra.mxu0 0.0
  %263 = vmatprep.subr.mxu0 0.0
  %264 = vmatpush1.xpose.msra.mxu0 0.0
  %265 = vmatprep.subr.mxu0 0.0
  %266 = vmatpush1.xpose.msra.mxu0 0.0
  %267 = vmatprep.subr.mxu0 0.0
  %268 = vmatpush1.xpose.msra.mxu0 0.0
  %269 = vmatprep.subr.mxu0 0.0
  %270 = vmatpush1.xpose.msra.mxu0 0.0
  %271 = vmatprep.subr.mxu0 0.0
  %272 = vmatpush1.xpose.msra.mxu0 0.0
  %273 = vmatprep.subr.mxu0 0.0
  %274 = vmatpush1.xpose.msra.mxu0 0.0
  %275 = vmatprep.subr.mxu0 0.0
  %276 = vmatpush1.xpose.msra.mxu0 0.0
  %277 = vmatprep.subr.mxu0 0.0
  %278 = vmatpush1.xpose.msra.mxu0 0.0
  %279 = vmatprep.subr.mxu0 0.0
  %280 = vmatpush1.xpose.msra.mxu0 0.0
  %281 = vmatprep.subr.mxu0 0.0
  %282 = vmatpush1.xpose.msra.mxu0 0.0
  %283 = vmatprep.subr.mxu0 0.0
  %284 = vmatpush1.xpose.msra.mxu0 0.0
  %285 = vmatprep.subr.mxu0 0.0
  %286 = vmatpush1.xpose.msra.mxu0 0.0
  %287 = vmatprep.subr.mxu0 0.0
  %288 = vmatpush1.xpose.msra.mxu0 0.0
  %289 = vmatprep.subr.mxu0 0.0
  %290 = vmatpush1.xpose.msra.mxu0 0.0
  %291 = vmatprep.subr.mxu0 0.0
  %292 = vmatpush1.xpose.msra.mxu0 0.0
  %293 = vmatprep.subr.mxu0 0.0
  %294 = vmatpush1.xpose.msra.mxu0 0.0
  %295 = vmatprep.subr.mxu0 0.0
  %296 = vmatpush1.xpose.msra.mxu0 0.0
  %297 = vmatprep.subr.mxu0 0.0
  %298 = vmatpush1.xpose.msra.mxu0 0.0
  %299 = vmatprep.subr.mxu0 0.0
  %300 = vmatpush1.xpose.msra.mxu0 0.0
  %301 = vmatprep.subr.mxu0 0.0
  %302 = vmatpush1.xpose.msra.mxu0 0.0
  %303 = vmatprep.subr.mxu0 0.0
  %304 = vmatpush1.xpose.msra.mxu0 0.0
  %305 = vmatprep.subr.mxu0 0.0
  %306 = vmatpush1.xpose.msra.mxu0 0.0
  %307 = vmatprep.subr.mxu0 0.0
  %308 = vmatpush1.xpose.msra.mxu0 0.0
  %309 = vmatprep.subr.mxu0 0.0
  %310 = vmatpush1.xpose.msra.mxu0 0.0
  %311 = vmatprep.subr.mxu0 0.0
  %312 = vmatpush1.xpose.msra.mxu0 0.0
  %313 = vmatprep.subr.mxu0 0.0
  %314 = vmatpush1.xpose.msra.mxu0 0.0
  %315 = vmatprep.mubr.f32.mxu0 0.0
  %316 = vmatmul.mubr.f32.gmra.mrb[0].mxu0 %v243
  %v317 = vpop.f32.mrb[0].mxu0
  %v318 = vadd.f32 0.0, %v317
  %v319 = vpop.f32.mrb[0].mxu0
  %320 = vmatprep.mubr.f32.mxu0 0.0
  %321 = vmatmul.mubr.f32.gmra.mrb[0].mxu0 %v245
  %v322 = vpop.f32.mrb[0].mxu0
  %v323 = vadd.f32 0.0, %v322
  %v324 = vpop.f32.mrb[0].mxu0
  %325 = vdwg.mxu0
  %v326 = vsel %vm133, -1e+30, %v318
  %v327 = vsel %vm134, -1e+30, %v323
  %vm328 = vcmask 97280
  %v329 = vsel %vm328, %v326, -inf
  %330 = vmax.xlane.f32.xlu0 %v329
  %v331 = vpop.xlane.xlu0 %330
  %vm332 = vcmask 93184
  %v333 = vsel %vm332, %v327, -inf
  %334 = vmax.xlane.f32.xlu0 %v333
  %v335 = vpop.xlane.xlu0 %334
  %v336 = vsub.f32 %v326, %v331
  %v337 = vsub.f32 %v327, %v335
  %v338 = vmul.f32 %v336, 1.442695
  %v339 = vpow.pop %v338
  %v340 = vmul.f32 %v337, 1.442695
  %v341 = vpow.pop %v340
  %v342 = vmul.f32 %v339, %v131
  %v343 = vmul.f32 %v341, %v132
  %v344 = vsel %vm328, %v342, 0.0
  %345 = vadd.xlane.f32.xlu0 %v344
  %v346 = vpop.xlane.xlu0 %345
  %v347 = vsel %vm332, %v343, 0.0
  %348 = vadd.xlane.f32.xlu0 %v347
  %v349 = vpop.xlane.xlu0 %348
  %v350 = vadd.f32 %v346, 1e-16
  %v351 = vadd.f32 %v349, 1e-16
  %v352 = vrcp.pop %v350
  %v353 = vmul.f32 %v342, %v352
  %v354 = vrcp.pop %v351
  %v355 = vmul.f32 %v343, %v354
  %356 = vrot.lane.b32.xlu0 %v228, 64
  %v357 = vpop.permute.xlu0 %356
  %358 = vrot.lane.b32.xlu0 %v233, 64
  %v359 = vpop.permute.xlu0 %358
  %v362 = vsel %vm328, %v353, 0
  %v365 = vsel %vm328, %v355, 0
  %vm367 = vcmask 1043456
  %v368 = vsel %vm367, %v359, 0
  %370 = vmatprep.subr.mxu0 0.0
  %371 = vmatpush1.msra.mxu0 %v357
  %372 = vmatprep.subr.mxu0 0.0
  %373 = vmatpush1.msra.mxu0 %v368
  %374 = vmatprep.subr.mxu0 0.0
  %375 = vmatpush1.msra.mxu0 0.0
  %376 = vmatprep.subr.mxu0 0.0
  %377 = vmatpush1.msra.mxu0 0.0
  %378 = vmatprep.subr.mxu0 0.0
  %379 = vmatpush1.msra.mxu0 0.0
  %380 = vmatprep.subr.mxu0 0.0
  %381 = vmatpush1.msra.mxu0 0.0
  %382 = vmatprep.subr.mxu0 0.0
  %383 = vmatpush1.msra.mxu0 0.0
  %384 = vmatprep.subr.mxu0 0.0
  %385 = vmatpush1.msra.mxu0 0.0
  %386 = vmatprep.subr.mxu0 0.0
  %387 = vmatpush1.msra.mxu0 0.0
  %388 = vmatprep.subr.mxu0 0.0
  %389 = vmatpush1.msra.mxu0 0.0
  %390 = vmatprep.subr.mxu0 0.0
  %391 = vmatpush1.msra.mxu0 0.0
  %392 = vmatprep.subr.mxu0 0.0
  %393 = vmatpush1.msra.mxu0 0.0
  %394 = vmatprep.subr.mxu0 0.0
  %395 = vmatpush1.msra.mxu0 0.0
  %396 = vmatprep.subr.mxu0 0.0
  %397 = vmatpush1.msra.mxu0 0.0
  %398 = vmatprep.subr.mxu0 0.0
  %399 = vmatpush1.msra.mxu0 0.0
  %400 = vmatprep.subr.mxu0 0.0
  %401 = vmatpush1.msra.mxu0 0.0
  %402 = vmatprep.subr.mxu0 0.0
  %403 = vmatpush1.msra.mxu0 0.0
  %404 = vmatprep.subr.mxu0 0.0
  %405 = vmatpush1.msra.mxu0 0.0
  %406 = vmatprep.subr.mxu0 0.0
  %407 = vmatpush1.msra.mxu0 0.0
  %408 = vmatprep.subr.mxu0 0.0
  %409 = vmatpush1.msra.mxu0 0.0
  %410 = vmatprep.subr.mxu0 0.0
  %411 = vmatpush1.msra.mxu0 0.0
  %412 = vmatprep.subr.mxu0 0.0
  %413 = vmatpush1.msra.mxu0 0.0
  %414 = vmatprep.subr.mxu0 0.0
  %415 = vmatpush1.msra.mxu0 0.0
  %416 = vmatprep.subr.mxu0 0.0
  %417 = vmatpush1.msra.mxu0 0.0
  %418 = vmatprep.subr.mxu0 0.0
  %419 = vmatpush1.msra.mxu0 0.0
  %420 = vmatprep.subr.mxu0 0.0
  %421 = vmatpush1.msra.mxu0 0.0
  %422 = vmatprep.subr.mxu0 0.0
  %423 = vmatpush1.msra.mxu0 0.0
  %424 = vmatprep.subr.mxu0 0.0
  %425 = vmatpush1.msra.mxu0 0.0
  %426 = vmatprep.subr.mxu0 0.0
  %427 = vmatpush1.msra.mxu0 0.0
  %428 = vmatprep.subr.mxu0 0.0
  %429 = vmatpush1.msra.mxu0 0.0
  %430 = vmatprep.subr.mxu0 0.0
  %431 = vmatpush1.msra.mxu0 0.0
  %432 = vmatprep.subr.mxu0 0.0
  %433 = vmatpush1.msra.mxu0 0.0
  %434 = vmatprep.mubr.f32.mxu0 0.0
  %435 = vmatmul.mubr.f32.gmra.mrb[0].mxu0 %v362
  %v436 = vpop.f32.mrb[0].mxu0
  %v437 = vadd.f32 0.0, %v436
  %v438 = vpop.f32.mrb[0].mxu0
  %439 = vmatprep.mubr.f32.mxu0 0.0
  %440 = vmatmul.mubr.f32.gmra.mrb[0].mxu0 %v365
  %v441 = vpop.f32.mrb[0].mxu0
  %v442 = vadd.f32 0.0, %v441
  %v443 = vpop.f32.mrb[0].mxu0
  %444 = vdwg.mxu0
  %v445 = vmul.f32 %v437, 0.5
  %v446 = vmul.f32 %v442, 0.5
  %v447 = vmul.f32 %v437, 0.044715
  %v448 = vmul.f32 %v442, 0.044715
  %v449 = vmul.f32 %v447, %v437
  %v450 = vmul.f32 %v448, %v442
  %v451 = vmul.f32 %v449, %v437
  %v452 = vmul.f32 %v450, %v442
  %v453 = vadd.f32 %v437, %v451
  %v454 = vadd.f32 %v442, %v452
  %v455 = vmul.f32 %v453, 0.7978846
  %v456 = vmul.f32 %v454, 0.7978846
  %v457 = vtanh.pop %v455
  %v458 = vtanh.pop %v456
  %v459 = vadd.f32 %v457, 1.0
  %v460 = vadd.f32 %v458, 1.0
  %v461 = vmul.f32 %v445, %v459
  %v462 = vmul.f32 %v446, %v460
  %463 = vrot.lane.b32.xlu0 %v228, 120
  %v464 = vpop.permute.xlu0 %463
  %465 = vrot.lane.b32.xlu0 %v233, 120
  %v466 = vpop.permute.xlu0 %465
  %467 = vrot.lane.b32.xlu0 %v228, 88
  %v468 = vpop.permute.xlu0 %467
  %469 = vrot.lane.b32.xlu0 %v233, 88
  %v470 = vpop.permute.xlu0 %469
  %v471 = vsel %vm242, %v464, 0
  %v473 = vsel %vm242, %v466, 0
  %v475 = vsel %vm242, %v468, 0
  %v477 = vsel %vm242, %v470, 0
  %479 = vmatprep.subr.mxu0 0.0
  %480 = vmatpush1.xpose.msra.mxu0 %v475
  %481 = vmatprep.subr.mxu0 0.0
  %482 = vmatpush1.xpose.msra.mxu0 %v477
  %483 = vmatprep.subr.mxu0 0.0
  %484 = vmatpush1.xpose.msra.mxu0 0.0
  %485 = vmatprep.subr.mxu0 0.0
  %486 = vmatpush1.xpose.msra.mxu0 0.0
  %487 = vmatprep.subr.mxu0 0.0
  %488 = vmatpush1.xpose.msra.mxu0 0.0
  %489 = vmatprep.subr.mxu0 0.0
  %490 = vmatpush1.xpose.msra.mxu0 0.0
  %491 = vmatprep.subr.mxu0 0.0
  %492 = vmatpush1.xpose.msra.mxu0 0.0
  %493 = vmatprep.subr.mxu0 0.0
  %494 = vmatpush1.xpose.msra.mxu0 0.0
  %495 = vmatprep.subr.mxu0 0.0
  %496 = vmatpush1.xpose.msra.mxu0 0.0
  %497 = vmatprep.subr.mxu0 0.0
  %498 = vmatpush1.xpose.msra.mxu0 0.0
  %499 = vmatprep.subr.mxu0 0.0
  %500 = vmatpush1.xpose.msra.mxu0 0.0
  %501 = vmatprep.subr.mxu0 0.0
  %502 = vmatpush1.xpose.msra.mxu0 0.0
  %503 = vmatprep.subr.mxu0 0.0
  %504 = vmatpush1.xpose.msra.mxu0 0.0
  %505 = vmatprep.subr.mxu0 0.0
  %506 = vmatpush1.xpose.msra.mxu0 0.0
  %507 = vmatprep.subr.mxu0 0.0
  %508 = vmatpush1.xpose.msra.mxu0 0.0
  %509 = vmatprep.subr.mxu0 0.0
  %510 = vmatpush1.xpose.msra.mxu0 0.0
  %511 = vmatprep.subr.mxu0 0.0
  %512 = vmatpush1.xpose.msra.mxu0 0.0
  %513 = vmatprep.subr.mxu0 0.0
  %514 = vmatpush1.xpose.msra.mxu0 0.0
  %515 = vmatprep.subr.mxu0 0.0
  %516 = vmatpush1.xpose.msra.mxu0 0.0
  %517 = vmatprep.subr.mxu0 0.0
  %518 = vmatpush1.xpose.msra.mxu0 0.0
  %519 = vmatprep.subr.mxu0 0.0
  %520 = vmatpush1.xpose.msra.mxu0 0.0
  %521 = vmatprep.subr.mxu0 0.0
  %522 = vmatpush1.xpose.msra.mxu0 0.0
  %523 = vmatprep.subr.mxu0 0.0
  %524 = vmatpush1.xpose.msra.mxu0 0.0
  %525 = vmatprep.subr.mxu0 0.0
  %526 = vmatpush1.xpose.msra.mxu0 0.0
  %527 = vmatprep.subr.mxu0 0.0
  %528 = vmatpush1.xpose.msra.mxu0 0.0
  %529 = vmatprep.subr.mxu0 0.0
  %530 = vmatpush1.xpose.msra.mxu0 0.0
  %531 = vmatprep.subr.mxu0 0.0
  %532 = vmatpush1.xpose.msra.mxu0 0.0
  %533 = vmatprep.subr.mxu0 0.0
  %534 = vmatpush1.xpose.msra.mxu0 0.0
  %535 = vmatprep.subr.mxu0 0.0
  %536 = vmatpush1.xpose.msra.mxu0 0.0
  %537 = vmatprep.subr.mxu0 0.0
  %538 = vmatpush1.xpose.msra.mxu0 0.0
  %539 = vmatprep.subr.mxu0 0.0
  %540 = vmatpush1.xpose.msra.mxu0 0.0
  %541 = vmatprep.subr.mxu0 0.0
  %542 = vmatpush1.xpose.msra.mxu0 0.0
  %543 = vmatprep.mubr.f32.mxu0 0.0
  %544 = vmatmul.mubr.f32.gmra.mrb[0].mxu0 %v471
  %v545 = vpop.f32.mrb[0].mxu0
  %v546 = vadd.f32 0.0, %v545
  %v547 = vpop.f32.mrb[0].mxu0
  %548 = vmatprep.mubr.f32.mxu0 0.0
  %549 = vmatmul.mubr.f32.gmra.mrb[0].mxu0 %v473
  %v550 = vpop.f32.mrb[0].mxu0
  %v551 = vadd.f32 0.0, %v550
  %v552 = vpop.f32.mrb[0].mxu0
  %553 = vdwg.mxu0
  %v554 = vsel %vm133, -1e+30, %v546
  %v555 = vsel %vm134, -1e+30, %v551
  %v556 = vsel %vm328, %v554, -inf
  %557 = vmax.xlane.f32.xlu0 %v556
  %v558 = vpop.xlane.xlu0 %557
  %v559 = vsel %vm332, %v555, -inf
  %560 = vmax.xlane.f32.xlu0 %v559
  %v561 = vpop.xlane.xlu0 %560
  %v562 = vsub.f32 %v554, %v558
  %v563 = vsub.f32 %v555, %v561
  %v564 = vmul.f32 %v562, 1.442695
  %v565 = vpow.pop %v564
  %v566 = vmul.f32 %v563, 1.442695
  %v567 = vpow.pop %v566
  %v568 = vmul.f32 %v565, %v131
  %v569 = vmul.f32 %v567, %v132
  %v570 = vsel %vm328, %v568, 0.0
  %571 = vadd.xlane.f32.xlu0 %v570
  %v572 = vpop.xlane.xlu0 %571
  %v573 = vsel %vm332, %v569, 0.0
  %574 = vadd.xlane.f32.xlu0 %v573
  %v575 = vpop.xlane.xlu0 %574
  %v576 = vadd.f32 %v572, 1e-16
  %v577 = vadd.f32 %v575, 1e-16
  %v578 = vrcp.pop %v576
  %v579 = vmul.f32 %v568, %v578
  %v580 = vrcp.pop %v577
  %v581 = vmul.f32 %v569, %v580
  %582 = vrot.lane.b32.xlu0 %v228, 56
  %v583 = vpop.permute.xlu0 %582
  %584 = vrot.lane.b32.xlu0 %v233, 56
  %v585 = vpop.permute.xlu0 %584
  %v588 = vsel %vm328, %v579, 0
  %v591 = vsel %vm328, %v581, 0
  %v593 = vsel %vm367, %v585, 0
  %595 = vmatprep.subr.mxu0 0.0
  %596 = vmatpush1.msra.mxu0 %v583
  %597 = vmatprep.subr.mxu0 0.0
  %598 = vmatpush1.msra.mxu0 %v593
  %599 = vmatprep.subr.mxu0 0.0
  %600 = vmatpush1.msra.mxu0 0.0
  %601 = vmatprep.subr.mxu0 0.0
  %602 = vmatpush1.msra.mxu0 0.0
  %603 = vmatprep.subr.mxu0 0.0
  %604 = vmatpush1.msra.mxu0 0.0
  %605 = vmatprep.subr.mxu0 0.0
  %606 = vmatpush1.msra.mxu0 0.0
  %607 = vmatprep.subr.mxu0 0.0
  %608 = vmatpush1.msra.mxu0 0.0
  %609 = vmatprep.subr.mxu0 0.0
  %610 = vmatpush1.msra.mxu0 0.0
  %611 = vmatprep.subr.mxu0 0.0
  %612 = vmatpush1.msra.mxu0 0.0
  %613 = vmatprep.subr.mxu0 0.0
  %614 = vmatpush1.msra.mxu0 0.0
  %615 = vmatprep.subr.mxu0 0.0
  %616 = vmatpush1.msra.mxu0 0.0
  %617 = vmatprep.subr.mxu0 0.0
  %618 = vmatpush1.msra.mxu0 0.0
  %619 = vmatprep.subr.mxu0 0.0
  %620 = vmatpush1.msra.mxu0 0.0
  %621 = vmatprep.subr.mxu0 0.0
  %622 = vmatpush1.msra.mxu0 0.0
  %623 = vmatprep.subr.mxu0 0.0
  %624 = vmatpush1.msra.mxu0 0.0
  %625 = vmatprep.subr.mxu0 0.0
  %626 = vmatpush1.msra.mxu0 0.0
  %627 = vmatprep.subr.mxu0 0.0
  %628 = vmatpush1.msra.mxu0 0.0
  %629 = vmatprep.subr.mxu0 0.0
  %630 = vmatpush1.msra.mxu0 0.0
  %631 = vmatprep.subr.mxu0 0.0
  %632 = vmatpush1.msra.mxu0 0.0
  %633 = vmatprep.subr.mxu0 0.0
  %634 = vmatpush1.msra.mxu0 0.0
  %635 = vmatprep.subr.mxu0 0.0
  %636 = vmatpush1.msra.mxu0 0.0
  %637 = vmatprep.subr.mxu0 0.0
  %638 = vmatpush1.msra.mxu0 0.0
  %639 = vmatprep.subr.mxu0 0.0
  %640 = vmatpush1.msra.mxu0 0.0
  %641 = vmatprep.subr.mxu0 0.0
  %642 = vmatpush1.msra.mxu0 0.0
  %643 = vmatprep.subr.mxu0 0.0
  %644 = vmatpush1.msra.mxu0 0.0
  %645 = vmatprep.subr.mxu0 0.0
  %646 = vmatpush1.msra.mxu0 0.0
  %647 = vmatprep.subr.mxu0 0.0
  %648 = vmatpush1.msra.mxu0 0.0
  %649 = vmatprep.subr.mxu0 0.0
  %650 = vmatpush1.msra.mxu0 0.0
  %651 = vmatprep.subr.mxu0 0.0
  %652 = vmatpush1.msra.mxu0 0.0
  %653 = vmatprep.subr.mxu0 0.0
  %654 = vmatpush1.msra.mxu0 0.0
  %655 = vmatprep.subr.mxu0 0.0
  %656 = vmatpush1.msra.mxu0 0.0
  %657 = vmatprep.subr.mxu0 0.0
  %658 = vmatpush1.msra.mxu0 0.0
  %659 = vmatprep.mubr.f32.mxu0 0.0
  %660 = vmatmul.mubr.f32.gmra.mrb[0].mxu0 %v588
  %v661 = vpop.f32.mrb[0].mxu0
  %v662 = vadd.f32 0.0, %v661
  %v663 = vpop.f32.mrb[0].mxu0
  %664 = vmatprep.mubr.f32.mxu0 0.0
  %665 = vmatmul.mubr.f32.gmra.mrb[0].mxu0 %v591
  %v666 = vpop.f32.mrb[0].mxu0
  %v667 = vadd.f32 0.0, %v666
  %v668 = vpop.f32.mrb[0].mxu0
  %669 = vdwg.mxu0
  %v670 = vmul.f32 %v662, 0.5
  %v671 = vmul.f32 %v667, 0.5
  %v672 = vmul.f32 %v662, 0.044715
  %v673 = vmul.f32 %v667, 0.044715
  %v674 = vmul.f32 %v672, %v662
  %v675 = vmul.f32 %v673, %v667
  %v676 = vmul.f32 %v674, %v662
  %v677 = vmul.f32 %v675, %v667
  %v678 = vadd.f32 %v662, %v676
  %v679 = vadd.f32 %v667, %v677
  %v680 = vmul.f32 %v678, 0.7978846
  %v681 = vmul.f32 %v679, 0.7978846
  %v682 = vtanh.pop %v680
  %v683 = vtanh.pop %v681
  %v684 = vadd.f32 %v682, 1.0
  %v685 = vadd.f32 %v683, 1.0
  %v686 = vmul.f32 %v670, %v684
  %v687 = vmul.f32 %v671, %v685
  %v689 = vsel %vm242, %v686, 0
  %v692 = vsel %vm242, %v687, 0
  %694 = vmatprep.subr.mxu0 0.0
  %695 = vmatpush1.msra.mxu0 %v141
  %696 = vmatprep.subr.mxu0 0.0
  %697 = vmatpush1.msra.mxu0 0.0
  %698 = vmatprep.subr.mxu0 0.0
  %699 = vmatpush1.msra.mxu0 0.0
  %700 = vmatprep.subr.mxu0 0.0
  %701 = vmatpush1.msra.mxu0 0.0
  %702 = vmatprep.subr.mxu0 0.0
  %703 = vmatpush1.msra.mxu0 0.0
  %704 = vmatprep.subr.mxu0 0.0
  %705 = vmatpush1.msra.mxu0 0.0
  %706 = vmatprep.subr.mxu0 0.0
  %707 = vmatpush1.msra.mxu0 0.0
  %708 = vmatprep.subr.mxu0 0.0
  %709 = vmatpush1.msra.mxu0 0.0
  %710 = vmatprep.subr.mxu0 0.0
  %711 = vmatpush1.msra.mxu0 0.0
  %712 = vmatprep.subr.mxu0 0.0
  %713 = vmatpush1.msra.mxu0 0.0
  %714 = vmatprep.subr.mxu0 0.0
  %715 = vmatpush1.msra.mxu0 0.0
  %716 = vmatprep.subr.mxu0 0.0
  %717 = vmatpush1.msra.mxu0 0.0
  %718 = vmatprep.subr.mxu0 0.0
  %719 = vmatpush1.msra.mxu0 0.0
  %720 = vmatprep.subr.mxu0 0.0
  %721 = vmatpush1.msra.mxu0 0.0
  %722 = vmatprep.subr.mxu0 0.0
  %723 = vmatpush1.msra.mxu0 0.0
  %724 = vmatprep.subr.mxu0 0.0
  %725 = vmatpush1.msra.mxu0 0.0
  %726 = vmatprep.subr.mxu0 0.0
  %727 = vmatpush1.msra.mxu0 0.0
  %728 = vmatprep.subr.mxu0 0.0
  %729 = vmatpush1.msra.mxu0 0.0
  %730 = vmatprep.subr.mxu0 0.0
  %731 = vmatpush1.msra.mxu0 0.0
  %732 = vmatprep.subr.mxu0 0.0
  %733 = vmatpush1.msra.mxu0 0.0
  %734 = vmatprep.subr.mxu0 0.0
  %735 = vmatpush1.msra.mxu0 0.0
  %736 = vmatprep.subr.mxu0 0.0
  %737 = vmatpush1.msra.mxu0 0.0
  %738 = vmatprep.subr.mxu0 0.0
  %739 = vmatpush1.msra.mxu0 0.0
  %740 = vmatprep.subr.mxu0 0.0
  %741 = vmatpush1.msra.mxu0 0.0
  %742 = vmatprep.subr.mxu0 0.0
  %743 = vmatpush1.msra.mxu0 0.0
  %744 = vmatprep.subr.mxu0 0.0
  %745 = vmatpush1.msra.mxu0 0.0
  %746 = vmatprep.subr.mxu0 0.0
  %747 = vmatpush1.msra.mxu0 0.0
  %748 = vmatprep.subr.mxu0 0.0
  %749 = vmatpush1.msra.mxu0 0.0
  %750 = vmatprep.subr.mxu0 0.0
  %751 = vmatpush1.msra.mxu0 0.0
  %752 = vmatprep.subr.mxu0 0.0
  %753 = vmatpush1.msra.mxu0 0.0
  %754 = vmatprep.subr.mxu0 0.0
  %755 = vmatpush1.msra.mxu0 0.0
  %756 = vmatprep.subr.mxu0 0.0
  %757 = vmatpush1.msra.mxu0 0.0
  %758 = vmatprep.mubr.f32.mxu0 0.0
  %759 = vmatmul.mubr.f32.gmra.mrb[0].mxu0 %v689
  %v760 = vpop.f32.mrb[0].mxu0
  %v761 = vadd.f32 0.0, %v760
  %v762 = vpop.f32.mrb[0].mxu0
  %763 = vmatprep.mubr.f32.mxu0 0.0
  %764 = vmatmul.mubr.f32.gmra.mrb[0].mxu0 %v692
  %v765 = vpop.f32.mrb[0].mxu0
  %v766 = vadd.f32 0.0, %v765
  %v767 = vpop.f32.mrb[0].mxu0
  %768 = vdwg.mxu0
  %v770 = vsel %vm242, %v461, 0
  %v773 = vsel %vm242, %v462, 0
  %775 = vmatprep.subr.mxu0 0.0
  %776 = vmatpush1.msra.mxu0 %v140
  %777 = vmatprep.subr.mxu0 0.0
  %778 = vmatpush1.msra.mxu0 0.0
  %779 = vmatprep.subr.mxu0 0.0
  %780 = vmatpush1.msra.mxu0 0.0
  %781 = vmatprep.subr.mxu0 0.0
  %782 = vmatpush1.msra.mxu0 0.0
  %783 = vmatprep.subr.mxu0 0.0
  %784 = vmatpush1.msra.mxu0 0.0
  %785 = vmatprep.subr.mxu0 0.0
  %786 = vmatpush1.msra.mxu0 0.0
  %787 = vmatprep.subr.mxu0 0.0
  %788 = vmatpush1.msra.mxu0 0.0
  %789 = vmatprep.subr.mxu0 0.0
  %790 = vmatpush1.msra.mxu0 0.0
  %791 = vmatprep.subr.mxu0 0.0
  %792 = vmatpush1.msra.mxu0 0.0
  %793 = vmatprep.subr.mxu0 0.0
  %794 = vmatpush1.msra.mxu0 0.0
  %795 = vmatprep.subr.mxu0 0.0
  %796 = vmatpush1.msra.mxu0 0.0
  %797 = vmatprep.subr.mxu0 0.0
  %798 = vmatpush1.msra.mxu0 0.0
  %799 = vmatprep.subr.mxu0 0.0
  %800 = vmatpush1.msra.mxu0 0.0
  %801 = vmatprep.subr.mxu0 0.0
  %802 = vmatpush1.msra.mxu0 0.0
  %803 = vmatprep.subr.mxu0 0.0
  %804 = vmatpush1.msra.mxu0 0.0
  %805 = vmatprep.subr.mxu0 0.0
  %806 = vmatpush1.msra.mxu0 0.0
  %807 = vmatprep.subr.mxu0 0.0
  %808 = vmatpush1.msra.mxu0 0.0
  %809 = vmatprep.subr.mxu0 0.0
  %810 = vmatpush1.msra.mxu0 0.0
  %811 = vmatprep.subr.mxu0 0.0
  %812 = vmatpush1.msra.mxu0 0.0
  %813 = vmatprep.subr.mxu0 0.0
  %814 = vmatpush1.msra.mxu0 0.0
  %815 = vmatprep.subr.mxu0 0.0
  %816 = vmatpush1.msra.mxu0 0.0
  %817 = vmatprep.subr.mxu0 0.0
  %818 = vmatpush1.msra.mxu0 0.0
  %819 = vmatprep.subr.mxu0 0.0
  %820 = vmatpush1.msra.mxu0 0.0
  %821 = vmatprep.subr.mxu0 0.0
  %822 = vmatpush1.msra.mxu0 0.0
  %823 = vmatprep.subr.mxu0 0.0
  %824 = vmatpush1.msra.mxu0 0.0
  %825 = vmatprep.subr.mxu0 0.0
  %826 = vmatpush1.msra.mxu0 0.0
  %827 = vmatprep.subr.mxu0 0.0
  %828 = vmatpush1.msra.mxu0 0.0
  %829 = vmatprep.subr.mxu0 0.0
  %830 = vmatpush1.msra.mxu0 0.0
  %831 = vmatprep.subr.mxu0 0.0
  %832 = vmatpush1.msra.mxu0 0.0
  %833 = vmatprep.subr.mxu0 0.0
  %834 = vmatpush1.msra.mxu0 0.0
  %835 = vmatprep.subr.mxu0 0.0
  %836 = vmatpush1.msra.mxu0 0.0
  %837 = vmatprep.subr.mxu0 0.0
  %838 = vmatpush1.msra.mxu0 0.0
  %839 = vmatprep.mubr.f32.mxu0 0.0
  %840 = vmatmul.mubr.f32.gmra.mrb[0].mxu0 %v770
  %v841 = vpop.f32.mrb[0].mxu0
  %v842 = vadd.f32 %v761, %v841
  %v843 = vpop.f32.mrb[0].mxu0
  %844 = vmatprep.mubr.f32.mxu0 0.0
  %845 = vmatmul.mubr.f32.gmra.mrb[0].mxu0 %v773
  %v846 = vpop.f32.mrb[0].mxu0
  %v847 = vadd.f32 %v766, %v846
  %v848 = vpop.f32.mrb[0].mxu0
  %849 = vdwg.mxu0
  %850 = vrot.lane.b32.xlu0 %v228, 112
  %v851 = vpop.permute.xlu0 %850
  %852 = vrot.lane.b32.xlu0 %v233, 112
  %v853 = vpop.permute.xlu0 %852
  %854 = vrot.lane.b32.xlu0 %v228, 80
  %v855 = vpop.permute.xlu0 %854
  %856 = vrot.lane.b32.xlu0 %v233, 80
  %v857 = vpop.permute.xlu0 %856
  %v858 = vsel %vm242, %v851, 0
  %v860 = vsel %vm242, %v853, 0
  %v862 = vsel %vm242, %v855, 0
  %v864 = vsel %vm242, %v857, 0
  %866 = vmatprep.subr.mxu0 0.0
  %867 = vmatpush1.xpose.msra.mxu0 %v862
  %868 = vmatprep.subr.mxu0 0.0
  %869 = vmatpush1.xpose.msra.mxu0 %v864
  %870 = vmatprep.subr.mxu0 0.0
  %871 = vmatpush1.xpose.msra.mxu0 0.0
  %872 = vmatprep.subr.mxu0 0.0
  %873 = vmatpush1.xpose.msra.mxu0 0.0
  %874 = vmatprep.subr.mxu0 0.0
  %875 = vmatpush1.xpose.msra.mxu0 0.0
  %876 = vmatprep.subr.mxu0 0.0
  %877 = vmatpush1.xpose.msra.mxu0 0.0
  %878 = vmatprep.subr.mxu0 0.0
  %879 = vmatpush1.xpose.msra.mxu0 0.0
  %880 = vmatprep.subr.mxu0 0.0
  %881 = vmatpush1.xpose.msra.mxu0 0.0
  %882 = vmatprep.subr.mxu0 0.0
  %883 = vmatpush1.xpose.msra.mxu0 0.0
  %884 = vmatprep.subr.mxu0 0.0
  %885 = vmatpush1.xpose.msra.mxu0 0.0
  %886 = vmatprep.subr.mxu0 0.0
  %887 = vmatpush1.xpose.msra.mxu0 0.0
  %888 = vmatprep.subr.mxu0 0.0
  %889 = vmatpush1.xpose.msra.mxu0 0.0
  %890 = vmatprep.subr.mxu0 0.0
  %891 = vmatpush1.xpose.msra.mxu0 0.0
  %892 = vmatprep.subr.mxu0 0.0
  %893 = vmatpush1.xpose.msra.mxu0 0.0
  %894 = vmatprep.subr.mxu0 0.0
  %895 = vmatpush1.xpose.msra.mxu0 0.0
  %896 = vmatprep.subr.mxu0 0.0
  %897 = vmatpush1.xpose.msra.mxu0 0.0
  %898 = vmatprep.subr.mxu0 0.0
  %899 = vmatpush1.xpose.msra.mxu0 0.0
  %900 = vmatprep.subr.mxu0 0.0
  %901 = vmatpush1.xpose.msra.mxu0 0.0
  %902 = vmatprep.subr.mxu0 0.0
  %903 = vmatpush1.xpose.msra.mxu0 0.0
  %904 = vmatprep.subr.mxu0 0.0
  %905 = vmatpush1.xpose.msra.mxu0 0.0
  %906 = vmatprep.subr.mxu0 0.0
  %907 = vmatpush1.xpose.msra.mxu0 0.0
  %908 = vmatprep.subr.mxu0 0.0
  %909 = vmatpush1.xpose.msra.mxu0 0.0
  %910 = vmatprep.subr.mxu0 0.0
  %911 = vmatpush1.xpose.msra.mxu0 0.0
  %912 = vmatprep.subr.mxu0 0.0
  %913 = vmatpush1.xpose.msra.mxu0 0.0
  %914 = vmatprep.subr.mxu0 0.0
  %915 = vmatpush1.xpose.msra.mxu0 0.0
  %916 = vmatprep.subr.mxu0 0.0
  %917 = vmatpush1.xpose.msra.mxu0 0.0
  %918 = vmatprep.subr.mxu0 0.0
  %919 = vmatpush1.xpose.msra.mxu0 0.0
  %920 = vmatprep.subr.mxu0 0.0
  %921 = vmatpush1.xpose.msra.mxu0 0.0
  %922 = vmatprep.subr.mxu0 0.0
  %923 = vmatpush1.xpose.msra.mxu0 0.0
  %924 = vmatprep.subr.mxu0 0.0
  %925 = vmatpush1.xpose.msra.mxu0 0.0
  %926 = vmatprep.subr.mxu0 0.0
  %927 = vmatpush1.xpose.msra.mxu0 0.0
  %928 = vmatprep.subr.mxu0 0.0
  %929 = vmatpush1.xpose.msra.mxu0 0.0
  %930 = vmatprep.mubr.f32.mxu0 0.0
  %931 = vmatmul.mubr.f32.gmra.mrb[0].mxu0 %v858
  %v932 = vpop.f32.mrb[0].mxu0
  %v933 = vadd.f32 0.0, %v932
  %v934 = vpop.f32.mrb[0].mxu0
  %935 = vmatprep.mubr.f32.mxu0 0.0
  %936 = vmatmul.mubr.f32.gmra.mrb[0].mxu0 %v860
  %v937 = vpop.f32.mrb[0].mxu0
  %v938 = vadd.f32 0.0, %v937
  %v939 = vpop.f32.mrb[0].mxu0
  %940 = vdwg.mxu0
  %v941 = vsel %vm133, -1e+30, %v933
  %v942 = vsel %vm134, -1e+30, %v938
  %v943 = vsel %vm328, %v941, -inf
  %944 = vmax.xlane.f32.xlu0 %v943
  %v945 = vpop.xlane.xlu0 %944
  %v946 = vsel %vm332, %v942, -inf
  %947 = vmax.xlane.f32.xlu0 %v946
  %v948 = vpop.xlane.xlu0 %947
  %v949 = vsub.f32 %v941, %v945
  %v950 = vsub.f32 %v942, %v948
  %v951 = vmul.f32 %v949, 1.442695
  %v952 = vpow.pop %v951
  %v953 = vmul.f32 %v950, 1.442695
  %v954 = vpow.pop %v953
  %v955 = vmul.f32 %v952, %v131
  %v956 = vmul.f32 %v954, %v132
  %v957 = vsel %vm328, %v955, 0.0
  %958 = vadd.xlane.f32.xlu0 %v957
  %v959 = vpop.xlane.xlu0 %958
  %v960 = vsel %vm332, %v956, 0.0
  %961 = vadd.xlane.f32.xlu0 %v960
  %v962 = vpop.xlane.xlu0 %961
  %v963 = vadd.f32 %v959, 1e-16
  %v964 = vadd.f32 %v962, 1e-16
  %v965 = vrcp.pop %v963
  %v966 = vmul.f32 %v955, %v965
  %v967 = vrcp.pop %v964
  %v968 = vmul.f32 %v956, %v967
  %969 = vrot.lane.b32.xlu0 %v228, 48
  %v970 = vpop.permute.xlu0 %969
  %971 = vrot.lane.b32.xlu0 %v233, 48
  %v972 = vpop.permute.xlu0 %971
  %v975 = vsel %vm328, %v966, 0
  %v978 = vsel %vm328, %v968, 0
  %v980 = vsel %vm367, %v972, 0
  %982 = vmatprep.subr.mxu0 0.0
  %983 = vmatpush1.msra.mxu0 %v970
  %984 = vmatprep.subr.mxu0 0.0
  %985 = vmatpush1.msra.mxu0 %v980
  %986 = vmatprep.subr.mxu0 0.0
  %987 = vmatpush1.msra.mxu0 0.0
  %988 = vmatprep.subr.mxu0 0.0
  %989 = vmatpush1.msra.mxu0 0.0
  %990 = vmatprep.subr.mxu0 0.0
  %991 = vmatpush1.msra.mxu0 0.0
  %992 = vmatprep.subr.mxu0 0.0
  %993 = vmatpush1.msra.mxu0 0.0
  %994 = vmatprep.subr.mxu0 0.0
  %995 = vmatpush1.msra.mxu0 0.0
  %996 = vmatprep.subr.mxu0 0.0
  %997 = vmatpush1.msra.mxu0 0.0
  %998 = vmatprep.subr.mxu0 0.0
  %999 = vmatpush1.msra.mxu0 0.0
  %1000 = vmatprep.subr.mxu0 0.0
  %1001 = vmatpush1.msra.mxu0 0.0
  %1002 = vmatprep.subr.mxu0 0.0
  %1003 = vmatpush1.msra.mxu0 0.0
  %1004 = vmatprep.subr.mxu0 0.0
  %1005 = vmatpush1.msra.mxu0 0.0
  %1006 = vmatprep.subr.mxu0 0.0
  %1007 = vmatpush1.msra.mxu0 0.0
  %1008 = vmatprep.subr.mxu0 0.0
  %1009 = vmatpush1.msra.mxu0 0.0
  %1010 = vmatprep.subr.mxu0 0.0
  %1011 = vmatpush1.msra.mxu0 0.0
  %1012 = vmatprep.subr.mxu0 0.0
  %1013 = vmatpush1.msra.mxu0 0.0
  %1014 = vmatprep.subr.mxu0 0.0
  %1015 = vmatpush1.msra.mxu0 0.0
  %1016 = vmatprep.subr.mxu0 0.0
  %1017 = vmatpush1.msra.mxu0 0.0
  %1018 = vmatprep.subr.mxu0 0.0
  %1019 = vmatpush1.msra.mxu0 0.0
  %1020 = vmatprep.subr.mxu0 0.0
  %1021 = vmatpush1.msra.mxu0 0.0
  %1022 = vmatprep.subr.mxu0 0.0
  %1023 = vmatpush1.msra.mxu0 0.0
  %1024 = vmatprep.subr.mxu0 0.0
  %1025 = vmatpush1.msra.mxu0 0.0
  %1026 = vmatprep.subr.mxu0 0.0
  %1027 = vmatpush1.msra.mxu0 0.0
  %1028 = vmatprep.subr.mxu0 0.0
  %1029 = vmatpush1.msra.mxu0 0.0
  %1030 = vmatprep.subr.mxu0 0.0
  %1031 = vmatpush1.msra.mxu0 0.0
  %1032 = vmatprep.subr.mxu0 0.0
  %1033 = vmatpush1.msra.mxu0 0.0
  %1034 = vmatprep.subr.mxu0 0.0
  %1035 = vmatpush1.msra.mxu0 0.0
  %1036 = vmatprep.subr.mxu0 0.0
  %1037 = vmatpush1.msra.mxu0 0.0
  %1038 = vmatprep.subr.mxu0 0.0
  %1039 = vmatpush1.msra.mxu0 0.0
  %1040 = vmatprep.subr.mxu0 0.0
  %1041 = vmatpush1.msra.mxu0 0.0
  %1042 = vmatprep.subr.mxu0 0.0
  %1043 = vmatpush1.msra.mxu0 0.0
  %1044 = vmatprep.subr.mxu0 0.0
  %1045 = vmatpush1.msra.mxu0 0.0
  %1046 = vmatprep.mubr.f32.mxu0 0.0
  %1047 = vmatmul.mubr.f32.gmra.mrb[0].mxu0 %v975
  %v1048 = vpop.f32.mrb[0].mxu0
  %v1049 = vadd.f32 0.0, %v1048
  %v1050 = vpop.f32.mrb[0].mxu0
  %1051 = vmatprep.mubr.f32.mxu0 0.0
  %1052 = vmatmul.mubr.f32.gmra.mrb[0].mxu0 %v978
  %v1053 = vpop.f32.mrb[0].mxu0
  %v1054 = vadd.f32 0.0, %v1053
  %v1055 = vpop.f32.mrb[0].mxu0
  %1056 = vdwg.mxu0
  %v1057 = vmul.f32 %v1049, 0.5
  %v1058 = vmul.f32 %v1054, 0.5
  %v1059 = vmul.f32 %v1049, 0.044715
  %v1060 = vmul.f32 %v1054, 0.044715
  %v1061 = vmul.f32 %v1059, %v1049
  %v1062 = vmul.f32 %v1060, %v1054
  %v1063 = vmul.f32 %v1061, %v1049
  %v1064 = vmul.f32 %v1062, %v1054
  %v1065 = vadd.f32 %v1049, %v1063
  %v1066 = vadd.f32 %v1054, %v1064
  %v1067 = vmul.f32 %v1065, 0.7978846
  %v1068 = vmul.f32 %v1066, 0.7978846
  %v1069 = vtanh.pop %v1067
  %v1070 = vtanh.pop %v1068
  %v1071 = vadd.f32 %v1069, 1.0
  %v1072 = vadd.f32 %v1070, 1.0
  %v1073 = vmul.f32 %v1057, %v1071
  %v1074 = vmul.f32 %v1058, %v1072
  %v1076 = vsel %vm242, %v1073, 0
  %v1079 = vsel %vm242, %v1074, 0
  %1081 = vmatprep.subr.mxu0 0.0
  %1082 = vmatpush1.msra.mxu0 %v142
  %1083 = vmatprep.subr.mxu0 0.0
  %1084 = vmatpush1.msra.mxu0 0.0
  %1085 = vmatprep.subr.mxu0 0.0
  %1086 = vmatpush1.msra.mxu0 0.0
  %1087 = vmatprep.subr.mxu0 0.0
  %1088 = vmatpush1.msra.mxu0 0.0
  %1089 = vmatprep.subr.mxu0 0.0
  %1090 = vmatpush1.msra.mxu0 0.0
  %1091 = vmatprep.subr.mxu0 0.0
  %1092 = vmatpush1.msra.mxu0 0.0
  %1093 = vmatprep.subr.mxu0 0.0
  %1094 = vmatpush1.msra.mxu0 0.0
  %1095 = vmatprep.subr.mxu0 0.0
  %1096 = vmatpush1.msra.mxu0 0.0
  %1097 = vmatprep.subr.mxu0 0.0
  %1098 = vmatpush1.msra.mxu0 0.0
  %1099 = vmatprep.subr.mxu0 0.0
  %1100 = vmatpush1.msra.mxu0 0.0
  %1101 = vmatprep.subr.mxu0 0.0
  %1102 = vmatpush1.msra.mxu0 0.0
  %1103 = vmatprep.subr.mxu0 0.0
  %1104 = vmatpush1.msra.mxu0 0.0
  %1105 = vmatprep.subr.mxu0 0.0
  %1106 = vmatpush1.msra.mxu0 0.0
  %1107 = vmatprep.subr.mxu0 0.0
  %1108 = vmatpush1.msra.mxu0 0.0
  %1109 = vmatprep.subr.mxu0 0.0
  %1110 = vmatpush1.msra.mxu0 0.0
  %1111 = vmatprep.subr.mxu0 0.0
  %1112 = vmatpush1.msra.mxu0 0.0
  %1113 = vmatprep.subr.mxu0 0.0
  %1114 = vmatpush1.msra.mxu0 0.0
  %1115 = vmatprep.subr.mxu0 0.0
  %1116 = vmatpush1.msra.mxu0 0.0
  %1117 = vmatprep.subr.mxu0 0.0
  %1118 = vmatpush1.msra.mxu0 0.0
  %1119 = vmatprep.subr.mxu0 0.0
  %1120 = vmatpush1.msra.mxu0 0.0
  %1121 = vmatprep.subr.mxu0 0.0
  %1122 = vmatpush1.msra.mxu0 0.0
  %1123 = vmatprep.subr.mxu0 0.0
  %1124 = vmatpush1.msra.mxu0 0.0
  %1125 = vmatprep.subr.mxu0 0.0
  %1126 = vmatpush1.msra.mxu0 0.0
  %1127 = vmatprep.subr.mxu0 0.0
  %1128 = vmatpush1.msra.mxu0 0.0
  %1129 = vmatprep.subr.mxu0 0.0
  %1130 = vmatpush1.msra.mxu0 0.0
  %1131 = vmatprep.subr.mxu0 0.0
  %1132 = vmatpush1.msra.mxu0 0.0
  %1133 = vmatprep.subr.mxu0 0.0
  %1134 = vmatpush1.msra.mxu0 0.0
  %1135 = vmatprep.subr.mxu0 0.0
  %1136 = vmatpush1.msra.mxu0 0.0
  %1137 = vmatprep.subr.mxu0 0.0
  %1138 = vmatpush1.msra.mxu0 0.0
  %1139 = vmatprep.subr.mxu0 0.0
  %1140 = vmatpush1.msra.mxu0 0.0
  %1141 = vmatprep.subr.mxu0 0.0
  %1142 = vmatpush1.msra.mxu0 0.0
  %1143 = vmatprep.subr.mxu0 0.0
  %1144 = vmatpush1.msra.mxu0 0.0
  %1145 = vmatprep.mubr.f32.mxu0 0.0
  %1146 = vmatmul.mubr.f32.gmra.mrb[0].mxu0 %v1076
  %v1147 = vpop.f32.mrb[0].mxu0
  %v1148 = vadd.f32 0.0, %v1147
  %v1149 = vpop.f32.mrb[0].mxu0
  %1150 = vmatprep.mubr.f32.mxu0 0.0
  %1151 = vmatmul.mubr.f32.gmra.mrb[0].mxu0 %v1079
  %v1152 = vpop.f32.mrb[0].mxu0
  %v1153 = vadd.f32 0.0, %v1152
  %v1154 = vpop.f32.mrb[0].mxu0
  %1155 = vdwg.mxu0
  %v1156 = vadd.f32 %v842, %v1148
  %v1157 = vadd.f32 %v847, %v1153
  %1158 = vrot.lane.b32.xlu0 %v228, 104
  %v1159 = vpop.permute.xlu0 %1158
  %1160 = vrot.lane.b32.xlu0 %v233, 104
  %v1161 = vpop.permute.xlu0 %1160
  %1162 = vrot.lane.b32.xlu0 %v228, 72
  %v1163 = vpop.permute.xlu0 %1162
  %1164 = vrot.lane.b32.xlu0 %v233, 72
  %v1165 = vpop.permute.xlu0 %1164
  %v1166 = vsel %vm242, %v1159, 0
  %v1168 = vsel %vm242, %v1161, 0
  %v1170 = vsel %vm242, %v1163, 0
  %v1172 = vsel %vm242, %v1165, 0
  %1174 = vmatprep.subr.mxu0 0.0
  %1175 = vmatpush1.xpose.msra.mxu0 %v1170
  %1176 = vmatprep.subr.mxu0 0.0
  %1177 = vmatpush1.xpose.msra.mxu0 %v1172
  %1178 = vmatprep.subr.mxu0 0.0
  %1179 = vmatpush1.xpose.msra.mxu0 0.0
  %1180 = vmatprep.subr.mxu0 0.0
  %1181 = vmatpush1.xpose.msra.mxu0 0.0
  %1182 = vmatprep.subr.mxu0 0.0
  %1183 = vmatpush1.xpose.msra.mxu0 0.0
  %1184 = vmatprep.subr.mxu0 0.0
  %1185 = vmatpush1.xpose.msra.mxu0 0.0
  %1186 = vmatprep.subr.mxu0 0.0
  %1187 = vmatpush1.xpose.msra.mxu0 0.0
  %1188 = vmatprep.subr.mxu0 0.0
  %1189 = vmatpush1.xpose.msra.mxu0 0.0
  %1190 = vmatprep.subr.mxu0 0.0
  %1191 = vmatpush1.xpose.msra.mxu0 0.0
  %1192 = vmatprep.subr.mxu0 0.0
  %1193 = vmatpush1.xpose.msra.mxu0 0.0
  %1194 = vmatprep.subr.mxu0 0.0
  %1195 = vmatpush1.xpose.msra.mxu0 0.0
  %1196 = vmatprep.subr.mxu0 0.0
  %1197 = vmatpush1.xpose.msra.mxu0 0.0
  %1198 = vmatprep.subr.mxu0 0.0
  %1199 = vmatpush1.xpose.msra.mxu0 0.0
  %1200 = vmatprep.subr.mxu0 0.0
  %1201 = vmatpush1.xpose.msra.mxu0 0.0
  %1202 = vmatprep.subr.mxu0 0.0
  %1203 = vmatpush1.xpose.msra.mxu0 0.0
  %1204 = vmatprep.subr.mxu0 0.0
  %1205 = vmatpush1.xpose.msra.mxu0 0.0
  %1206 = vmatprep.subr.mxu0 0.0
  %1207 = vmatpush1.xpose.msra.mxu0 0.0
  %1208 = vmatprep.subr.mxu0 0.0
  %1209 = vmatpush1.xpose.msra.mxu0 0.0
  %1210 = vmatprep.subr.mxu0 0.0
  %1211 = vmatpush1.xpose.msra.mxu0 0.0
  %1212 = vmatprep.subr.mxu0 0.0
  %1213 = vmatpush1.xpose.msra.mxu0 0.0
  %1214 = vmatprep.subr.mxu0 0.0
  %1215 = vmatpush1.xpose.msra.mxu0 0.0
  %1216 = vmatprep.subr.mxu0 0.0
  %1217 = vmatpush1.xpose.msra.mxu0 0.0
  %1218 = vmatprep.subr.mxu0 0.0
  %1219 = vmatpush1.xpose.msra.mxu0 0.0
  %1220 = vmatprep.subr.mxu0 0.0
  %1221 = vmatpush1.xpose.msra.mxu0 0.0
  %1222 = vmatprep.subr.mxu0 0.0
  %1223 = vmatpush1.xpose.msra.mxu0 0.0
  %1224 = vmatprep.subr.mxu0 0.0
  %1225 = vmatpush1.xpose.msra.mxu0 0.0
  %1226 = vmatprep.subr.mxu0 0.0
  %1227 = vmatpush1.xpose.msra.mxu0 0.0
  %1228 = vmatprep.subr.mxu0 0.0
  %1229 = vmatpush1.xpose.msra.mxu0 0.0
  %1230 = vmatprep.subr.mxu0 0.0
  %1231 = vmatpush1.xpose.msra.mxu0 0.0
  %1232 = vmatprep.subr.mxu0 0.0
  %1233 = vmatpush1.xpose.msra.mxu0 0.0
  %1234 = vmatprep.subr.mxu0 0.0
  %1235 = vmatpush1.xpose.msra.mxu0 0.0
  %1236 = vmatprep.subr.mxu0 0.0
  %1237 = vmatpush1.xpose.msra.mxu0 0.0
  %1238 = vmatprep.mubr.f32.mxu0 0.0
  %1239 = vmatmul.mubr.f32.gmra.mrb[0].mxu0 %v1166
  %v1240 = vpop.f32.mrb[0].mxu0
  %v1241 = vadd.f32 0.0, %v1240
  %v1242 = vpop.f32.mrb[0].mxu0
  %1243 = vmatprep.mubr.f32.mxu0 0.0
  %1244 = vmatmul.mubr.f32.gmra.mrb[0].mxu0 %v1168
  %v1245 = vpop.f32.mrb[0].mxu0
  %v1246 = vadd.f32 0.0, %v1245
  %v1247 = vpop.f32.mrb[0].mxu0
  %1248 = vdwg.mxu0
  %v1249 = vsel %vm133, -1e+30, %v1241
  %v1250 = vsel %vm134, -1e+30, %v1246
  %v1251 = vsel %vm328, %v1249, -inf
  %1252 = vmax.xlane.f32.xlu0 %v1251
  %v1253 = vpop.xlane.xlu0 %1252
  %v1254 = vsel %vm332, %v1250, -inf
  %1255 = vmax.xlane.f32.xlu0 %v1254
  %v1256 = vpop.xlane.xlu0 %1255
  %v1257 = vsub.f32 %v1249, %v1253
  %v1258 = vsub.f32 %v1250, %v1256
  %v1259 = vmul.f32 %v1257, 1.442695
  %v1260 = vpow.pop %v1259
  %v1261 = vmul.f32 %v1258, 1.442695
  %v1262 = vpow.pop %v1261
  %v1263 = vmul.f32 %v1260, %v131
  %v1264 = vmul.f32 %v1262, %v132
  %v1265 = vsel %vm328, %v1263, 0.0
  %1266 = vadd.xlane.f32.xlu0 %v1265
  %v1267 = vpop.xlane.xlu0 %1266
  %v1268 = vsel %vm332, %v1264, 0.0
  %1269 = vadd.xlane.f32.xlu0 %v1268
  %v1270 = vpop.xlane.xlu0 %1269
  %v1271 = vadd.f32 %v1267, 1e-16
  %v1272 = vadd.f32 %v1270, 1e-16
  %v1273 = vrcp.pop %v1271
  %v1274 = vmul.f32 %v1263, %v1273
  %v1275 = vrcp.pop %v1272
  %v1276 = vmul.f32 %v1264, %v1275
  %1277 = vrot.lane.b32.xlu0 %v228, 40
  %v1278 = vpop.permute.xlu0 %1277
  %1279 = vrot.lane.b32.xlu0 %v233, 40
  %v1280 = vpop.permute.xlu0 %1279
  %v1283 = vsel %vm328, %v1274, 0
  %v1286 = vsel %vm328, %v1276, 0
  %v1288 = vsel %vm367, %v1280, 0
  %1290 = vmatprep.subr.mxu0 0.0
  %1291 = vmatpush1.msra.mxu0 %v1278
  %1292 = vmatprep.subr.mxu0 0.0
  %1293 = vmatpush1.msra.mxu0 %v1288
  %1294 = vmatprep.subr.mxu0 0.0
  %1295 = vmatpush1.msra.mxu0 0.0
  %1296 = vmatprep.subr.mxu0 0.0
  %1297 = vmatpush1.msra.mxu0 0.0
  %1298 = vmatprep.subr.mxu0 0.0
  %1299 = vmatpush1.msra.mxu0 0.0
  %1300 = vmatprep.subr.mxu0 0.0
  %1301 = vmatpush1.msra.mxu0 0.0
  %1302 = vmatprep.subr.mxu0 0.0
  %1303 = vmatpush1.msra.mxu0 0.0
  %1304 = vmatprep.subr.mxu0 0.0
  %1305 = vmatpush1.msra.mxu0 0.0
  %1306 = vmatprep.subr.mxu0 0.0
  %1307 = vmatpush1.msra.mxu0 0.0
  %1308 = vmatprep.subr.mxu0 0.0
  %1309 = vmatpush1.msra.mxu0 0.0
  %1310 = vmatprep.subr.mxu0 0.0
  %1311 = vmatpush1.msra.mxu0 0.0
  %1312 = vmatprep.subr.mxu0 0.0
  %1313 = vmatpush1.msra.mxu0 0.0
  %1314 = vmatprep.subr.mxu0 0.0
  %1315 = vmatpush1.msra.mxu0 0.0
  %1316 = vmatprep.subr.mxu0 0.0
  %1317 = vmatpush1.msra.mxu0 0.0
  %1318 = vmatprep.subr.mxu0 0.0
  %1319 = vmatpush1.msra.mxu0 0.0
  %1320 = vmatprep.subr.mxu0 0.0
  %1321 = vmatpush1.msra.mxu0 0.0
  %1322 = vmatprep.subr.mxu0 0.0
  %1323 = vmatpush1.msra.mxu0 0.0
  %1324 = vmatprep.subr.mxu0 0.0
  %1325 = vmatpush1.msra.mxu0 0.0
  %1326 = vmatprep.subr.mxu0 0.0
  %1327 = vmatpush1.msra.mxu0 0.0
  %1328 = vmatprep.subr.mxu0 0.0
  %1329 = vmatpush1.msra.mxu0 0.0
  %1330 = vmatprep.subr.mxu0 0.0
  %1331 = vmatpush1.msra.mxu0 0.0
  %1332 = vmatprep.subr.mxu0 0.0
  %1333 = vmatpush1.msra.mxu0 0.0
  %1334 = vmatprep.subr.mxu0 0.0
  %1335 = vmatpush1.msra.mxu0 0.0
  %1336 = vmatprep.subr.mxu0 0.0
  %1337 = vmatpush1.msra.mxu0 0.0
  %1338 = vmatprep.subr.mxu0 0.0
  %1339 = vmatpush1.msra.mxu0 0.0
  %1340 = vmatprep.subr.mxu0 0.0
  %1341 = vmatpush1.msra.mxu0 0.0
  %1342 = vmatprep.subr.mxu0 0.0
  %1343 = vmatpush1.msra.mxu0 0.0
  %1344 = vmatprep.subr.mxu0 0.0
  %1345 = vmatpush1.msra.mxu0 0.0
  %1346 = vmatprep.subr.mxu0 0.0
  %1347 = vmatpush1.msra.mxu0 0.0
  %1348 = vmatprep.subr.mxu0 0.0
  %1349 = vmatpush1.msra.mxu0 0.0
  %1350 = vmatprep.subr.mxu0 0.0
  %1351 = vmatpush1.msra.mxu0 0.0
  %1352 = vmatprep.subr.mxu0 0.0
  %1353 = vmatpush1.msra.mxu0 0.0
  %1354 = vmatprep.mubr.f32.mxu0 0.0
  %1355 = vmatmul.mubr.f32.gmra.mrb[0].mxu0 %v1283
  %v1356 = vpop.f32.mrb[0].mxu0
  %v1357 = vadd.f32 0.0, %v1356
  %v1358 = vpop.f32.mrb[0].mxu0
  %1359 = vmatprep.mubr.f32.mxu0 0.0
  %1360 = vmatmul.mubr.f32.gmra.mrb[0].mxu0 %v1286
  %v1361 = vpop.f32.mrb[0].mxu0
  %v1362 = vadd.f32 0.0, %v1361
  %v1363 = vpop.f32.mrb[0].mxu0
  %1364 = vdwg.mxu0
  %v1365 = vmul.f32 %v1357, 0.5
  %v1366 = vmul.f32 %v1362, 0.5
  %v1367 = vmul.f32 %v1357, 0.044715
  %v1368 = vmul.f32 %v1362, 0.044715
  %v1369 = vmul.f32 %v1367, %v1357
  %v1370 = vmul.f32 %v1368, %v1362
  %v1371 = vmul.f32 %v1369, %v1357
  %v1372 = vmul.f32 %v1370, %v1362
  %v1373 = vadd.f32 %v1357, %v1371
  %v1374 = vadd.f32 %v1362, %v1372
  %v1375 = vmul.f32 %v1373, 0.7978846
  %v1376 = vmul.f32 %v1374, 0.7978846
  %v1377 = vtanh.pop %v1375
  %v1378 = vtanh.pop %v1376
  %v1379 = vadd.f32 %v1377, 1.0
  %v1380 = vadd.f32 %v1378, 1.0
  %v1381 = vmul.f32 %v1365, %v1379
  %v1382 = vmul.f32 %v1366, %v1380
  %v1384 = vsel %vm242, %v1381, 0
  %v1387 = vsel %vm242, %v1382, 0
  %1389 = vmatprep.subr.mxu0 0.0
  %1390 = vmatpush1.msra.mxu0 %v143
  %1391 = vmatprep.subr.mxu0 0.0
  %1392 = vmatpush1.msra.mxu0 0.0
  %1393 = vmatprep.subr.mxu0 0.0
  %1394 = vmatpush1.msra.mxu0 0.0
  %1395 = vmatprep.subr.mxu0 0.0
  %1396 = vmatpush1.msra.mxu0 0.0
  %1397 = vmatprep.subr.mxu0 0.0
  %1398 = vmatpush1.msra.mxu0 0.0
  %1399 = vmatprep.subr.mxu0 0.0
  %1400 = vmatpush1.msra.mxu0 0.0
  %1401 = vmatprep.subr.mxu0 0.0
  %1402 = vmatpush1.msra.mxu0 0.0
  %1403 = vmatprep.subr.mxu0 0.0
  %1404 = vmatpush1.msra.mxu0 0.0
  %1405 = vmatprep.subr.mxu0 0.0
  %1406 = vmatpush1.msra.mxu0 0.0
  %1407 = vmatprep.subr.mxu0 0.0
  %1408 = vmatpush1.msra.mxu0 0.0
  %1409 = vmatprep.subr.mxu0 0.0
  %1410 = vmatpush1.msra.mxu0 0.0
  %1411 = vmatprep.subr.mxu0 0.0
  %1412 = vmatpush1.msra.mxu0 0.0
  %1413 = vmatprep.subr.mxu0 0.0
  %1414 = vmatpush1.msra.mxu0 0.0
  %1415 = vmatprep.subr.mxu0 0.0
  %1416 = vmatpush1.msra.mxu0 0.0
  %1417 = vmatprep.subr.mxu0 0.0
  %1418 = vmatpush1.msra.mxu0 0.0
  %1419 = vmatprep.subr.mxu0 0.0
  %1420 = vmatpush1.msra.mxu0 0.0
  %1421 = vmatprep.subr.mxu0 0.0
  %1422 = vmatpush1.msra.mxu0 0.0
  %1423 = vmatprep.subr.mxu0 0.0
  %1424 = vmatpush1.msra.mxu0 0.0
  %1425 = vmatprep.subr.mxu0 0.0
  %1426 = vmatpush1.msra.mxu0 0.0
  %1427 = vmatprep.subr.mxu0 0.0
  %1428 = vmatpush1.msra.mxu0 0.0
  %1429 = vmatprep.subr.mxu0 0.0
  %1430 = vmatpush1.msra.mxu0 0.0
  %1431 = vmatprep.subr.mxu0 0.0
  %1432 = vmatpush1.msra.mxu0 0.0
  %1433 = vmatprep.subr.mxu0 0.0
  %1434 = vmatpush1.msra.mxu0 0.0
  %1435 = vmatprep.subr.mxu0 0.0
  %1436 = vmatpush1.msra.mxu0 0.0
  %1437 = vmatprep.subr.mxu0 0.0
  %1438 = vmatpush1.msra.mxu0 0.0
  %1439 = vmatprep.subr.mxu0 0.0
  %1440 = vmatpush1.msra.mxu0 0.0
  %1441 = vmatprep.subr.mxu0 0.0
  %1442 = vmatpush1.msra.mxu0 0.0
  %1443 = vmatprep.subr.mxu0 0.0
  %1444 = vmatpush1.msra.mxu0 0.0
  %1445 = vmatprep.subr.mxu0 0.0
  %1446 = vmatpush1.msra.mxu0 0.0
  %1447 = vmatprep.subr.mxu0 0.0
  %1448 = vmatpush1.msra.mxu0 0.0
  %1449 = vmatprep.subr.mxu0 0.0
  %1450 = vmatpush1.msra.mxu0 0.0
  %1451 = vmatprep.subr.mxu0 0.0
  %1452 = vmatpush1.msra.mxu0 0.0
  %1453 = vmatprep.mubr.f32.mxu0 0.0
  %1454 = vmatmul.mubr.f32.gmra.mrb[0].mxu0 %v1384
  %v1455 = vpop.f32.mrb[0].mxu0
  %v1456 = vadd.f32 0.0, %v1455
  %v1457 = vpop.f32.mrb[0].mxu0
  %1458 = vmatprep.mubr.f32.mxu0 0.0
  %1459 = vmatmul.mubr.f32.gmra.mrb[0].mxu0 %v1387
  %v1460 = vpop.f32.mrb[0].mxu0
  %v1461 = vadd.f32 0.0, %v1460
  %v1462 = vpop.f32.mrb[0].mxu0
  %1463 = vdwg.mxu0
  %v1464 = vadd.f32 %v1156, %v1456
  %v1465 = vadd.f32 %v1157, %v1461
  %v1466 = vlaneseq
  %v1467 = vshrl.u32 %v1466, 7
  %v1468 = vsub.s32 0, %v1467
  %v1469 = vrot.slane %v144, %v1468
  %v1470 = vadd.f32 %v1464, %v1469
  %v1471 = vadd.f32 %v1465, %v1469
  %v1472 = vlaneseq
  %v1473 = vshrl.u32 %v1472, 7
  %v1474 = vsub.s32 0, %v1473
  %v1475 = vrot.slane %v147, %v1474
  %v1476 = vmul.f32 %v1475, %v123
  %v1477 = vmul.f32 %v1475, %v128
  %v1478 = vadd.f32 %v1470, %v1476
  %v1479 = vadd.f32 %v1471, %v1477
  %vm1480 = vcmp.gt.f32.partialorder %v1478, 0.0
  %vm1481 = vcmp.gt.f32.partialorder %v1479, 0.0
  %v1482 = vmul.f32 %v1478, 1.442695
  %v1483 = vpow.pop %v1482
  %v1484 = vmul.f32 %v1479, 1.442695
  %v1485 = vpow.pop %v1484
  %v1486 = vsub.f32 %v1483, 1.0
  %v1487 = vsub.f32 %v1485, 1.0
  %v1488 = vsel %vm1480, %v1478, %v1486
  %v1489 = vsel %vm1481, %v1479, %v1487
  %v1490 = vsel %vm154, %v1488, 0.0
  %1491 = vadd.xlane.f32.xlu0 %v1490
  %v1492 = vpop.xlane.xlu0 %1491
  %vm1493 = vcmask 257024
  %v1494 = vsel %vm1493, %v1489, 0.0
  %1495 = vadd.xlane.f32.xlu0 %v1494
  %v1496 = vpop.xlane.xlu0 %1495
  %v1497 = vrcp.pop 32.0
  %v1498 = vmul.f32 %v1492, %v1497
  %v1499 = vmul.f32 %v1496, %v1497
  %v1500 = vsub.f32 %v1488, %v1498
  %v1501 = vsub.f32 %v1489, %v1499
  %v1502 = vmul.f32 %v1500, %v1500
  %v1503 = vmul.f32 %v1501, %v1501
  %v1504 = vsel %vm154, %v1502, 0.0
  %1505 = vadd.xlane.f32.xlu0 %v1504
  %v1506 = vpop.xlane.xlu0 %1505
  %v1507 = vsel %vm1493, %v1503, 0.0
  %1508 = vadd.xlane.f32.xlu0 %v1507
  %v1509 = vpop.xlane.xlu0 %1508
  %v1510 = vmul.f32 %v1506, %v1497
  %v1511 = vmul.f32 %v1509, %v1497
  %v1512 = vadd.f32 %v1510, 1e-05
  %v1513 = vadd.f32 %v1511, 1e-05
  %v1514 = vrsqrt.pop %v1512
  %v1515 = vrsqrt.pop %v1513
  %v1516 = vmul.f32 %v1500, %v1514
  %v1517 = vmul.f32 %v1501, %v1515
  %v1518 = vlaneseq
  %v1519 = vshrl.u32 %v1518, 7
  %v1520 = vsub.s32 0, %v1519
  %v1521 = vrot.slane %v145, %v1520
  %v1522 = vmul.f32 %v1516, %v1521
  %v1523 = vmul.f32 %v1517, %v1521
  %v1524 = vlaneseq
  %v1525 = vshrl.u32 %v1524, 7
  %v1526 = vsub.s32 0, %v1525
  %v1527 = vrot.slane %v146, %v1526
  %v1528 = vadd.f32 %v1522, %v1527
  %v1529 = vadd.f32 %v1523, %v1527
  %v1531 = vsel %vm154, %v1528, 0
  %v1534 = vsel %vm154, %v1529, 0
  %1536 = vmatprep.subr.mxu0 0.0
  %1537 = vmatpush1.msra.mxu0 %v135
  %1538 = vmatprep.subr.mxu0 0.0
  %1539 = vmatpush1.msra.mxu0 %v136
  %1540 = vmatprep.subr.mxu0 0.0
  %1541 = vmatpush1.msra.mxu0 %v137
  %1542 = vmatprep.subr.mxu0 0.0
  %1543 = vmatpush1.msra.mxu0 %v138
  %1544 = vmatprep.subr.mxu0 0.0
  %1545 = vmatpush1.msra.mxu0 0.0
  %1546 = vmatprep.subr.mxu0 0.0
  %1547 = vmatpush1.msra.mxu0 0.0
  %1548 = vmatprep.subr.mxu0 0.0
  %1549 = vmatpush1.msra.mxu0 0.0
  %1550 = vmatprep.subr.mxu0 0.0
  %1551 = vmatpush1.msra.mxu0 0.0
  %1552 = vmatprep.subr.mxu0 0.0
  %1553 = vmatpush1.msra.mxu0 0.0
  %1554 = vmatprep.subr.mxu0 0.0
  %1555 = vmatpush1.msra.mxu0 0.0
  %1556 = vmatprep.subr.mxu0 0.0
  %1557 = vmatpush1.msra.mxu0 0.0
  %1558 = vmatprep.subr.mxu0 0.0
  %1559 = vmatpush1.msra.mxu0 0.0
  %1560 = vmatprep.subr.mxu0 0.0
  %1561 = vmatpush1.msra.mxu0 0.0
  %1562 = vmatprep.subr.mxu0 0.0
  %1563 = vmatpush1.msra.mxu0 0.0
  %1564 = vmatprep.subr.mxu0 0.0
  %1565 = vmatpush1.msra.mxu0 0.0
  %1566 = vmatprep.subr.mxu0 0.0
  %1567 = vmatpush1.msra.mxu0 0.0
  %1568 = vmatprep.subr.mxu0 0.0
  %1569 = vmatpush1.msra.mxu0 0.0
  %1570 = vmatprep.subr.mxu0 0.0
  %1571 = vmatpush1.msra.mxu0 0.0
  %1572 = vmatprep.subr.mxu0 0.0
  %1573 = vmatpush1.msra.mxu0 0.0
  %1574 = vmatprep.subr.mxu0 0.0
  %1575 = vmatpush1.msra.mxu0 0.0
  %1576 = vmatprep.subr.mxu0 0.0
  %1577 = vmatpush1.msra.mxu0 0.0
  %1578 = vmatprep.subr.mxu0 0.0
  %1579 = vmatpush1.msra.mxu0 0.0
  %1580 = vmatprep.subr.mxu0 0.0
  %1581 = vmatpush1.msra.mxu0 0.0
  %1582 = vmatprep.subr.mxu0 0.0
  %1583 = vmatpush1.msra.mxu0 0.0
  %1584 = vmatprep.subr.mxu0 0.0
  %1585 = vmatpush1.msra.mxu0 0.0
  %1586 = vmatprep.subr.mxu0 0.0
  %1587 = vmatpush1.msra.mxu0 0.0
  %1588 = vmatprep.subr.mxu0 0.0
  %1589 = vmatpush1.msra.mxu0 0.0
  %1590 = vmatprep.subr.mxu0 0.0
  %1591 = vmatpush1.msra.mxu0 0.0
  %1592 = vmatprep.subr.mxu0 0.0
  %1593 = vmatpush1.msra.mxu0 0.0
  %1594 = vmatprep.subr.mxu0 0.0
  %1595 = vmatpush1.msra.mxu0 0.0
  %1596 = vmatprep.subr.mxu0 0.0
  %1597 = vmatpush1.msra.mxu0 0.0
  %1598 = vmatprep.subr.mxu0 0.0
  %1599 = vmatpush1.msra.mxu0 0.0
  %1600 = vmatprep.mubr.f32.mxu0 0.0
  %1601 = vmatmul.mubr.f32.gmra.mrb[0].mxu0 %v1531
  %v1602 = vpop.f32.mrb[0].mxu0
  %v1603 = vadd.f32 %v152, %v1602
  %v1604 = vpop.f32.mrb[0].mxu0
  %1605 = vmatprep.mubr.f32.mxu0 0.0
  %1606 = vmatmul.mubr.f32.gmra.mrb[0].mxu0 %v1534
  %v1607 = vpop.f32.mrb[0].mxu0
  %v1608 = vadd.f32 %v152, %v1607
  %v1609 = vpop.f32.mrb[0].mxu0
  %1610 = vdwg.mxu0
  %1613 = vrot.lane.b32.xlu0 %v1603, 96
  %v1614 = vpop.permute.xlu0 %1613
  %1615 = vrot.lane.b32.xlu0 %v1608, 96
  %v1616 = vpop.permute.xlu0 %1615
  %v1617 = vsel %vm242, %v1603, 0
  %v1619 = vsel %vm242, %v1608, 0
  %v1621 = vsel %vm242, %v1614, 0
  %v1623 = vsel %vm242, %v1616, 0
  %1625 = vmatprep.subr.mxu0 0.0
  %1626 = vmatpush1.xpose.msra.mxu0 %v1621
  %1627 = vmatprep.subr.mxu0 0.0
  %1628 = vmatpush1.xpose.msra.mxu0 %v1623
  %1629 = vmatprep.subr.mxu0 0.0
  %1630 = vmatpush1.xpose.msra.mxu0 0.0
  %1631 = vmatprep.subr.mxu0 0.0
  %1632 = vmatpush1.xpose.msra.mxu0 0.0
  %1633 = vmatprep.subr.mxu0 0.0
  %1634 = vmatpush1.xpose.msra.mxu0 0.0
  %1635 = vmatprep.subr.mxu0 0.0
  %1636 = vmatpush1.xpose.msra.mxu0 0.0
  %1637 = vmatprep.subr.mxu0 0.0
  %1638 = vmatpush1.xpose.msra.mxu0 0.0
  %1639 = vmatprep.subr.mxu0 0.0
  %1640 = vmatpush1.xpose.msra.mxu0 0.0
  %1641 = vmatprep.subr.mxu0 0.0
  %1642 = vmatpush1.xpose.msra.mxu0 0.0
  %1643 = vmatprep.subr.mxu0 0.0
  %1644 = vmatpush1.xpose.msra.mxu0 0.0
  %1645 = vmatprep.subr.mxu0 0.0
  %1646 = vmatpush1.xpose.msra.mxu0 0.0
  %1647 = vmatprep.subr.mxu0 0.0
  %1648 = vmatpush1.xpose.msra.mxu0 0.0
  %1649 = vmatprep.subr.mxu0 0.0
  %1650 = vmatpush1.xpose.msra.mxu0 0.0
  %1651 = vmatprep.subr.mxu0 0.0
  %1652 = vmatpush1.xpose.msra.mxu0 0.0
  %1653 = vmatprep.subr.mxu0 0.0
  %1654 = vmatpush1.xpose.msra.mxu0 0.0
  %1655 = vmatprep.subr.mxu0 0.0
  %1656 = vmatpush1.xpose.msra.mxu0 0.0
  %1657 = vmatprep.subr.mxu0 0.0
  %1658 = vmatpush1.xpose.msra.mxu0 0.0
  %1659 = vmatprep.subr.mxu0 0.0
  %1660 = vmatpush1.xpose.msra.mxu0 0.0
  %1661 = vmatprep.subr.mxu0 0.0
  %1662 = vmatpush1.xpose.msra.mxu0 0.0
  %1663 = vmatprep.subr.mxu0 0.0
  %1664 = vmatpush1.xpose.msra.mxu0 0.0
  %1665 = vmatprep.subr.mxu0 0.0
  %1666 = vmatpush1.xpose.msra.mxu0 0.0
  %1667 = vmatprep.subr.mxu0 0.0
  %1668 = vmatpush1.xpose.msra.mxu0 0.0
  %1669 = vmatprep.subr.mxu0 0.0
  %1670 = vmatpush1.xpose.msra.mxu0 0.0
  %1671 = vmatprep.subr.mxu0 0.0
  %1672 = vmatpush1.xpose.msra.mxu0 0.0
  %1673 = vmatprep.subr.mxu0 0.0
  %1674 = vmatpush1.xpose.msra.mxu0 0.0
  %1675 = vmatprep.subr.mxu0 0.0
  %1676 = vmatpush1.xpose.msra.mxu0 0.0
  %1677 = vmatprep.subr.mxu0 0.0
  %1678 = vmatpush1.xpose.msra.mxu0 0.0
  %1679 = vmatprep.subr.mxu0 0.0
  %1680 = vmatpush1.xpose.msra.mxu0 0.0
  %1681 = vmatprep.subr.mxu0 0.0
  %1682 = vmatpush1.xpose.msra.mxu0 0.0
  %1683 = vmatprep.subr.mxu0 0.0
  %1684 = vmatpush1.xpose.msra.mxu0 0.0
  %1685 = vmatprep.subr.mxu0 0.0
  %1686 = vmatpush1.xpose.msra.mxu0 0.0
  %1687 = vmatprep.subr.mxu0 0.0
  %1688 = vmatpush1.xpose.msra.mxu0 0.0
  %1689 = vmatprep.mubr.f32.mxu0 0.0
  %1690 = vmatmul.mubr.f32.gmra.mrb[0].mxu0 %v1617
  %v1691 = vpop.f32.mrb[0].mxu0
  %v1692 = vadd.f32 0.0, %v1691
  %v1693 = vpop.f32.mrb[0].mxu0
  %1694 = vmatprep.mubr.f32.mxu0 0.0
  %1695 = vmatmul.mubr.f32.gmra.mrb[0].mxu0 %v1619
  %v1696 = vpop.f32.mrb[0].mxu0
  %v1697 = vadd.f32 0.0, %v1696
  %v1698 = vpop.f32.mrb[0].mxu0
  %1699 = vdwg.mxu0
  %v1700 = vsel %vm133, -1e+30, %v1692
  %v1701 = vsel %vm134, -1e+30, %v1697
  %v1702 = vsel %vm328, %v1700, -inf
  %1703 = vmax.xlane.f32.xlu0 %v1702
  %v1704 = vpop.xlane.xlu0 %1703
  %v1705 = vsel %vm332, %v1701, -inf
  %1706 = vmax.xlane.f32.xlu0 %v1705
  %v1707 = vpop.xlane.xlu0 %1706
  %v1708 = vsub.f32 %v1700, %v1704
  %v1709 = vsub.f32 %v1701, %v1707
  %v1710 = vmul.f32 %v1708, 1.442695
  %v1711 = vpow.pop %v1710
  %v1712 = vmul.f32 %v1709, 1.442695
  %v1713 = vpow.pop %v1712
  %v1714 = vmul.f32 %v1711, %v131
  %v1715 = vmul.f32 %v1713, %v132
  %v1716 = vsel %vm328, %v1714, 0.0
  %1717 = vadd.xlane.f32.xlu0 %v1716
  %v1718 = vpop.xlane.xlu0 %1717
  %v1719 = vsel %vm332, %v1715, 0.0
  %1720 = vadd.xlane.f32.xlu0 %v1719
  %v1721 = vpop.xlane.xlu0 %1720
  %v1722 = vadd.f32 %v1718, 1e-16
  %v1723 = vadd.f32 %v1721, 1e-16
  %v1724 = vrcp.pop %v1722
  %v1725 = vmul.f32 %v1714, %v1724
  %v1726 = vrcp.pop %v1723
  %v1727 = vmul.f32 %v1715, %v1726
  %1728 = vrot.lane.b32.xlu0 %v1603, 64
  %v1729 = vpop.permute.xlu0 %1728
  %1730 = vrot.lane.b32.xlu0 %v1608, 64
  %v1731 = vpop.permute.xlu0 %1730
  %v1734 = vsel %vm328, %v1725, 0
  %v1737 = vsel %vm328, %v1727, 0
  %v1739 = vsel %vm367, %v1731, 0
  %1741 = vmatprep.subr.mxu0 0.0
  %1742 = vmatpush1.msra.mxu0 %v1729
  %1743 = vmatprep.subr.mxu0 0.0
  %1744 = vmatpush1.msra.mxu0 %v1739
  %1745 = vmatprep.subr.mxu0 0.0
  %1746 = vmatpush1.msra.mxu0 0.0
  %1747 = vmatprep.subr.mxu0 0.0
  %1748 = vmatpush1.msra.mxu0 0.0
  %1749 = vmatprep.subr.mxu0 0.0
  %1750 = vmatpush1.msra.mxu0 0.0
  %1751 = vmatprep.subr.mxu0 0.0
  %1752 = vmatpush1.msra.mxu0 0.0
  %1753 = vmatprep.subr.mxu0 0.0
  %1754 = vmatpush1.msra.mxu0 0.0
  %1755 = vmatprep.subr.mxu0 0.0
  %1756 = vmatpush1.msra.mxu0 0.0
  %1757 = vmatprep.subr.mxu0 0.0
  %1758 = vmatpush1.msra.mxu0 0.0
  %1759 = vmatprep.subr.mxu0 0.0
  %1760 = vmatpush1.msra.mxu0 0.0
  %1761 = vmatprep.subr.mxu0 0.0
  %1762 = vmatpush1.msra.mxu0 0.0
  %1763 = vmatprep.subr.mxu0 0.0
  %1764 = vmatpush1.msra.mxu0 0.0
  %1765 = vmatprep.subr.mxu0 0.0
  %1766 = vmatpush1.msra.mxu0 0.0
  %1767 = vmatprep.subr.mxu0 0.0
  %1768 = vmatpush1.msra.mxu0 0.0
  %1769 = vmatprep.subr.mxu0 0.0
  %1770 = vmatpush1.msra.mxu0 0.0
  %1771 = vmatprep.subr.mxu0 0.0
  %1772 = vmatpush1.msra.mxu0 0.0
  %1773 = vmatprep.subr.mxu0 0.0
  %1774 = vmatpush1.msra.mxu0 0.0
  %1775 = vmatprep.subr.mxu0 0.0
  %1776 = vmatpush1.msra.mxu0 0.0
  %1777 = vmatprep.subr.mxu0 0.0
  %1778 = vmatpush1.msra.mxu0 0.0
  %1779 = vmatprep.subr.mxu0 0.0
  %1780 = vmatpush1.msra.mxu0 0.0
  %1781 = vmatprep.subr.mxu0 0.0
  %1782 = vmatpush1.msra.mxu0 0.0
  %1783 = vmatprep.subr.mxu0 0.0
  %1784 = vmatpush1.msra.mxu0 0.0
  %1785 = vmatprep.subr.mxu0 0.0
  %1786 = vmatpush1.msra.mxu0 0.0
  %1787 = vmatprep.subr.mxu0 0.0
  %1788 = vmatpush1.msra.mxu0 0.0
  %1789 = vmatprep.subr.mxu0 0.0
  %1790 = vmatpush1.msra.mxu0 0.0
  %1791 = vmatprep.subr.mxu0 0.0
  %1792 = vmatpush1.msra.mxu0 0.0
  %1793 = vmatprep.subr.mxu0 0.0
  %1794 = vmatpush1.msra.mxu0 0.0
  %1795 = vmatprep.subr.mxu0 0.0
  %1796 = vmatpush1.msra.mxu0 0.0
  %1797 = vmatprep.subr.mxu0 0.0
  %1798 = vmatpush1.msra.mxu0 0.0
  %1799 = vmatprep.subr.mxu0 0.0
  %1800 = vmatpush1.msra.mxu0 0.0
  %1801 = vmatprep.subr.mxu0 0.0
  %1802 = vmatpush1.msra.mxu0 0.0
  %1803 = vmatprep.subr.mxu0 0.0
  %1804 = vmatpush1.msra.mxu0 0.0
  %1805 = vmatprep.mubr.f32.mxu0 0.0
  %1806 = vmatmul.mubr.f32.gmra.mrb[0].mxu0 %v1734
  %v1807 = vpop.f32.mrb[0].mxu0
  %v1808 = vadd.f32 0.0, %v1807
  %v1809 = vpop.f32.mrb[0].mxu0
  %1810 = vmatprep.mubr.f32.mxu0 0.0
  %1811 = vmatmul.mubr.f32.gmra.mrb[0].mxu0 %v1737
  %v1812 = vpop.f32.mrb[0].mxu0
  %v1813 = vadd.f32 0.0, %v1812
  %v1814 = vpop.f32.mrb[0].mxu0
  %1815 = vdwg.mxu0
  %v1816 = vmul.f32 %v1808, 0.5
  %v1817 = vmul.f32 %v1813, 0.5
  %v1818 = vmul.f32 %v1808, 0.044715
  %v1819 = vmul.f32 %v1813, 0.044715
  %v1820 = vmul.f32 %v1818, %v1808
  %v1821 = vmul.f32 %v1819, %v1813
  %v1822 = vmul.f32 %v1820, %v1808
  %v1823 = vmul.f32 %v1821, %v1813
  %v1824 = vadd.f32 %v1808, %v1822
  %v1825 = vadd.f32 %v1813, %v1823
  %v1826 = vmul.f32 %v1824, 0.7978846
  %v1827 = vmul.f32 %v1825, 0.7978846
  %v1828 = vtanh.pop %v1826
  %v1829 = vtanh.pop %v1827
  %v1830 = vadd.f32 %v1828, 1.0
  %v1831 = vadd.f32 %v1829, 1.0
  %v1832 = vmul.f32 %v1816, %v1830
  %v1833 = vmul.f32 %v1817, %v1831
  %1834 = vrot.lane.b32.xlu0 %v1603, 120
  %v1835 = vpop.permute.xlu0 %1834
  %1836 = vrot.lane.b32.xlu0 %v1608, 120
  %v1837 = vpop.permute.xlu0 %1836
  %1838 = vrot.lane.b32.xlu0 %v1603, 88
  %v1839 = vpop.permute.xlu0 %1838
  %1840 = vrot.lane.b32.xlu0 %v1608, 88
  %v1841 = vpop.permute.xlu0 %1840
  %v1842 = vsel %vm242, %v1835, 0
  %v1844 = vsel %vm242, %v1837, 0
  %v1846 = vsel %vm242, %v1839, 0
  %v1848 = vsel %vm242, %v1841, 0
  %1850 = vmatprep.subr.mxu0 0.0
  %1851 = vmatpush1.xpose.msra.mxu0 %v1846
  %1852 = vmatprep.subr.mxu0 0.0
  %1853 = vmatpush1.xpose.msra.mxu0 %v1848
  %1854 = vmatprep.subr.mxu0 0.0
  %1855 = vmatpush1.xpose.msra.mxu0 0.0
  %1856 = vmatprep.subr.mxu0 0.0
  %1857 = vmatpush1.xpose.msra.mxu0 0.0
  %1858 = vmatprep.subr.mxu0 0.0
  %1859 = vmatpush1.xpose.msra.mxu0 0.0
  %1860 = vmatprep.subr.mxu0 0.0
  %1861 = vmatpush1.xpose.msra.mxu0 0.0
  %1862 = vmatprep.subr.mxu0 0.0
  %1863 = vmatpush1.xpose.msra.mxu0 0.0
  %1864 = vmatprep.subr.mxu0 0.0
  %1865 = vmatpush1.xpose.msra.mxu0 0.0
  %1866 = vmatprep.subr.mxu0 0.0
  %1867 = vmatpush1.xpose.msra.mxu0 0.0
  %1868 = vmatprep.subr.mxu0 0.0
  %1869 = vmatpush1.xpose.msra.mxu0 0.0
  %1870 = vmatprep.subr.mxu0 0.0
  %1871 = vmatpush1.xpose.msra.mxu0 0.0
  %1872 = vmatprep.subr.mxu0 0.0
  %1873 = vmatpush1.xpose.msra.mxu0 0.0
  %1874 = vmatprep.subr.mxu0 0.0
  %1875 = vmatpush1.xpose.msra.mxu0 0.0
  %1876 = vmatprep.subr.mxu0 0.0
  %1877 = vmatpush1.xpose.msra.mxu0 0.0
  %1878 = vmatprep.subr.mxu0 0.0
  %1879 = vmatpush1.xpose.msra.mxu0 0.0
  %1880 = vmatprep.subr.mxu0 0.0
  %1881 = vmatpush1.xpose.msra.mxu0 0.0
  %1882 = vmatprep.subr.mxu0 0.0
  %1883 = vmatpush1.xpose.msra.mxu0 0.0
  %1884 = vmatprep.subr.mxu0 0.0
  %1885 = vmatpush1.xpose.msra.mxu0 0.0
  %1886 = vmatprep.subr.mxu0 0.0
  %1887 = vmatpush1.xpose.msra.mxu0 0.0
  %1888 = vmatprep.subr.mxu0 0.0
  %1889 = vmatpush1.xpose.msra.mxu0 0.0
  %1890 = vmatprep.subr.mxu0 0.0
  %1891 = vmatpush1.xpose.msra.mxu0 0.0
  %1892 = vmatprep.subr.mxu0 0.0
  %1893 = vmatpush1.xpose.msra.mxu0 0.0
  %1894 = vmatprep.subr.mxu0 0.0
  %1895 = vmatpush1.xpose.msra.mxu0 0.0
  %1896 = vmatprep.subr.mxu0 0.0
  %1897 = vmatpush1.xpose.msra.mxu0 0.0
  %1898 = vmatprep.subr.mxu0 0.0
  %1899 = vmatpush1.xpose.msra.mxu0 0.0
  %1900 = vmatprep.subr.mxu0 0.0
  %1901 = vmatpush1.xpose.msra.mxu0 0.0
  %1902 = vmatprep.subr.mxu0 0.0
  %1903 = vmatpush1.xpose.msra.mxu0 0.0
  %1904 = vmatprep.subr.mxu0 0.0
  %1905 = vmatpush1.xpose.msra.mxu0 0.0
  %1906 = vmatprep.subr.mxu0 0.0
  %1907 = vmatpush1.xpose.msra.mxu0 0.0
  %1908 = vmatprep.subr.mxu0 0.0
  %1909 = vmatpush1.xpose.msra.mxu0 0.0
  %1910 = vmatprep.subr.mxu0 0.0
  %1911 = vmatpush1.xpose.msra.mxu0 0.0
  %1912 = vmatprep.subr.mxu0 0.0
  %1913 = vmatpush1.xpose.msra.mxu0 0.0
  %1914 = vmatprep.mubr.f32.mxu0 0.0
  %1915 = vmatmul.mubr.f32.gmra.mrb[0].mxu0 %v1842
  %v1916 = vpop.f32.mrb[0].mxu0
  %v1917 = vadd.f32 0.0, %v1916
  %v1918 = vpop.f32.mrb[0].mxu0
  %1919 = vmatprep.mubr.f32.mxu0 0.0
  %1920 = vmatmul.mubr.f32.gmra.mrb[0].mxu0 %v1844
  %v1921 = vpop.f32.mrb[0].mxu0
  %v1922 = vadd.f32 0.0, %v1921
  %v1923 = vpop.f32.mrb[0].mxu0
  %1924 = vdwg.mxu0
  %v1925 = vsel %vm133, -1e+30, %v1917
  %v1926 = vsel %vm134, -1e+30, %v1922
  %v1927 = vsel %vm328, %v1925, -inf
  %1928 = vmax.xlane.f32.xlu0 %v1927
  %v1929 = vpop.xlane.xlu0 %1928
  %v1930 = vsel %vm332, %v1926, -inf
  %1931 = vmax.xlane.f32.xlu0 %v1930
  %v1932 = vpop.xlane.xlu0 %1931
  %v1933 = vsub.f32 %v1925, %v1929
  %v1934 = vsub.f32 %v1926, %v1932
  %v1935 = vmul.f32 %v1933, 1.442695
  %v1936 = vpow.pop %v1935
  %v1937 = vmul.f32 %v1934, 1.442695
  %v1938 = vpow.pop %v1937
  %v1939 = vmul.f32 %v1936, %v131
  %v1940 = vmul.f32 %v1938, %v132
  %v1941 = vsel %vm328, %v1939, 0.0
  %1942 = vadd.xlane.f32.xlu0 %v1941
  %v1943 = vpop.xlane.xlu0 %1942
  %v1944 = vsel %vm332, %v1940, 0.0
  %1945 = vadd.xlane.f32.xlu0 %v1944
  %v1946 = vpop.xlane.xlu0 %1945
  %v1947 = vadd.f32 %v1943, 1e-16
  %v1948 = vadd.f32 %v1946, 1e-16
  %v1949 = vrcp.pop %v1947
  %v1950 = vmul.f32 %v1939, %v1949
  %v1951 = vrcp.pop %v1948
  %v1952 = vmul.f32 %v1940, %v1951
  %1953 = vrot.lane.b32.xlu0 %v1603, 56
  %v1954 = vpop.permute.xlu0 %1953
  %1955 = vrot.lane.b32.xlu0 %v1608, 56
  %v1956 = vpop.permute.xlu0 %1955
  %v1959 = vsel %vm328, %v1950, 0
  %v1962 = vsel %vm328, %v1952, 0
  %v1964 = vsel %vm367, %v1956, 0
  %1966 = vmatprep.subr.mxu0 0.0
  %1967 = vmatpush1.msra.mxu0 %v1954
  %1968 = vmatprep.subr.mxu0 0.0
  %1969 = vmatpush1.msra.mxu0 %v1964
  %1970 = vmatprep.subr.mxu0 0.0
  %1971 = vmatpush1.msra.mxu0 0.0
  %1972 = vmatprep.subr.mxu0 0.0
  %1973 = vmatpush1.msra.mxu0 0.0
  %1974 = vmatprep.subr.mxu0 0.0
  %1975 = vmatpush1.msra.mxu0 0.0
  %1976 = vmatprep.subr.mxu0 0.0
  %1977 = vmatpush1.msra.mxu0 0.0
  %1978 = vmatprep.subr.mxu0 0.0
  %1979 = vmatpush1.msra.mxu0 0.0
  %1980 = vmatprep.subr.mxu0 0.0
  %1981 = vmatpush1.msra.mxu0 0.0
  %1982 = vmatprep.subr.mxu0 0.0
  %1983 = vmatpush1.msra.mxu0 0.0
  %1984 = vmatprep.subr.mxu0 0.0
  %1985 = vmatpush1.msra.mxu0 0.0
  %1986 = vmatprep.subr.mxu0 0.0
  %1987 = vmatpush1.msra.mxu0 0.0
  %1988 = vmatprep.subr.mxu0 0.0
  %1989 = vmatpush1.msra.mxu0 0.0
  %1990 = vmatprep.subr.mxu0 0.0
  %1991 = vmatpush1.msra.mxu0 0.0
  %1992 = vmatprep.subr.mxu0 0.0
  %1993 = vmatpush1.msra.mxu0 0.0
  %1994 = vmatprep.subr.mxu0 0.0
  %1995 = vmatpush1.msra.mxu0 0.0
  %1996 = vmatprep.subr.mxu0 0.0
  %1997 = vmatpush1.msra.mxu0 0.0
  %1998 = vmatprep.subr.mxu0 0.0
  %1999 = vmatpush1.msra.mxu0 0.0
  %2000 = vmatprep.subr.mxu0 0.0
  %2001 = vmatpush1.msra.mxu0 0.0
  %2002 = vmatprep.subr.mxu0 0.0
  %2003 = vmatpush1.msra.mxu0 0.0
  %2004 = vmatprep.subr.mxu0 0.0
  %2005 = vmatpush1.msra.mxu0 0.0
  %2006 = vmatprep.subr.mxu0 0.0
  %2007 = vmatpush1.msra.mxu0 0.0
  %2008 = vmatprep.subr.mxu0 0.0
  %2009 = vmatpush1.msra.mxu0 0.0
  %2010 = vmatprep.subr.mxu0 0.0
  %2011 = vmatpush1.msra.mxu0 0.0
  %2012 = vmatprep.subr.mxu0 0.0
  %2013 = vmatpush1.msra.mxu0 0.0
  %2014 = vmatprep.subr.mxu0 0.0
  %2015 = vmatpush1.msra.mxu0 0.0
  %2016 = vmatprep.subr.mxu0 0.0
  %2017 = vmatpush1.msra.mxu0 0.0
  %2018 = vmatprep.subr.mxu0 0.0
  %2019 = vmatpush1.msra.mxu0 0.0
  %2020 = vmatprep.subr.mxu0 0.0
  %2021 = vmatpush1.msra.mxu0 0.0
  %2022 = vmatprep.subr.mxu0 0.0
  %2023 = vmatpush1.msra.mxu0 0.0
  %2024 = vmatprep.subr.mxu0 0.0
  %2025 = vmatpush1.msra.mxu0 0.0
  %2026 = vmatprep.subr.mxu0 0.0
  %2027 = vmatpush1.msra.mxu0 0.0
  %2028 = vmatprep.subr.mxu0 0.0
  %2029 = vmatpush1.msra.mxu0 0.0
  %2030 = vmatprep.mubr.f32.mxu0 0.0
  %2031 = vmatmul.mubr.f32.gmra.mrb[0].mxu0 %v1959
  %v2032 = vpop.f32.mrb[0].mxu0
  %v2033 = vadd.f32 0.0, %v2032
  %v2034 = vpop.f32.mrb[0].mxu0
  %2035 = vmatprep.mubr.f32.mxu0 0.0
  %2036 = vmatmul.mubr.f32.gmra.mrb[0].mxu0 %v1962
  %v2037 = vpop.f32.mrb[0].mxu0
  %v2038 = vadd.f32 0.0, %v2037
  %v2039 = vpop.f32.mrb[0].mxu0
  %2040 = vdwg.mxu0
  %v2041 = vmul.f32 %v2033, 0.5
  %v2042 = vmul.f32 %v2038, 0.5
  %v2043 = vmul.f32 %v2033, 0.044715
  %v2044 = vmul.f32 %v2038, 0.044715
  %v2045 = vmul.f32 %v2043, %v2033
  %v2046 = vmul.f32 %v2044, %v2038
  %v2047 = vmul.f32 %v2045, %v2033
  %v2048 = vmul.f32 %v2046, %v2038
  %v2049 = vadd.f32 %v2033, %v2047
  %v2050 = vadd.f32 %v2038, %v2048
  %v2051 = vmul.f32 %v2049, 0.7978846
  %v2052 = vmul.f32 %v2050, 0.7978846
  %v2053 = vtanh.pop %v2051
  %v2054 = vtanh.pop %v2052
  %v2055 = vadd.f32 %v2053, 1.0
  %v2056 = vadd.f32 %v2054, 1.0
  %v2057 = vmul.f32 %v2041, %v2055
  %v2058 = vmul.f32 %v2042, %v2056
  %v2060 = vsel %vm242, %v2057, 0
  %v2063 = vsel %vm242, %v2058, 0
  %2065 = vmatprep.subr.mxu0 0.0
  %2066 = vmatpush1.msra.mxu0 %v141
  %2067 = vmatprep.subr.mxu0 0.0
  %2068 = vmatpush1.msra.mxu0 0.0
  %2069 = vmatprep.subr.mxu0 0.0
  %2070 = vmatpush1.msra.mxu0 0.0
  %2071 = vmatprep.subr.mxu0 0.0
  %2072 = vmatpush1.msra.mxu0 0.0
  %2073 = vmatprep.subr.mxu0 0.0
  %2074 = vmatpush1.msra.mxu0 0.0
  %2075 = vmatprep.subr.mxu0 0.0
  %2076 = vmatpush1.msra.mxu0 0.0
  %2077 = vmatprep.subr.mxu0 0.0
  %2078 = vmatpush1.msra.mxu0 0.0
  %2079 = vmatprep.subr.mxu0 0.0
  %2080 = vmatpush1.msra.mxu0 0.0
  %2081 = vmatprep.subr.mxu0 0.0
  %2082 = vmatpush1.msra.mxu0 0.0
  %2083 = vmatprep.subr.mxu0 0.0
  %2084 = vmatpush1.msra.mxu0 0.0
  %2085 = vmatprep.subr.mxu0 0.0
  %2086 = vmatpush1.msra.mxu0 0.0
  %2087 = vmatprep.subr.mxu0 0.0
  %2088 = vmatpush1.msra.mxu0 0.0
  %2089 = vmatprep.subr.mxu0 0.0
  %2090 = vmatpush1.msra.mxu0 0.0
  %2091 = vmatprep.subr.mxu0 0.0
  %2092 = vmatpush1.msra.mxu0 0.0
  %2093 = vmatprep.subr.mxu0 0.0
  %2094 = vmatpush1.msra.mxu0 0.0
  %2095 = vmatprep.subr.mxu0 0.0
  %2096 = vmatpush1.msra.mxu0 0.0
  %2097 = vmatprep.subr.mxu0 0.0
  %2098 = vmatpush1.msra.mxu0 0.0
  %2099 = vmatprep.subr.mxu0 0.0
  %2100 = vmatpush1.msra.mxu0 0.0
  %2101 = vmatprep.subr.mxu0 0.0
  %2102 = vmatpush1.msra.mxu0 0.0
  %2103 = vmatprep.subr.mxu0 0.0
  %2104 = vmatpush1.msra.mxu0 0.0
  %2105 = vmatprep.subr.mxu0 0.0
  %2106 = vmatpush1.msra.mxu0 0.0
  %2107 = vmatprep.subr.mxu0 0.0
  %2108 = vmatpush1.msra.mxu0 0.0
  %2109 = vmatprep.subr.mxu0 0.0
  %2110 = vmatpush1.msra.mxu0 0.0
  %2111 = vmatprep.subr.mxu0 0.0
  %2112 = vmatpush1.msra.mxu0 0.0
  %2113 = vmatprep.subr.mxu0 0.0
  %2114 = vmatpush1.msra.mxu0 0.0
  %2115 = vmatprep.subr.mxu0 0.0
  %2116 = vmatpush1.msra.mxu0 0.0
  %2117 = vmatprep.subr.mxu0 0.0
  %2118 = vmatpush1.msra.mxu0 0.0
  %2119 = vmatprep.subr.mxu0 0.0
  %2120 = vmatpush1.msra.mxu0 0.0
  %2121 = vmatprep.subr.mxu0 0.0
  %2122 = vmatpush1.msra.mxu0 0.0
  %2123 = vmatprep.subr.mxu0 0.0
  %2124 = vmatpush1.msra.mxu0 0.0
  %2125 = vmatprep.subr.mxu0 0.0
  %2126 = vmatpush1.msra.mxu0 0.0
  %2127 = vmatprep.subr.mxu0 0.0
  %2128 = vmatpush1.msra.mxu0 0.0
  %2129 = vmatprep.mubr.f32.mxu0 0.0
  %2130 = vmatmul.mubr.f32.gmra.mrb[0].mxu0 %v2060
  %v2131 = vpop.f32.mrb[0].mxu0
  %v2132 = vadd.f32 0.0, %v2131
  %v2133 = vpop.f32.mrb[0].mxu0
  %2134 = vmatprep.mubr.f32.mxu0 0.0
  %2135 = vmatmul.mubr.f32.gmra.mrb[0].mxu0 %v2063
  %v2136 = vpop.f32.mrb[0].mxu0
  %v2137 = vadd.f32 0.0, %v2136
  %v2138 = vpop.f32.mrb[0].mxu0
  %2139 = vdwg.mxu0
  %v2141 = vsel %vm242, %v1832, 0
  %v2144 = vsel %vm242, %v1833, 0
  %2146 = vmatprep.subr.mxu0 0.0
  %2147 = vmatpush1.msra.mxu0 %v140
  %2148 = vmatprep.subr.mxu0 0.0
  %2149 = vmatpush1.msra.mxu0 0.0
  %2150 = vmatprep.subr.mxu0 0.0
  %2151 = vmatpush1.msra.mxu0 0.0
  %2152 = vmatprep.subr.mxu0 0.0
  %2153 = vmatpush1.msra.mxu0 0.0
  %2154 = vmatprep.subr.mxu0 0.0
  %2155 = vmatpush1.msra.mxu0 0.0
  %2156 = vmatprep.subr.mxu0 0.0
  %2157 = vmatpush1.msra.mxu0 0.0
  %2158 = vmatprep.subr.mxu0 0.0
  %2159 = vmatpush1.msra.mxu0 0.0
  %2160 = vmatprep.subr.mxu0 0.0
  %2161 = vmatpush1.msra.mxu0 0.0
  %2162 = vmatprep.subr.mxu0 0.0
  %2163 = vmatpush1.msra.mxu0 0.0
  %2164 = vmatprep.subr.mxu0 0.0
  %2165 = vmatpush1.msra.mxu0 0.0
  %2166 = vmatprep.subr.mxu0 0.0
  %2167 = vmatpush1.msra.mxu0 0.0
  %2168 = vmatprep.subr.mxu0 0.0
  %2169 = vmatpush1.msra.mxu0 0.0
  %2170 = vmatprep.subr.mxu0 0.0
  %2171 = vmatpush1.msra.mxu0 0.0
  %2172 = vmatprep.subr.mxu0 0.0
  %2173 = vmatpush1.msra.mxu0 0.0
  %2174 = vmatprep.subr.mxu0 0.0
  %2175 = vmatpush1.msra.mxu0 0.0
  %2176 = vmatprep.subr.mxu0 0.0
  %2177 = vmatpush1.msra.mxu0 0.0
  %2178 = vmatprep.subr.mxu0 0.0
  %2179 = vmatpush1.msra.mxu0 0.0
  %2180 = vmatprep.subr.mxu0 0.0
  %2181 = vmatpush1.msra.mxu0 0.0
  %2182 = vmatprep.subr.mxu0 0.0
  %2183 = vmatpush1.msra.mxu0 0.0
  %2184 = vmatprep.subr.mxu0 0.0
  %2185 = vmatpush1.msra.mxu0 0.0
  %2186 = vmatprep.subr.mxu0 0.0
  %2187 = vmatpush1.msra.mxu0 0.0
  %2188 = vmatprep.subr.mxu0 0.0
  %2189 = vmatpush1.msra.mxu0 0.0
  %2190 = vmatprep.subr.mxu0 0.0
  %2191 = vmatpush1.msra.mxu0 0.0
  %2192 = vmatprep.subr.mxu0 0.0
  %2193 = vmatpush1.msra.mxu0 0.0
  %2194 = vmatprep.subr.mxu0 0.0
  %2195 = vmatpush1.msra.mxu0 0.0
  %2196 = vmatprep.subr.mxu0 0.0
  %2197 = vmatpush1.msra.mxu0 0.0
  %2198 = vmatprep.subr.mxu0 0.0
  %2199 = vmatpush1.msra.mxu0 0.0
  %2200 = vmatprep.subr.mxu0 0.0
  %2201 = vmatpush1.msra.mxu0 0.0
  %2202 = vmatprep.subr.mxu0 0.0
  %2203 = vmatpush1.msra.mxu0 0.0
  %2204 = vmatprep.subr.mxu0 0.0
  %2205 = vmatpush1.msra.mxu0 0.0
  %2206 = vmatprep.subr.mxu0 0.0
  %2207 = vmatpush1.msra.mxu0 0.0
  %2208 = vmatprep.subr.mxu0 0.0
  %2209 = vmatpush1.msra.mxu0 0.0
  %2210 = vmatprep.mubr.f32.mxu0 0.0
  %2211 = vmatmul.mubr.f32.gmra.mrb[0].mxu0 %v2141
  %v2212 = vpop.f32.mrb[0].mxu0
  %v2213 = vadd.f32 %v2132, %v2212
  %v2214 = vpop.f32.mrb[0].mxu0
  %2215 = vmatprep.mubr.f32.mxu0 0.0
  %2216 = vmatmul.mubr.f32.gmra.mrb[0].mxu0 %v2144
  %v2217 = vpop.f32.mrb[0].mxu0
  %v2218 = vadd.f32 %v2137, %v2217
  %v2219 = vpop.f32.mrb[0].mxu0
  %2220 = vdwg.mxu0
  %2221 = vrot.lane.b32.xlu0 %v1603, 112
  %v2222 = vpop.permute.xlu0 %2221
  %2223 = vrot.lane.b32.xlu0 %v1608, 112
  %v2224 = vpop.permute.xlu0 %2223
  %2225 = vrot.lane.b32.xlu0 %v1603, 80
  %v2226 = vpop.permute.xlu0 %2225
  %2227 = vrot.lane.b32.xlu0 %v1608, 80
  %v2228 = vpop.permute.xlu0 %2227
  %v2229 = vsel %vm242, %v2222, 0
  %v2231 = vsel %vm242, %v2224, 0
  %v2233 = vsel %vm242, %v2226, 0
  %v2235 = vsel %vm242, %v2228, 0
  %2237 = vmatprep.subr.mxu0 0.0
  %2238 = vmatpush1.xpose.msra.mxu0 %v2233
  %2239 = vmatprep.subr.mxu0 0.0
  %2240 = vmatpush1.xpose.msra.mxu0 %v2235
  %2241 = vmatprep.subr.mxu0 0.0
  %2242 = vmatpush1.xpose.msra.mxu0 0.0
  %2243 = vmatprep.subr.mxu0 0.0
  %2244 = vmatpush1.xpose.msra.mxu0 0.0
  %2245 = vmatprep.subr.mxu0 0.0
  %2246 = vmatpush1.xpose.msra.mxu0 0.0
  %2247 = vmatprep.subr.mxu0 0.0
  %2248 = vmatpush1.xpose.msra.mxu0 0.0
  %2249 = vmatprep.subr.mxu0 0.0
  %2250 = vmatpush1.xpose.msra.mxu0 0.0
  %2251 = vmatprep.subr.mxu0 0.0
  %2252 = vmatpush1.xpose.msra.mxu0 0.0
  %2253 = vmatprep.subr.mxu0 0.0
  %2254 = vmatpush1.xpose.msra.mxu0 0.0
  %2255 = vmatprep.subr.mxu0 0.0
  %2256 = vmatpush1.xpose.msra.mxu0 0.0
  %2257 = vmatprep.subr.mxu0 0.0
  %2258 = vmatpush1.xpose.msra.mxu0 0.0
  %2259 = vmatprep.subr.mxu0 0.0
  %2260 = vmatpush1.xpose.msra.mxu0 0.0
  %2261 = vmatprep.subr.mxu0 0.0
  %2262 = vmatpush1.xpose.msra.mxu0 0.0
  %2263 = vmatprep.subr.mxu0 0.0
  %2264 = vmatpush1.xpose.msra.mxu0 0.0
  %2265 = vmatprep.subr.mxu0 0.0
  %2266 = vmatpush1.xpose.msra.mxu0 0.0
  %2267 = vmatprep.subr.mxu0 0.0
  %2268 = vmatpush1.xpose.msra.mxu0 0.0
  %2269 = vmatprep.subr.mxu0 0.0
  %2270 = vmatpush1.xpose.msra.mxu0 0.0
  %2271 = vmatprep.subr.mxu0 0.0
  %2272 = vmatpush1.xpose.msra.mxu0 0.0
  %2273 = vmatprep.subr.mxu0 0.0
  %2274 = vmatpush1.xpose.msra.mxu0 0.0
  %2275 = vmatprep.subr.mxu0 0.0
  %2276 = vmatpush1.xpose.msra.mxu0 0.0
  %2277 = vmatprep.subr.mxu0 0.0
  %2278 = vmatpush1.xpose.msra.mxu0 0.0
  %2279 = vmatprep.subr.mxu0 0.0
  %2280 = vmatpush1.xpose.msra.mxu0 0.0
  %2281 = vmatprep.subr.mxu0 0.0
  %2282 = vmatpush1.xpose.msra.mxu0 0.0
  %2283 = vmatprep.subr.mxu0 0.0
  %2284 = vmatpush1.xpose.msra.mxu0 0.0
  %2285 = vmatprep.subr.mxu0 0.0
  %2286 = vmatpush1.xpose.msra.mxu0 0.0
  %2287 = vmatprep.subr.mxu0 0.0
  %2288 = vmatpush1.xpose.msra.mxu0 0.0
  %2289 = vmatprep.subr.mxu0 0.0
  %2290 = vmatpush1.xpose.msra.mxu0 0.0
  %2291 = vmatprep.subr.mxu0 0.0
  %2292 = vmatpush1.xpose.msra.mxu0 0.0
  %2293 = vmatprep.subr.mxu0 0.0
  %2294 = vmatpush1.xpose.msra.mxu0 0.0
  %2295 = vmatprep.subr.mxu0 0.0
  %2296 = vmatpush1.xpose.msra.mxu0 0.0
  %2297 = vmatprep.subr.mxu0 0.0
  %2298 = vmatpush1.xpose.msra.mxu0 0.0
  %2299 = vmatprep.subr.mxu0 0.0
  %2300 = vmatpush1.xpose.msra.mxu0 0.0
  %2301 = vmatprep.mubr.f32.mxu0 0.0
  %2302 = vmatmul.mubr.f32.gmra.mrb[0].mxu0 %v2229
  %v2303 = vpop.f32.mrb[0].mxu0
  %v2304 = vadd.f32 0.0, %v2303
  %v2305 = vpop.f32.mrb[0].mxu0
  %2306 = vmatprep.mubr.f32.mxu0 0.0
  %2307 = vmatmul.mubr.f32.gmra.mrb[0].mxu0 %v2231
  %v2308 = vpop.f32.mrb[0].mxu0
  %v2309 = vadd.f32 0.0, %v2308
  %v2310 = vpop.f32.mrb[0].mxu0
  %2311 = vdwg.mxu0
  %v2312 = vsel %vm133, -1e+30, %v2304
  %v2313 = vsel %vm134, -1e+30, %v2309
  %v2314 = vsel %vm328, %v2312, -inf
  %2315 = vmax.xlane.f32.xlu0 %v2314
  %v2316 = vpop.xlane.xlu0 %2315
  %v2317 = vsel %vm332, %v2313, -inf
  %2318 = vmax.xlane.f32.xlu0 %v2317
  %v2319 = vpop.xlane.xlu0 %2318
  %v2320 = vsub.f32 %v2312, %v2316
  %v2321 = vsub.f32 %v2313, %v2319
  %v2322 = vmul.f32 %v2320, 1.442695
  %v2323 = vpow.pop %v2322
  %v2324 = vmul.f32 %v2321, 1.442695
  %v2325 = vpow.pop %v2324
  %v2326 = vmul.f32 %v2323, %v131
  %v2327 = vmul.f32 %v2325, %v132
  %v2328 = vsel %vm328, %v2326, 0.0
  %2329 = vadd.xlane.f32.xlu0 %v2328
  %v2330 = vpop.xlane.xlu0 %2329
  %v2331 = vsel %vm332, %v2327, 0.0
  %2332 = vadd.xlane.f32.xlu0 %v2331
  %v2333 = vpop.xlane.xlu0 %2332
  %v2334 = vadd.f32 %v2330, 1e-16
  %v2335 = vadd.f32 %v2333, 1e-16
  %v2336 = vrcp.pop %v2334
  %v2337 = vmul.f32 %v2326, %v2336
  %v2338 = vrcp.pop %v2335
  %v2339 = vmul.f32 %v2327, %v2338
  %2340 = vrot.lane.b32.xlu0 %v1603, 48
  %v2341 = vpop.permute.xlu0 %2340
  %2342 = vrot.lane.b32.xlu0 %v1608, 48
  %v2343 = vpop.permute.xlu0 %2342
  %v2346 = vsel %vm328, %v2337, 0
  %v2349 = vsel %vm328, %v2339, 0
  %v2351 = vsel %vm367, %v2343, 0
  %2353 = vmatprep.subr.mxu0 0.0
  %2354 = vmatpush1.msra.mxu0 %v2341
  %2355 = vmatprep.subr.mxu0 0.0
  %2356 = vmatpush1.msra.mxu0 %v2351
  %2357 = vmatprep.subr.mxu0 0.0
  %2358 = vmatpush1.msra.mxu0 0.0
  %2359 = vmatprep.subr.mxu0 0.0
  %2360 = vmatpush1.msra.mxu0 0.0
  %2361 = vmatprep.subr.mxu0 0.0
  %2362 = vmatpush1.msra.mxu0 0.0
  %2363 = vmatprep.subr.mxu0 0.0
  %2364 = vmatpush1.msra.mxu0 0.0
  %2365 = vmatprep.subr.mxu0 0.0
  %2366 = vmatpush1.msra.mxu0 0.0
  %2367 = vmatprep.subr.mxu0 0.0
  %2368 = vmatpush1.msra.mxu0 0.0
  %2369 = vmatprep.subr.mxu0 0.0
  %2370 = vmatpush1.msra.mxu0 0.0
  %2371 = vmatprep.subr.mxu0 0.0
  %2372 = vmatpush1.msra.mxu0 0.0
  %2373 = vmatprep.subr.mxu0 0.0
  %2374 = vmatpush1.msra.mxu0 0.0
  %2375 = vmatprep.subr.mxu0 0.0
  %2376 = vmatpush1.msra.mxu0 0.0
  %2377 = vmatprep.subr.mxu0 0.0
  %2378 = vmatpush1.msra.mxu0 0.0
  %2379 = vmatprep.subr.mxu0 0.0
  %2380 = vmatpush1.msra.mxu0 0.0
  %2381 = vmatprep.subr.mxu0 0.0
  %2382 = vmatpush1.msra.mxu0 0.0
  %2383 = vmatprep.subr.mxu0 0.0
  %2384 = vmatpush1.msra.mxu0 0.0
  %2385 = vmatprep.subr.mxu0 0.0
  %2386 = vmatpush1.msra.mxu0 0.0
  %2387 = vmatprep.subr.mxu0 0.0
  %2388 = vmatpush1.msra.mxu0 0.0
  %2389 = vmatprep.subr.mxu0 0.0
  %2390 = vmatpush1.msra.mxu0 0.0
  %2391 = vmatprep.subr.mxu0 0.0
  %2392 = vmatpush1.msra.mxu0 0.0
  %2393 = vmatprep.subr.mxu0 0.0
  %2394 = vmatpush1.msra.mxu0 0.0
  %2395 = vmatprep.subr.mxu0 0.0
  %2396 = vmatpush1.msra.mxu0 0.0
  %2397 = vmatprep.subr.mxu0 0.0
  %2398 = vmatpush1.msra.mxu0 0.0
  %2399 = vmatprep.subr.mxu0 0.0
  %2400 = vmatpush1.msra.mxu0 0.0
  %2401 = vmatprep.subr.mxu0 0.0
  %2402 = vmatpush1.msra.mxu0 0.0
  %2403 = vmatprep.subr.mxu0 0.0
  %2404 = vmatpush1.msra.mxu0 0.0
  %2405 = vmatprep.subr.mxu0 0.0
  %2406 = vmatpush1.msra.mxu0 0.0
  %2407 = vmatprep.subr.mxu0 0.0
  %2408 = vmatpush1.msra.mxu0 0.0
  %2409 = vmatprep.subr.mxu0 0.0
  %2410 = vmatpush1.msra.mxu0 0.0
  %2411 = vmatprep.subr.mxu0 0.0
  %2412 = vmatpush1.msra.mxu0 0.0
  %2413 = vmatprep.subr.mxu0 0.0
  %2414 = vmatpush1.msra.mxu0 0.0
  %2415 = vmatprep.subr.mxu0 0.0
  %2416 = vmatpush1.msra.mxu0 0.0
  %2417 = vmatprep.mubr.f32.mxu0 0.0
  %2418 = vmatmul.mubr.f32.gmra.mrb[0].mxu0 %v2346
  %v2419 = vpop.f32.mrb[0].mxu0
  %v2420 = vadd.f32 0.0, %v2419
  %v2421 = vpop.f32.mrb[0].mxu0
  %2422 = vmatprep.mubr.f32.mxu0 0.0
  %2423 = vmatmul.mubr.f32.gmra.mrb[0].mxu0 %v2349
  %v2424 = vpop.f32.mrb[0].mxu0
  %v2425 = vadd.f32 0.0, %v2424
  %v2426 = vpop.f32.mrb[0].mxu0
  %2427 = vdwg.mxu0
  %v2428 = vmul.f32 %v2420, 0.5
  %v2429 = vmul.f32 %v2425, 0.5
  %v2430 = vmul.f32 %v2420, 0.044715
  %v2431 = vmul.f32 %v2425, 0.044715
  %v2432 = vmul.f32 %v2430, %v2420
  %v2433 = vmul.f32 %v2431, %v2425
  %v2434 = vmul.f32 %v2432, %v2420
  %v2435 = vmul.f32 %v2433, %v2425
  %v2436 = vadd.f32 %v2420, %v2434
  %v2437 = vadd.f32 %v2425, %v2435
  %v2438 = vmul.f32 %v2436, 0.7978846
  %v2439 = vmul.f32 %v2437, 0.7978846
  %v2440 = vtanh.pop %v2438
  %v2441 = vtanh.pop %v2439
  %v2442 = vadd.f32 %v2440, 1.0
  %v2443 = vadd.f32 %v2441, 1.0
  %v2444 = vmul.f32 %v2428, %v2442
  %v2445 = vmul.f32 %v2429, %v2443
  %v2447 = vsel %vm242, %v2444, 0
  %v2450 = vsel %vm242, %v2445, 0
  %2452 = vmatprep.subr.mxu0 0.0
  %2453 = vmatpush1.msra.mxu0 %v142
  %2454 = vmatprep.subr.mxu0 0.0
  %2455 = vmatpush1.msra.mxu0 0.0
  %2456 = vmatprep.subr.mxu0 0.0
  %2457 = vmatpush1.msra.mxu0 0.0
  %2458 = vmatprep.subr.mxu0 0.0
  %2459 = vmatpush1.msra.mxu0 0.0
  %2460 = vmatprep.subr.mxu0 0.0
  %2461 = vmatpush1.msra.mxu0 0.0
  %2462 = vmatprep.subr.mxu0 0.0
  %2463 = vmatpush1.msra.mxu0 0.0
  %2464 = vmatprep.subr.mxu0 0.0
  %2465 = vmatpush1.msra.mxu0 0.0
  %2466 = vmatprep.subr.mxu0 0.0
  %2467 = vmatpush1.msra.mxu0 0.0
  %2468 = vmatprep.subr.mxu0 0.0
  %2469 = vmatpush1.msra.mxu0 0.0
  %2470 = vmatprep.subr.mxu0 0.0
  %2471 = vmatpush1.msra.mxu0 0.0
  %2472 = vmatprep.subr.mxu0 0.0
  %2473 = vmatpush1.msra.mxu0 0.0
  %2474 = vmatprep.subr.mxu0 0.0
  %2475 = vmatpush1.msra.mxu0 0.0
  %2476 = vmatprep.subr.mxu0 0.0
  %2477 = vmatpush1.msra.mxu0 0.0
  %2478 = vmatprep.subr.mxu0 0.0
  %2479 = vmatpush1.msra.mxu0 0.0
  %2480 = vmatprep.subr.mxu0 0.0
  %2481 = vmatpush1.msra.mxu0 0.0
  %2482 = vmatprep.subr.mxu0 0.0
  %2483 = vmatpush1.msra.mxu0 0.0
  %2484 = vmatprep.subr.mxu0 0.0
  %2485 = vmatpush1.msra.mxu0 0.0
  %2486 = vmatprep.subr.mxu0 0.0
  %2487 = vmatpush1.msra.mxu0 0.0
  %2488 = vmatprep.subr.mxu0 0.0
  %2489 = vmatpush1.msra.mxu0 0.0
  %2490 = vmatprep.subr.mxu0 0.0
  %2491 = vmatpush1.msra.mxu0 0.0
  %2492 = vmatprep.subr.mxu0 0.0
  %2493 = vmatpush1.msra.mxu0 0.0
  %2494 = vmatprep.subr.mxu0 0.0
  %2495 = vmatpush1.msra.mxu0 0.0
  %2496 = vmatprep.subr.mxu0 0.0
  %2497 = vmatpush1.msra.mxu0 0.0
  %2498 = vmatprep.subr.mxu0 0.0
  %2499 = vmatpush1.msra.mxu0 0.0
  %2500 = vmatprep.subr.mxu0 0.0
  %2501 = vmatpush1.msra.mxu0 0.0
  %2502 = vmatprep.subr.mxu0 0.0
  %2503 = vmatpush1.msra.mxu0 0.0
  %2504 = vmatprep.subr.mxu0 0.0
  %2505 = vmatpush1.msra.mxu0 0.0
  %2506 = vmatprep.subr.mxu0 0.0
  %2507 = vmatpush1.msra.mxu0 0.0
  %2508 = vmatprep.subr.mxu0 0.0
  %2509 = vmatpush1.msra.mxu0 0.0
  %2510 = vmatprep.subr.mxu0 0.0
  %2511 = vmatpush1.msra.mxu0 0.0
  %2512 = vmatprep.subr.mxu0 0.0
  %2513 = vmatpush1.msra.mxu0 0.0
  %2514 = vmatprep.subr.mxu0 0.0
  %2515 = vmatpush1.msra.mxu0 0.0
  %2516 = vmatprep.mubr.f32.mxu0 0.0
  %2517 = vmatmul.mubr.f32.gmra.mrb[0].mxu0 %v2447
  %v2518 = vpop.f32.mrb[0].mxu0
  %v2519 = vadd.f32 0.0, %v2518
  %v2520 = vpop.f32.mrb[0].mxu0
  %2521 = vmatprep.mubr.f32.mxu0 0.0
  %2522 = vmatmul.mubr.f32.gmra.mrb[0].mxu0 %v2450
  %v2523 = vpop.f32.mrb[0].mxu0
  %v2524 = vadd.f32 0.0, %v2523
  %v2525 = vpop.f32.mrb[0].mxu0
  %2526 = vdwg.mxu0
  %v2527 = vadd.f32 %v2213, %v2519
  %v2528 = vadd.f32 %v2218, %v2524
  %2529 = vrot.lane.b32.xlu0 %v1603, 104
  %v2530 = vpop.permute.xlu0 %2529
  %2531 = vrot.lane.b32.xlu0 %v1608, 104
  %v2532 = vpop.permute.xlu0 %2531
  %2533 = vrot.lane.b32.xlu0 %v1603, 72
  %v2534 = vpop.permute.xlu0 %2533
  %2535 = vrot.lane.b32.xlu0 %v1608, 72
  %v2536 = vpop.permute.xlu0 %2535
  %v2537 = vsel %vm242, %v2530, 0
  %v2539 = vsel %vm242, %v2532, 0
  %v2541 = vsel %vm242, %v2534, 0
  %v2543 = vsel %vm242, %v2536, 0
  %2545 = vmatprep.subr.mxu0 0.0
  %2546 = vmatpush1.xpose.msra.mxu0 %v2541
  %2547 = vmatprep.subr.mxu0 0.0
  %2548 = vmatpush1.xpose.msra.mxu0 %v2543
  %2549 = vmatprep.subr.mxu0 0.0
  %2550 = vmatpush1.xpose.msra.mxu0 0.0
  %2551 = vmatprep.subr.mxu0 0.0
  %2552 = vmatpush1.xpose.msra.mxu0 0.0
  %2553 = vmatprep.subr.mxu0 0.0
  %2554 = vmatpush1.xpose.msra.mxu0 0.0
  %2555 = vmatprep.subr.mxu0 0.0
  %2556 = vmatpush1.xpose.msra.mxu0 0.0
  %2557 = vmatprep.subr.mxu0 0.0
  %2558 = vmatpush1.xpose.msra.mxu0 0.0
  %2559 = vmatprep.subr.mxu0 0.0
  %2560 = vmatpush1.xpose.msra.mxu0 0.0
  %2561 = vmatprep.subr.mxu0 0.0
  %2562 = vmatpush1.xpose.msra.mxu0 0.0
  %2563 = vmatprep.subr.mxu0 0.0
  %2564 = vmatpush1.xpose.msra.mxu0 0.0
  %2565 = vmatprep.subr.mxu0 0.0
  %2566 = vmatpush1.xpose.msra.mxu0 0.0
  %2567 = vmatprep.subr.mxu0 0.0
  %2568 = vmatpush1.xpose.msra.mxu0 0.0
  %2569 = vmatprep.subr.mxu0 0.0
  %2570 = vmatpush1.xpose.msra.mxu0 0.0
  %2571 = vmatprep.subr.mxu0 0.0
  %2572 = vmatpush1.xpose.msra.mxu0 0.0
  %2573 = vmatprep.subr.mxu0 0.0
  %2574 = vmatpush1.xpose.msra.mxu0 0.0
  %2575 = vmatprep.subr.mxu0 0.0
  %2576 = vmatpush1.xpose.msra.mxu0 0.0
  %2577 = vmatprep.subr.mxu0 0.0
  %2578 = vmatpush1.xpose.msra.mxu0 0.0
  %2579 = vmatprep.subr.mxu0 0.0
  %2580 = vmatpush1.xpose.msra.mxu0 0.0
  %2581 = vmatprep.subr.mxu0 0.0
  %2582 = vmatpush1.xpose.msra.mxu0 0.0
  %2583 = vmatprep.subr.mxu0 0.0
  %2584 = vmatpush1.xpose.msra.mxu0 0.0
  %2585 = vmatprep.subr.mxu0 0.0
  %2586 = vmatpush1.xpose.msra.mxu0 0.0
  %2587 = vmatprep.subr.mxu0 0.0
  %2588 = vmatpush1.xpose.msra.mxu0 0.0
  %2589 = vmatprep.subr.mxu0 0.0
  %2590 = vmatpush1.xpose.msra.mxu0 0.0
  %2591 = vmatprep.subr.mxu0 0.0
  %2592 = vmatpush1.xpose.msra.mxu0 0.0
  %2593 = vmatprep.subr.mxu0 0.0
  %2594 = vmatpush1.xpose.msra.mxu0 0.0
  %2595 = vmatprep.subr.mxu0 0.0
  %2596 = vmatpush1.xpose.msra.mxu0 0.0
  %2597 = vmatprep.subr.mxu0 0.0
  %2598 = vmatpush1.xpose.msra.mxu0 0.0
  %2599 = vmatprep.subr.mxu0 0.0
  %2600 = vmatpush1.xpose.msra.mxu0 0.0
  %2601 = vmatprep.subr.mxu0 0.0
  %2602 = vmatpush1.xpose.msra.mxu0 0.0
  %2603 = vmatprep.subr.mxu0 0.0
  %2604 = vmatpush1.xpose.msra.mxu0 0.0
  %2605 = vmatprep.subr.mxu0 0.0
  %2606 = vmatpush1.xpose.msra.mxu0 0.0
  %2607 = vmatprep.subr.mxu0 0.0
  %2608 = vmatpush1.xpose.msra.mxu0 0.0
  %2609 = vmatprep.mubr.f32.mxu0 0.0
  %2610 = vmatmul.mubr.f32.gmra.mrb[0].mxu0 %v2537
  %v2611 = vpop.f32.mrb[0].mxu0
  %v2612 = vadd.f32 0.0, %v2611
  %v2613 = vpop.f32.mrb[0].mxu0
  %2614 = vmatprep.mubr.f32.mxu0 0.0
  %2615 = vmatmul.mubr.f32.gmra.mrb[0].mxu0 %v2539
  %v2616 = vpop.f32.mrb[0].mxu0
  %v2617 = vadd.f32 0.0, %v2616
  %v2618 = vpop.f32.mrb[0].mxu0
  %2619 = vdwg.mxu0
  %v2620 = vsel %vm133, -1e+30, %v2612
  %v2621 = vsel %vm134, -1e+30, %v2617
  %v2622 = vsel %vm328, %v2620, -inf
  %2623 = vmax.xlane.f32.xlu0 %v2622
  %v2624 = vpop.xlane.xlu0 %2623
  %v2625 = vsel %vm332, %v2621, -inf
  %2626 = vmax.xlane.f32.xlu0 %v2625
  %v2627 = vpop.xlane.xlu0 %2626
  %v2628 = vsub.f32 %v2620, %v2624
  %v2629 = vsub.f32 %v2621, %v2627
  %v2630 = vmul.f32 %v2628, 1.442695
  %v2631 = vpow.pop %v2630
  %v2632 = vmul.f32 %v2629, 1.442695
  %v2633 = vpow.pop %v2632
  %v2634 = vmul.f32 %v2631, %v131
  %v2635 = vmul.f32 %v2633, %v132
  %v2636 = vsel %vm328, %v2634, 0.0
  %2637 = vadd.xlane.f32.xlu0 %v2636
  %v2638 = vpop.xlane.xlu0 %2637
  %v2639 = vsel %vm332, %v2635, 0.0
  %2640 = vadd.xlane.f32.xlu0 %v2639
  %v2641 = vpop.xlane.xlu0 %2640
  %v2642 = vadd.f32 %v2638, 1e-16
  %v2643 = vadd.f32 %v2641, 1e-16
  %v2644 = vrcp.pop %v2642
  %v2645 = vmul.f32 %v2634, %v2644
  %v2646 = vrcp.pop %v2643
  %v2647 = vmul.f32 %v2635, %v2646
  %2648 = vrot.lane.b32.xlu0 %v1603, 40
  %v2649 = vpop.permute.xlu0 %2648
  %2650 = vrot.lane.b32.xlu0 %v1608, 40
  %v2651 = vpop.permute.xlu0 %2650
  %v2654 = vsel %vm328, %v2645, 0
  %v2657 = vsel %vm328, %v2647, 0
  %v2659 = vsel %vm367, %v2651, 0
  %2661 = vmatprep.subr.mxu0 0.0
  %2662 = vmatpush1.msra.mxu0 %v2649
  %2663 = vmatprep.subr.mxu0 0.0
  %2664 = vmatpush1.msra.mxu0 %v2659
  %2665 = vmatprep.subr.mxu0 0.0
  %2666 = vmatpush1.msra.mxu0 0.0
  %2667 = vmatprep.subr.mxu0 0.0
  %2668 = vmatpush1.msra.mxu0 0.0
  %2669 = vmatprep.subr.mxu0 0.0
  %2670 = vmatpush1.msra.mxu0 0.0
  %2671 = vmatprep.subr.mxu0 0.0
  %2672 = vmatpush1.msra.mxu0 0.0
  %2673 = vmatprep.subr.mxu0 0.0
  %2674 = vmatpush1.msra.mxu0 0.0
  %2675 = vmatprep.subr.mxu0 0.0
  %2676 = vmatpush1.msra.mxu0 0.0
  %2677 = vmatprep.subr.mxu0 0.0
  %2678 = vmatpush1.msra.mxu0 0.0
  %2679 = vmatprep.subr.mxu0 0.0
  %2680 = vmatpush1.msra.mxu0 0.0
  %2681 = vmatprep.subr.mxu0 0.0
  %2682 = vmatpush1.msra.mxu0 0.0
  %2683 = vmatprep.subr.mxu0 0.0
  %2684 = vmatpush1.msra.mxu0 0.0
  %2685 = vmatprep.subr.mxu0 0.0
  %2686 = vmatpush1.msra.mxu0 0.0
  %2687 = vmatprep.subr.mxu0 0.0
  %2688 = vmatpush1.msra.mxu0 0.0
  %2689 = vmatprep.subr.mxu0 0.0
  %2690 = vmatpush1.msra.mxu0 0.0
  %2691 = vmatprep.subr.mxu0 0.0
  %2692 = vmatpush1.msra.mxu0 0.0
  %2693 = vmatprep.subr.mxu0 0.0
  %2694 = vmatpush1.msra.mxu0 0.0
  %2695 = vmatprep.subr.mxu0 0.0
  %2696 = vmatpush1.msra.mxu0 0.0
  %2697 = vmatprep.subr.mxu0 0.0
  %2698 = vmatpush1.msra.mxu0 0.0
  %2699 = vmatprep.subr.mxu0 0.0
  %2700 = vmatpush1.msra.mxu0 0.0
  %2701 = vmatprep.subr.mxu0 0.0
  %2702 = vmatpush1.msra.mxu0 0.0
  %2703 = vmatprep.subr.mxu0 0.0
  %2704 = vmatpush1.msra.mxu0 0.0
  %2705 = vmatprep.subr.mxu0 0.0
  %2706 = vmatpush1.msra.mxu0 0.0
  %2707 = vmatprep.subr.mxu0 0.0
  %2708 = vmatpush1.msra.mxu0 0.0
  %2709 = vmatprep.subr.mxu0 0.0
  %2710 = vmatpush1.msra.mxu0 0.0
  %2711 = vmatprep.subr.mxu0 0.0
  %2712 = vmatpush1.msra.mxu0 0.0
  %2713 = vmatprep.subr.mxu0 0.0
  %2714 = vmatpush1.msra.mxu0 0.0
  %2715 = vmatprep.subr.mxu0 0.0
  %2716 = vmatpush1.msra.mxu0 0.0
  %2717 = vmatprep.subr.mxu0 0.0
  %2718 = vmatpush1.msra.mxu0 0.0
  %2719 = vmatprep.subr.mxu0 0.0
  %2720 = vmatpush1.msra.mxu0 0.0
  %2721 = vmatprep.subr.mxu0 0.0
  %2722 = vmatpush1.msra.mxu0 0.0
  %2723 = vmatprep.subr.mxu0 0.0
  %2724 = vmatpush1.msra.mxu0 0.0
  %2725 = vmatprep.mubr.f32.mxu0 0.0
  %2726 = vmatmul.mubr.f32.gmra.mrb[0].mxu0 %v2654
  %v2727 = vpop.f32.mrb[0].mxu0
  %v2728 = vadd.f32 0.0, %v2727
  %v2729 = vpop.f32.mrb[0].mxu0
  %2730 = vmatprep.mubr.f32.mxu0 0.0
  %2731 = vmatmul.mubr.f32.gmra.mrb[0].mxu0 %v2657
  %v2732 = vpop.f32.mrb[0].mxu0
  %v2733 = vadd.f32 0.0, %v2732
  %v2734 = vpop.f32.mrb[0].mxu0
  %2735 = vdwg.mxu0
  %v2736 = vmul.f32 %v2728, 0.5
  %v2737 = vmul.f32 %v2733, 0.5
  %v2738 = vmul.f32 %v2728, 0.044715
  %v2739 = vmul.f32 %v2733, 0.044715
  %v2740 = vmul.f32 %v2738, %v2728
  %v2741 = vmul.f32 %v2739, %v2733
  %v2742 = vmul.f32 %v2740, %v2728
  %v2743 = vmul.f32 %v2741, %v2733
  %v2744 = vadd.f32 %v2728, %v2742
  %v2745 = vadd.f32 %v2733, %v2743
  %v2746 = vmul.f32 %v2744, 0.7978846
  %v2747 = vmul.f32 %v2745, 0.7978846
  %v2748 = vtanh.pop %v2746
  %v2749 = vtanh.pop %v2747
  %v2750 = vadd.f32 %v2748, 1.0
  %v2751 = vadd.f32 %v2749, 1.0
  %v2752 = vmul.f32 %v2736, %v2750
  %v2753 = vmul.f32 %v2737, %v2751
  %v2755 = vsel %vm242, %v2752, 0
  %v2758 = vsel %vm242, %v2753, 0
  %2760 = vmatprep.subr.mxu0 0.0
  %2761 = vmatpush1.msra.mxu0 %v143
  %2762 = vmatprep.subr.mxu0 0.0
  %2763 = vmatpush1.msra.mxu0 0.0
  %2764 = vmatprep.subr.mxu0 0.0
  %2765 = vmatpush1.msra.mxu0 0.0
  %2766 = vmatprep.subr.mxu0 0.0
  %2767 = vmatpush1.msra.mxu0 0.0
  %2768 = vmatprep.subr.mxu0 0.0
  %2769 = vmatpush1.msra.mxu0 0.0
  %2770 = vmatprep.subr.mxu0 0.0
  %2771 = vmatpush1.msra.mxu0 0.0
  %2772 = vmatprep.subr.mxu0 0.0
  %2773 = vmatpush1.msra.mxu0 0.0
  %2774 = vmatprep.subr.mxu0 0.0
  %2775 = vmatpush1.msra.mxu0 0.0
  %2776 = vmatprep.subr.mxu0 0.0
  %2777 = vmatpush1.msra.mxu0 0.0
  %2778 = vmatprep.subr.mxu0 0.0
  %2779 = vmatpush1.msra.mxu0 0.0
  %2780 = vmatprep.subr.mxu0 0.0
  %2781 = vmatpush1.msra.mxu0 0.0
  %2782 = vmatprep.subr.mxu0 0.0
  %2783 = vmatpush1.msra.mxu0 0.0
  %2784 = vmatprep.subr.mxu0 0.0
  %2785 = vmatpush1.msra.mxu0 0.0
  %2786 = vmatprep.subr.mxu0 0.0
  %2787 = vmatpush1.msra.mxu0 0.0
  %2788 = vmatprep.subr.mxu0 0.0
  %2789 = vmatpush1.msra.mxu0 0.0
  %2790 = vmatprep.subr.mxu0 0.0
  %2791 = vmatpush1.msra.mxu0 0.0
  %2792 = vmatprep.subr.mxu0 0.0
  %2793 = vmatpush1.msra.mxu0 0.0
  %2794 = vmatprep.subr.mxu0 0.0
  %2795 = vmatpush1.msra.mxu0 0.0
  %2796 = vmatprep.subr.mxu0 0.0
  %2797 = vmatpush1.msra.mxu0 0.0
  %2798 = vmatprep.subr.mxu0 0.0
  %2799 = vmatpush1.msra.mxu0 0.0
  %2800 = vmatprep.subr.mxu0 0.0
  %2801 = vmatpush1.msra.mxu0 0.0
  %2802 = vmatprep.subr.mxu0 0.0
  %2803 = vmatpush1.msra.mxu0 0.0
  %2804 = vmatprep.subr.mxu0 0.0
  %2805 = vmatpush1.msra.mxu0 0.0
  %2806 = vmatprep.subr.mxu0 0.0
  %2807 = vmatpush1.msra.mxu0 0.0
  %2808 = vmatprep.subr.mxu0 0.0
  %2809 = vmatpush1.msra.mxu0 0.0
  %2810 = vmatprep.subr.mxu0 0.0
  %2811 = vmatpush1.msra.mxu0 0.0
  %2812 = vmatprep.subr.mxu0 0.0
  %2813 = vmatpush1.msra.mxu0 0.0
  %2814 = vmatprep.subr.mxu0 0.0
  %2815 = vmatpush1.msra.mxu0 0.0
  %2816 = vmatprep.subr.mxu0 0.0
  %2817 = vmatpush1.msra.mxu0 0.0
  %2818 = vmatprep.subr.mxu0 0.0
  %2819 = vmatpush1.msra.mxu0 0.0
  %2820 = vmatprep.subr.mxu0 0.0
  %2821 = vmatpush1.msra.mxu0 0.0
  %2822 = vmatprep.subr.mxu0 0.0
  %2823 = vmatpush1.msra.mxu0 0.0
  %2824 = vmatprep.mubr.f32.mxu0 0.0
  %2825 = vmatmul.mubr.f32.gmra.mrb[0].mxu0 %v2755
  %v2826 = vpop.f32.mrb[0].mxu0
  %v2827 = vadd.f32 0.0, %v2826
  %v2828 = vpop.f32.mrb[0].mxu0
  %2829 = vmatprep.mubr.f32.mxu0 0.0
  %2830 = vmatmul.mubr.f32.gmra.mrb[0].mxu0 %v2758
  %v2831 = vpop.f32.mrb[0].mxu0
  %v2832 = vadd.f32 0.0, %v2831
  %v2833 = vpop.f32.mrb[0].mxu0
  %2834 = vdwg.mxu0
  %v2835 = vadd.f32 %v2527, %v2827
  %v2836 = vadd.f32 %v2528, %v2832
  %v2837 = vadd.f32 %v2835, %v1469
  %v2838 = vadd.f32 %v2836, %v1469
  %v2839 = vmul.f32 %v1475, %v1528
  %v2840 = vmul.f32 %v1475, %v1529
  %v2841 = vadd.f32 %v2837, %v2839
  %v2842 = vadd.f32 %v2838, %v2840
  %vm2843 = vcmp.gt.f32.partialorder %v2841, 0.0
  %vm2844 = vcmp.gt.f32.partialorder %v2842, 0.0
  %v2845 = vmul.f32 %v2841, 1.442695
  %v2846 = vpow.pop %v2845
  %v2847 = vmul.f32 %v2842, 1.442695
  %v2848 = vpow.pop %v2847
  %v2849 = vsub.f32 %v2846, 1.0
  %v2850 = vsub.f32 %v2848, 1.0
  %v2851 = vsel %vm2843, %v2841, %v2849
  %v2852 = vsel %vm2844, %v2842, %v2850
  %v2853 = vsel %vm154, %v2851, 0.0
  %2854 = vadd.xlane.f32.xlu0 %v2853
  %v2855 = vpop.xlane.xlu0 %2854
  %v2856 = vsel %vm1493, %v2852, 0.0
  %2857 = vadd.xlane.f32.xlu0 %v2856
  %v2858 = vpop.xlane.xlu0 %2857
  %v2859 = vmul.f32 %v2855, %v1497
  %v2860 = vmul.f32 %v2858, %v1497
  %v2861 = vsub.f32 %v2851, %v2859
  %v2862 = vsub.f32 %v2852, %v2860
  %v2863 = vmul.f32 %v2861, %v2861
  %v2864 = vmul.f32 %v2862, %v2862
  %v2865 = vsel %vm154, %v2863, 0.0
  %2866 = vadd.xlane.f32.xlu0 %v2865
  %v2867 = vpop.xlane.xlu0 %2866
  %v2868 = vsel %vm1493, %v2864, 0.0
  %2869 = vadd.xlane.f32.xlu0 %v2868
  %v2870 = vpop.xlane.xlu0 %2869
  %v2871 = vmul.f32 %v2867, %v1497
  %v2872 = vmul.f32 %v2870, %v1497
  %v2873 = vadd.f32 %v2871, 1e-05
  %v2874 = vadd.f32 %v2872, 1e-05
  %v2875 = vrsqrt.pop %v2873
  %v2876 = vrsqrt.pop %v2874
  %v2877 = vmul.f32 %v2861, %v2875
  %v2878 = vmul.f32 %v2862, %v2876
  %v2879 = vmul.f32 %v2877, %v1521
  %v2880 = vmul.f32 %v2878, %v1521
  %v2881 = vadd.f32 %v2879, %v1527
  %v2882 = vadd.f32 %v2880, %v1527
  %v2883 = vld [vmem:[%s2] sm:$0x7]
  %vm2884 = vcmask 92160
  %v2885 = vsel %vm2884, %v2883, 0.0
  %2886 = vadd.xlane.f32.xlu0 %v2885
  %v2887 = vpop.xlane.xlu0 %2886
  %v2889 = vsel %vm328, %v2883, 0
  %v2892 = vsel %vm367, %v2882, 0
  %2894 = vmatprep.subr.mxu0 0.0
  %2895 = vmatpush1.msra.mxu0 %v2881
  %2896 = vmatprep.subr.mxu0 0.0
  %2897 = vmatpush1.msra.mxu0 %v2892
  %2898 = vmatprep.subr.mxu0 0.0
  %2899 = vmatpush1.msra.mxu0 0.0
  %2900 = vmatprep.subr.mxu0 0.0
  %2901 = vmatpush1.msra.mxu0 0.0
  %2902 = vmatprep.subr.mxu0 0.0
  %2903 = vmatpush1.msra.mxu0 0.0
  %2904 = vmatprep.subr.mxu0 0.0
  %2905 = vmatpush1.msra.mxu0 0.0
  %2906 = vmatprep.subr.mxu0 0.0
  %2907 = vmatpush1.msra.mxu0 0.0
  %2908 = vmatprep.subr.mxu0 0.0
  %2909 = vmatpush1.msra.mxu0 0.0
  %2910 = vmatprep.subr.mxu0 0.0
  %2911 = vmatpush1.msra.mxu0 0.0
  %2912 = vmatprep.subr.mxu0 0.0
  %2913 = vmatpush1.msra.mxu0 0.0
  %2914 = vmatprep.subr.mxu0 0.0
  %2915 = vmatpush1.msra.mxu0 0.0
  %2916 = vmatprep.subr.mxu0 0.0
  %2917 = vmatpush1.msra.mxu0 0.0
  %2918 = vmatprep.subr.mxu0 0.0
  %2919 = vmatpush1.msra.mxu0 0.0
  %2920 = vmatprep.subr.mxu0 0.0
  %2921 = vmatpush1.msra.mxu0 0.0
  %2922 = vmatprep.subr.mxu0 0.0
  %2923 = vmatpush1.msra.mxu0 0.0
  %2924 = vmatprep.subr.mxu0 0.0
  %2925 = vmatpush1.msra.mxu0 0.0
  %2926 = vmatprep.subr.mxu0 0.0
  %2927 = vmatpush1.msra.mxu0 0.0
  %2928 = vmatprep.subr.mxu0 0.0
  %2929 = vmatpush1.msra.mxu0 0.0
  %2930 = vmatprep.subr.mxu0 0.0
  %2931 = vmatpush1.msra.mxu0 0.0
  %2932 = vmatprep.subr.mxu0 0.0
  %2933 = vmatpush1.msra.mxu0 0.0
  %2934 = vmatprep.subr.mxu0 0.0
  %2935 = vmatpush1.msra.mxu0 0.0
  %2936 = vmatprep.subr.mxu0 0.0
  %2937 = vmatpush1.msra.mxu0 0.0
  %2938 = vmatprep.subr.mxu0 0.0
  %2939 = vmatpush1.msra.mxu0 0.0
  %2940 = vmatprep.subr.mxu0 0.0
  %2941 = vmatpush1.msra.mxu0 0.0
  %2942 = vmatprep.subr.mxu0 0.0
  %2943 = vmatpush1.msra.mxu0 0.0
  %2944 = vmatprep.subr.mxu0 0.0
  %2945 = vmatpush1.msra.mxu0 0.0
  %2946 = vmatprep.subr.mxu0 0.0
  %2947 = vmatpush1.msra.mxu0 0.0
  %2948 = vmatprep.subr.mxu0 0.0
  %2949 = vmatpush1.msra.mxu0 0.0
  %2950 = vmatprep.subr.mxu0 0.0
  %2951 = vmatpush1.msra.mxu0 0.0
  %2952 = vmatprep.subr.mxu0 0.0
  %2953 = vmatpush1.msra.mxu0 0.0
  %2954 = vmatprep.subr.mxu0 0.0
  %2955 = vmatpush1.msra.mxu0 0.0
  %2956 = vmatprep.subr.mxu0 0.0
  %2957 = vmatpush1.msra.mxu0 0.0
  %2958 = vmatprep.mubr.f32.mxu0 0.0
  %2959 = vmatmul.mubr.f32.gmra.mrb[0].mxu0 %v2889
  %v2960 = vpop.f32.mrb[0].mxu0
  %v2961 = vadd.f32 0.0, %v2960
  %v2962 = vpop.f32.mrb[0].mxu0
  %2963 = vdwg.mxu0
  %v2964 = vmax.f32 %v2887, 1.0
  %v2965 = vrcp.pop %v2964
  %v2966 = vmul.f32 %v2961, %v2965
  %v2967 = vld [vmem:[%s9] sm:$0xff]
  %v2968 = vld [vmem:[%s9 + $0x8] sm:$0xff]
  %v2969 = vld [vmem:[%s9 + $0x10] sm:$0xff]
  %v2970 = vld [vmem:[%s9 + $0x18] sm:$0xff]
  %v2971 = vld [vmem:[%s10] sm:$0x1]
  %v2973 = vlaneseq
  %v2974 = vshrl.u32 %v2973, 7
  %v2975 = vsub.s32 0, %v2974
  %v2976 = vrot.slane %v2971, %v2975
  %v2979 = vsel %vm154, %v2966, 0
  %2981 = vmatprep.subr.mxu0 0.0
  %2982 = vmatpush1.msra.mxu0 %v2967
  %2983 = vmatprep.subr.mxu0 0.0
  %2984 = vmatpush1.msra.mxu0 %v2968
  %2985 = vmatprep.subr.mxu0 0.0
  %2986 = vmatpush1.msra.mxu0 %v2969
  %2987 = vmatprep.subr.mxu0 0.0
  %2988 = vmatpush1.msra.mxu0 %v2970
  %2989 = vmatprep.subr.mxu0 0.0
  %2990 = vmatpush1.msra.mxu0 0.0
  %2991 = vmatprep.subr.mxu0 0.0
  %2992 = vmatpush1.msra.mxu0 0.0
  %2993 = vmatprep.subr.mxu0 0.0
  %2994 = vmatpush1.msra.mxu0 0.0
  %2995 = vmatprep.subr.mxu0 0.0
  %2996 = vmatpush1.msra.mxu0 0.0
  %2997 = vmatprep.subr.mxu0 0.0
  %2998 = vmatpush1.msra.mxu0 0.0
  %2999 = vmatprep.subr.mxu0 0.0
  %3000 = vmatpush1.msra.mxu0 0.0
  %3001 = vmatprep.subr.mxu0 0.0
  %3002 = vmatpush1.msra.mxu0 0.0
  %3003 = vmatprep.subr.mxu0 0.0
  %3004 = vmatpush1.msra.mxu0 0.0
  %3005 = vmatprep.subr.mxu0 0.0
  %3006 = vmatpush1.msra.mxu0 0.0
  %3007 = vmatprep.subr.mxu0 0.0
  %3008 = vmatpush1.msra.mxu0 0.0
  %3009 = vmatprep.subr.mxu0 0.0
  %3010 = vmatpush1.msra.mxu0 0.0
  %3011 = vmatprep.subr.mxu0 0.0
  %3012 = vmatpush1.msra.mxu0 0.0
  %3013 = vmatprep.subr.mxu0 0.0
  %3014 = vmatpush1.msra.mxu0 0.0
  %3015 = vmatprep.subr.mxu0 0.0
  %3016 = vmatpush1.msra.mxu0 0.0
  %3017 = vmatprep.subr.mxu0 0.0
  %3018 = vmatpush1.msra.mxu0 0.0
  %3019 = vmatprep.subr.mxu0 0.0
  %3020 = vmatpush1.msra.mxu0 0.0
  %3021 = vmatprep.subr.mxu0 0.0
  %3022 = vmatpush1.msra.mxu0 0.0
  %3023 = vmatprep.subr.mxu0 0.0
  %3024 = vmatpush1.msra.mxu0 0.0
  %3025 = vmatprep.subr.mxu0 0.0
  %3026 = vmatpush1.msra.mxu0 0.0
  %3027 = vmatprep.subr.mxu0 0.0
  %3028 = vmatpush1.msra.mxu0 0.0
  %3029 = vmatprep.subr.mxu0 0.0
  %3030 = vmatpush1.msra.mxu0 0.0
  %3031 = vmatprep.subr.mxu0 0.0
  %3032 = vmatpush1.msra.mxu0 0.0
  %3033 = vmatprep.subr.mxu0 0.0
  %3034 = vmatpush1.msra.mxu0 0.0
  %3035 = vmatprep.subr.mxu0 0.0
  %3036 = vmatpush1.msra.mxu0 0.0
  %3037 = vmatprep.subr.mxu0 0.0
  %3038 = vmatpush1.msra.mxu0 0.0
  %3039 = vmatprep.subr.mxu0 0.0
  %3040 = vmatpush1.msra.mxu0 0.0
  %3041 = vmatprep.subr.mxu0 0.0
  %3042 = vmatpush1.msra.mxu0 0.0
  %3043 = vmatprep.subr.mxu0 0.0
  %3044 = vmatpush1.msra.mxu0 0.0
  %3045 = vmatprep.mubr.f32.mxu0 0.0
  %3046 = vmatmul.mubr.f32.gmra.mrb[0].mxu0 %v2979
  %v3047 = vpop.f32.mrb[0].mxu0
  %v3048 = vadd.f32 %v2976, %v3047
  %v3049 = vpop.f32.mrb[0].mxu0
  %3050 = vdwg.mxu0
  %vm3051 = vcmask 10240
  %3052 = vst.msk [vmem:[%s11] sm:$0x7] %vm3051, %v3048
  // Predicated region
  $region46: #{hetero_graph_hgt_forward.1} parent=0 // pred_check
    _
  $region47: #{hetero_graph_hgt_forward.1} parent=0 // pred_check_branch
    %3054 = sbr.rel (0) target = $region49
  $region48: #{hetero_graph_hgt_forward.1} parent=0 // pred_region
    _
  $region49: #{hetero_graph_hgt_forward.1} parent=0 // pred_fallthru
    _
  // Predicated region
  $region50: #{hetero_graph_hgt_forward.1} parent=0 // pred_check
    _
  $region51: #{hetero_graph_hgt_forward.1} parent=0 // pred_check_branch
    %3056 = sbr.rel (0) target = $region53
  $region52: #{hetero_graph_hgt_forward.1} parent=0 // pred_region
    _
  $region53: #{hetero_graph_hgt_forward.1} parent=0 // pred_fallthru
    _

</llo_original>
